<compile_context>
chip_gen: v6e
topology: v6e:2x2x1
jax: 0.10.0
libtpu: 0.0.40
codegen_flags: <defaults>
</compile_context>

<pallas_src>
import jax
import jax.numpy as jnp
from jax.experimental import pallas as pl
from jax.experimental.pallas import tpu as pltpu


def _round_up(a, m):
    return (a + m - 1) // m * m


def _make_kernel(*, K, P, TL, Hp, L, cp_in, cp_out, use_im2col, slope=0.1):
    f32 = jnp.float32

    def kernel(x_ref, w1_ref, sc1_ref, bi1_ref, w2_ref, sc2_ref, bi2_ref,
               ws_ref, bs_ref, o_ref, hpad_ref, *extra):
        neg = f32(slope)
        tile_start = pl.program_id(1) * TL          # first output row of this tile

        # ---- conv1 (+ fused 1x1 shortcut on the im2col path) ----------------
        if use_im2col:
            stag1_ref, stag2_ref, res_ref = extra
            for t in range(K):                      # static unroll: build staging
                stag1_ref[:, t * cp_in:(t + 1) * cp_in] = x_ref[t:t + Hp, :]
            out1 = jnp.dot(stag1_ref[...], w1_ref[...],
                           preferred_element_type=f32)        # (Hp, 2*cp_out)
            h = out1[:, :cp_out]
            # centre-tap rows of the second column block are the 1x1 shortcut
            res_ref[...] = out1[P:P + TL, cp_out:] + bs_ref[...]
        else:
            h = jnp.zeros((Hp, cp_out), f32)
            for t in range(K):                      # per-tap accumulating matmuls
                h = h + jnp.dot(x_ref[t:t + Hp, :], w1_ref[t],
                                preferred_element_type=f32)

        # ---- BN1 + LeakyReLU (Dropout = identity in eval mode) --------------
        h = h * sc1_ref[...] + bi1_ref[...]
        h = jnp.maximum(h, neg * h)
        # PyTorch zero-pads the activation before conv2: zero every h row whose
        # global position lies outside [0, L) (sequence halo / length padding).
        gidx = tile_start - P + jax.lax.broadcasted_iota(jnp.int32, (Hp, 1), 0)
        h = jnp.where((gidx >= 0) & (gidx < L), h, 0.0)
        hpad_ref[...] = h.astype(hpad_ref.dtype)

        # ---- conv2 -----------------------------------------------------------
        if use_im2col:
            for t in range(K):
                stag2_ref[:, t * cp_out:(t + 1) * cp_out] = hpad_ref[t:t + TL, :]
            y = jnp.dot(stag2_ref[...], w2_ref[...], preferred_element_type=f32)
            res = res_ref[...]
        else:
            y = jnp.zeros((TL, cp_out), f32)
            for t in range(K):
                y = y + jnp.dot(hpad_ref[t:t + TL, :], w2_ref[t],
                                preferred_element_type=f32)
            res = jnp.dot(x_ref[2 * P:2 * P + TL, :], ws_ref[...],
                          preferred_element_type=f32) + bs_ref[...]

        # ---- BN2 + residual + LeakyReLU --------------------------------------
        y = y * sc2_ref[...] + bi2_ref[...] + res
        o_ref[...] = jnp.maximum(y, neg * y).astype(o_ref.dtype)

    return kernel


def _fold_and_pad_params(p, cp_in, cp_out, eps=1e-5):
    """Fold conv bias + BN into scale/shift; pad channels to the lane width."""
    f32 = jnp.float32
    Cout, Cin, K = p["w1"].shape

    w1 = jnp.transpose(p["w1"].astype(f32), (2, 1, 0))            # (K, Cin, Cout)
    w2 = jnp.transpose(p["w2"].astype(f32), (2, 1, 0))            # (K, Cout, Cout)
    if "ws" in p:                                                  # 1x1 conv shortcut
        ws = jnp.transpose(p["ws"][:, :, 0].astype(f32), (1, 0))  # (Cin, Cout)
        bs = p["bs"].astype(f32)
    else:                                                          # identity shortcut
        ws = jnp.eye(Cin, Cout, dtype=f32)
        bs = jnp.zeros((Cout,), f32)

    s1 = p["g1"] / jnp.sqrt(p["rv1"] + eps)
    s2 = p["g2"] / jnp.sqrt(p["rv2"] + eps)
    b1 = p["be1"] + s1 * (p["b1"] - p["rm1"])
    b2 = p["be2"] + s2 * (p["b2"] - p["rm2"])

    def pad3(w, ci, co):
        k, a, b = w.shape
        return jnp.zeros((k, ci, co), f32).at[:, :a, :b].set(w)

    w1p = pad3(w1, cp_in, cp_out)                                  # (K, cp_in, cp_out)
    w2p = pad3(w2, cp_out, cp_out)                                 # (K, cp_out, cp_out)
    wsp = jnp.zeros((cp_in, cp_out), f32).at[:Cin, :Cout].set(ws)

    def padv(v):
        return jnp.zeros((1, cp_out), f32).at[0, :Cout].set(v.astype(f32))

    return w1p, w2p, wsp, padv(s1), padv(b1), padv(s2), padv(b2), padv(bs)


def residual_block_pallas(x_ncw, params, *, eps=1e-5, tile_l=256, use_im2col=None):
    """Eval-mode ResidualBlock forward; x_ncw: (B, Cin, L) in PyTorch layout."""
    B, Cin, L = x_ncw.shape
    Cout, _, K = params["w1"].shape
    assert K % 2 == 1, "only odd kernel_size ('same' padding) supported"
    P = (K - 1) // 2

    if use_im2col is None:            # per-tap on v4/v5 (128x128 MXU); deep im2col
        try:                          # on v6e/v7x where the MXU is 256 deep/wide.
            kind = jax.devices()[0].device_kind.lower()
            use_im2col = not ("v5" in kind or "v4" in kind)
        except Exception:
            use_im2col = True

    LANE, SUB = 128, 16               # lane width / bf16 sublane tile
    cp_in = _round_up(Cin, LANE)
    cp_out = _round_up(Cout, LANE)
    TL = min(_round_up(L, SUB), _round_up(tile_l, SUB))   # output rows per tile
    nL = -(-L // TL)
    Lt = nL * TL
    Hp = _round_up(TL + 2 * P, SUB)   # h rows computed per tile (incl. conv2 halo)
    TLH = _round_up(Hp + 2 * P, SUB)  # x rows fetched per tile (incl. conv1 halo)

    # NCW -> NLC bf16, channel-pad to the lane width, 2P leading zero halo, then
    # gather per-tile halo'd windows so the kernel's x block is O(TL), not O(L).
    x_nlc = jnp.transpose(x_ncw, (0, 2, 1)).astype(jnp.bfloat16)
    Lpad = (nL - 1) * TL + TLH
    x_pad = jnp.zeros((B, Lpad, cp_in), jnp.bfloat16)
    x_pad = x_pad.at[:, 2 * P:2 * P + L, :Cin].set(x_nlc)
    win = jnp.arange(nL)[:, None] * TL + jnp.arange(TLH)[None, :]   # (nL, TLH)
    x_tiles = x_pad[:, win, :]                                      # (B, nL, TLH, cp_in)

    w1p, w2p, wsp, sc1, bi1, sc2, bi2, bs = _fold_and_pad_params(
        params, cp_in, cp_out, eps)

    if use_im2col:
        # Fuse the 1x1 shortcut into conv1's RHS at the centre tap -> N = 2*cp_out
        # fills the 256-wide MXU; residual falls out of the same matmul.
        ws_block = jnp.zeros((K, cp_in, cp_out), jnp.float32).at[P].set(wsp)
        w1_arr = jnp.concatenate([w1p, ws_block], axis=-1) \
                    .reshape(K * cp_in, 2 * cp_out).astype(jnp.bfloat16)
        w2_arr = w2p.reshape(K * cp_out, cp_out).astype(jnp.bfloat16)
        w1_spec = pl.BlockSpec((K * cp_in, 2 * cp_out), lambda b, l: (0, 0))
        w2_spec = pl.BlockSpec((K * cp_out, cp_out), lambda b, l: (0, 0))
        scratch = [
            pltpu.VMEM((Hp, cp_out), jnp.bfloat16),       # h (with halo), bf16
            pltpu.VMEM((Hp, K * cp_in), jnp.bfloat16),    # conv1 im2col staging
            pltpu.VMEM((TL, K * cp_out), jnp.bfloat16),   # conv2 im2col staging
            pltpu.VMEM((TL, cp_out), jnp.float32),        # residual
        ]
    else:
        w1_arr = w1p.astype(jnp.bfloat16)                 # (K, cp_in, cp_out)
        w2_arr = w2p.astype(jnp.bfloat16)                 # (K, cp_out, cp_out)
        w1_spec = pl.BlockSpec((K, cp_in, cp_out), lambda b, l: (0, 0, 0))
        w2_spec = pl.BlockSpec((K, cp_out, cp_out), lambda b, l: (0, 0, 0))
        scratch = [pltpu.VMEM((Hp, cp_out), jnp.bfloat16)]

    ws_arr = wsp.astype(jnp.bfloat16)
    vec_spec = pl.BlockSpec((1, cp_out), lambda b, l: (0, 0))

    kernel = _make_kernel(K=K, P=P, TL=TL, Hp=Hp, L=L, cp_in=cp_in,
                          cp_out=cp_out, use_im2col=use_im2col)

    out = pl.pallas_call(
        kernel,
        out_shape=jax.ShapeDtypeStruct((B, Lt, cp_out), jnp.bfloat16),
        grid_spec=pltpu.PrefetchScalarGridSpec(
            num_scalar_prefetch=0,
            grid=(B, nL),
            in_specs=[
                pl.BlockSpec((None, None, TLH, cp_in), lambda b, l: (b, l, 0, 0)),
                w1_spec,
                vec_spec,      # sc1
                vec_spec,      # bi1
                w2_spec,
                vec_spec,      # sc2
                vec_spec,      # bi2
                pl.BlockSpec((cp_in, cp_out), lambda b, l: (0, 0)),   # ws (per-tap path)
                vec_spec,      # bs
            ],
            out_specs=pl.BlockSpec((None, TL, cp_out), lambda b, l: (b, l, 0)),
            scratch_shapes=scratch,
        ),
        compiler_params=pltpu.CompilerParams(
            dimension_semantics=("parallel", "parallel")),
    )(x_tiles, w1_arr, sc1, bi1, w2_arr, sc2, bi2, ws_arr, bs)

    # Drop length/channel padding, back to PyTorch NCW layout, f32 output.
    return jnp.transpose(out[:, :L, :Cout], (0, 2, 1)).astype(jnp.float32)


# ---------------------------------------------------------------------------
# Parameter construction + pure-JAX reference (eval-mode PyTorch semantics)
# ---------------------------------------------------------------------------
def make_params(key, in_channels, out_channels, kernel_size):
    ks = jax.random.split(key, 12)

    def u(k, shape, scale):
        return jax.random.uniform(k, shape, jnp.float32, -scale, scale)

    fan1 = in_channels * kernel_size
    fan2 = out_channels * kernel_size
    p = {}
    # PyTorch Conv1d weight layout: (Cout, Cin, K)
    p["w1"] = u(ks[0], (out_channels, in_channels, kernel_size), fan1 ** -0.5)
    p["b1"] = u(ks[1], (out_channels,), fan1 ** -0.5)
    p["w2"] = u(ks[2], (out_channels, out_channels, kernel_size), fan2 ** -0.5)
    p["b2"] = u(ks[3], (out_channels,), fan2 ** -0.5)
    p["ws"] = u(ks[4], (out_channels, in_channels, 1), in_channels ** -0.5)
    p["bs"] = u(ks[5], (out_channels,), in_channels ** -0.5)
    # BatchNorm params + running stats (eval mode)
    p["g1"] = 1.0 + 0.1 * jax.random.normal(ks[6], (out_channels,), jnp.float32)
    p["be1"] = 0.1 * jax.random.normal(ks[7], (out_channels,), jnp.float32)
    p["rm1"] = 0.1 * jax.random.normal(ks[8], (out_channels,), jnp.float32)
    p["rv1"] = jnp.abs(jax.random.normal(ks[9], (out_channels,), jnp.float32)) + 0.5
    p["g2"] = 1.0 + 0.1 * jax.random.normal(ks[10], (out_channels,), jnp.float32)
    p["be2"] = 0.1 * jax.random.normal(ks[11], (out_channels,), jnp.float32)
    p["rm2"] = jnp.zeros((out_channels,), jnp.float32) + 0.05
    p["rv2"] = jnp.ones((out_channels,), jnp.float32) * 0.8
    return p


def ref_forward(x_ncw, p, eps=1e-5):
    """Pure-JAX eval-mode reference in PyTorch's NCW layout."""
    def conv1d(x, w_oik, b, pad):
        y = jax.lax.conv_general_dilated(
            x, w_oik, window_strides=(1,), padding=[(pad, pad)],
            dimension_numbers=("NCW", "OIW", "NCW"))
        return y + b[None, :, None]

    def bn(x, g, b, m, v):
        return (x - m[None, :, None]) * (g / jnp.sqrt(v + eps))[None, :, None] \
            + b[None, :, None]

    lrelu = lambda x: jnp.where(x >= 0, x, 0.1 * x)
    K = p["w1"].shape[-1]
    pad = (K - 1) // 2
    residual = conv1d(x_ncw, p["ws"], p["bs"], 0)
    h = lrelu(bn(conv1d(x_ncw, p["w1"], p["b1"], pad),
                 p["g1"], p["be1"], p["rm1"], p["rv1"]))
    h = bn(conv1d(h, p["w2"], p["b2"], pad), p["g2"], p["be2"], p["rm2"], p["rv2"])
    return lrelu(h + residual)


if __name__ == "__main__":
    B, Cin, Cout, L, K = 2, 4, 8, 16, 15
    key = jax.random.PRNGKey(0)
    kx, kp = jax.random.split(key)

    x_ncw = jax.random.normal(kx, (B, Cin, L), jnp.float32)     # PyTorch layout
    params = make_params(kp, Cin, Cout, K)
    ref = ref_forward(x_ncw, params)

    # Exercise both MXU strategies (im2col for v6e/v7x, per-tap for v5e/v4).
    for use_im2col in (True, False):
        out_ncw = residual_block_pallas(x_ncw, params, use_im2col=use_im2col)
        out_ncw = jax.block_until_ready(out_ncw)
        assert out_ncw.shape == ref.shape == (B, Cout, L)
        max_err = float(jnp.max(jnp.abs(out_ncw - ref)))
        # bf16 inputs/weights/output with f32 accumulation -> loosened tolerance.
        assert max_err < 5e-2, f"im2col={use_im2col}: mismatch vs reference: {max_err}"
    print("KERNEL_OK")
</pallas_src>

<mosaic_0001>
module attributes {stable_mosaic.version = 11 : i64} {
  func.func @kernel(%arg0: i32, %arg1: i32, %arg2: memref<1x1x48x128xbf16, #tpu.memory_space<vmem>>, %arg3: memref<1920x256xbf16, #tpu.memory_space<vmem>>, %arg4: memref<1x128xf32, #tpu.memory_space<vmem>>, %arg5: memref<1x128xf32, #tpu.memory_space<vmem>>, %arg6: memref<1920x128xbf16, #tpu.memory_space<vmem>>, %arg7: memref<1x128xf32, #tpu.memory_space<vmem>>, %arg8: memref<1x128xf32, #tpu.memory_space<vmem>>, %arg9: memref<128x128xbf16, #tpu.memory_space<vmem>>, %arg10: memref<1x128xf32, #tpu.memory_space<vmem>>, %arg11: memref<1x16x128xbf16, #tpu.memory_space<vmem>>, %arg12: memref<32x128xbf16, #tpu.memory_space<vmem>>, %arg13: memref<32x1920xbf16, #tpu.memory_space<vmem>>, %arg14: memref<16x1920xbf16, #tpu.memory_space<vmem>>, %arg15: memref<16x128xf32, #tpu.memory_space<vmem>>) attributes {dimension_semantics = [#tpu.dimension_semantics<parallel>, #tpu.dimension_semantics<parallel>], iteration_bounds = array<i64: 2, 1>, scalar_prefetch = 0 : i64, scratch_operands = 4 : i64, tpu.core_type = #tpu.core_type<tc>, window_params = [{transform_indices = @transform_0, window_bounds = array<i64: 1, 1, 48, 128>}, {pipeline_mode = #tpu.pipeline_mode<synchronous>, transform_indices = @transform_1, window_bounds = array<i64: 1920, 256>}, {pipeline_mode = #tpu.pipeline_mode<synchronous>, transform_indices = @transform_2, window_bounds = array<i64: 1, 128>}, {pipeline_mode = #tpu.pipeline_mode<synchronous>, transform_indices = @transform_3, window_bounds = array<i64: 1, 128>}, {pipeline_mode = #tpu.pipeline_mode<synchronous>, transform_indices = @transform_4, window_bounds = array<i64: 1920, 128>}, {pipeline_mode = #tpu.pipeline_mode<synchronous>, transform_indices = @transform_5, window_bounds = array<i64: 1, 128>}, {pipeline_mode = #tpu.pipeline_mode<synchronous>, transform_indices = @transform_6, window_bounds = array<i64: 1, 128>}, {pipeline_mode = #tpu.pipeline_mode<synchronous>, transform_indices = @transform_7, window_bounds = array<i64: 128, 128>}, {pipeline_mode = #tpu.pipeline_mode<synchronous>, transform_indices = @transform_8, window_bounds = array<i64: 1, 128>}, {transform_indices = @transform_9, window_bounds = array<i64: 1, 16, 128>}]} {
    %c16_i32 = arith.constant 16 : i32
    %0 = arith.muli %arg1, %c16_i32 : i32
    %c0 = arith.constant 0 : index
    %c0_0 = arith.constant 0 : index
    %c0_1 = arith.constant 0 : index
    %c0_2 = arith.constant 0 : index
    %1 = vector.load %arg2[%c0, %c0_0, %c0_1, %c0_2] : memref<1x1x48x128xbf16, #tpu.memory_space<vmem>>, vector<1x1x32x128xbf16>
    %2 = vector.shape_cast %1 : vector<1x1x32x128xbf16> to vector<32x128xbf16>
    %c0_3 = arith.constant 0 : index
    %c0_4 = arith.constant 0 : index
    %3 = vector.load %arg13[%c0_3, %c0_4] : memref<32x1920xbf16, #tpu.memory_space<vmem>>, vector<32x128xbf16>
    tpu.vector_store %arg13[%c0_3, %c0_4], %2 {strides = array<i32>} : memref<32x1920xbf16, #tpu.memory_space<vmem>>, vector<32x128xbf16>,
    %c0_5 = arith.constant 0 : index
    %c0_6 = arith.constant 0 : index
    %c1 = arith.constant 1 : index
    %c0_7 = arith.constant 0 : index
    %4 = vector.load %arg2[%c0_5, %c0_6, %c1, %c0_7] : memref<1x1x48x128xbf16, #tpu.memory_space<vmem>>, vector<1x1x32x128xbf16>
    %5 = vector.shape_cast %4 : vector<1x1x32x128xbf16> to vector<32x128xbf16>
    %c0_8 = arith.constant 0 : index
    %c128 = arith.constant 128 : index
    %6 = vector.load %arg13[%c0_8, %c128] : memref<32x1920xbf16, #tpu.memory_space<vmem>>, vector<32x128xbf16>
    tpu.vector_store %arg13[%c0_8, %c128], %5 {strides = array<i32>} : memref<32x1920xbf16, #tpu.memory_space<vmem>>, vector<32x128xbf16>,
    %c0_9 = arith.constant 0 : index
    %c0_10 = arith.constant 0 : index
    %c2 = arith.constant 2 : index
    %c0_11 = arith.constant 0 : index
    %7 = vector.load %arg2[%c0_9, %c0_10, %c2, %c0_11] : memref<1x1x48x128xbf16, #tpu.memory_space<vmem>>, vector<1x1x32x128xbf16>
    %8 = vector.shape_cast %7 : vector<1x1x32x128xbf16> to vector<32x128xbf16>
    %c0_12 = arith.constant 0 : index
    %c256 = arith.constant 256 : index
    %9 = vector.load %arg13[%c0_12, %c256] : memref<32x1920xbf16, #tpu.memory_space<vmem>>, vector<32x128xbf16>
    tpu.vector_store %arg13[%c0_12, %c256], %8 {strides = array<i32>} : memref<32x1920xbf16, #tpu.memory_space<vmem>>, vector<32x128xbf16>,
    %c0_13 = arith.constant 0 : index
    %c0_14 = arith.constant 0 : index
    %c3 = arith.constant 3 : index
    %c0_15 = arith.constant 0 : index
    %10 = vector.load %arg2[%c0_13, %c0_14, %c3, %c0_15] : memref<1x1x48x128xbf16, #tpu.memory_space<vmem>>, vector<1x1x32x128xbf16>
    %11 = vector.shape_cast %10 : vector<1x1x32x128xbf16> to vector<32x128xbf16>
    %c0_16 = arith.constant 0 : index
    %c384 = arith.constant 384 : index
    %12 = vector.load %arg13[%c0_16, %c384] : memref<32x1920xbf16, #tpu.memory_space<vmem>>, vector<32x128xbf16>
    tpu.vector_store %arg13[%c0_16, %c384], %11 {strides = array<i32>} : memref<32x1920xbf16, #tpu.memory_space<vmem>>, vector<32x128xbf16>,
    %c0_17 = arith.constant 0 : index
    %c0_18 = arith.constant 0 : index
    %c4 = arith.constant 4 : index
    %c0_19 = arith.constant 0 : index
    %13 = vector.load %arg2[%c0_17, %c0_18, %c4, %c0_19] : memref<1x1x48x128xbf16, #tpu.memory_space<vmem>>, vector<1x1x32x128xbf16>
    %14 = vector.shape_cast %13 : vector<1x1x32x128xbf16> to vector<32x128xbf16>
    %c0_20 = arith.constant 0 : index
    %c512 = arith.constant 512 : index
    %15 = vector.load %arg13[%c0_20, %c512] : memref<32x1920xbf16, #tpu.memory_space<vmem>>, vector<32x128xbf16>
    tpu.vector_store %arg13[%c0_20, %c512], %14 {strides = array<i32>} : memref<32x1920xbf16, #tpu.memory_space<vmem>>, vector<32x128xbf16>,
    %c0_21 = arith.constant 0 : index
    %c0_22 = arith.constant 0 : index
    %c5 = arith.constant 5 : index
    %c0_23 = arith.constant 0 : index
    %16 = vector.load %arg2[%c0_21, %c0_22, %c5, %c0_23] : memref<1x1x48x128xbf16, #tpu.memory_space<vmem>>, vector<1x1x32x128xbf16>
    %17 = vector.shape_cast %16 : vector<1x1x32x128xbf16> to vector<32x128xbf16>
    %c0_24 = arith.constant 0 : index
    %c640 = arith.constant 640 : index
    %18 = vector.load %arg13[%c0_24, %c640] : memref<32x1920xbf16, #tpu.memory_space<vmem>>, vector<32x128xbf16>
    tpu.vector_store %arg13[%c0_24, %c640], %17 {strides = array<i32>} : memref<32x1920xbf16, #tpu.memory_space<vmem>>, vector<32x128xbf16>,
    %c0_25 = arith.constant 0 : index
    %c0_26 = arith.constant 0 : index
    %c6 = arith.constant 6 : index
    %c0_27 = arith.constant 0 : index
    %19 = vector.load %arg2[%c0_25, %c0_26, %c6, %c0_27] : memref<1x1x48x128xbf16, #tpu.memory_space<vmem>>, vector<1x1x32x128xbf16>
    %20 = vector.shape_cast %19 : vector<1x1x32x128xbf16> to vector<32x128xbf16>
    %c0_28 = arith.constant 0 : index
    %c768 = arith.constant 768 : index
    %21 = vector.load %arg13[%c0_28, %c768] : memref<32x1920xbf16, #tpu.memory_space<vmem>>, vector<32x128xbf16>
    tpu.vector_store %arg13[%c0_28, %c768], %20 {strides = array<i32>} : memref<32x1920xbf16, #tpu.memory_space<vmem>>, vector<32x128xbf16>,
    %c0_29 = arith.constant 0 : index
    %c0_30 = arith.constant 0 : index
    %c7 = arith.constant 7 : index
    %c0_31 = arith.constant 0 : index
    %22 = vector.load %arg2[%c0_29, %c0_30, %c7, %c0_31] : memref<1x1x48x128xbf16, #tpu.memory_space<vmem>>, vector<1x1x32x128xbf16>
    %23 = vector.shape_cast %22 : vector<1x1x32x128xbf16> to vector<32x128xbf16>
    %c0_32 = arith.constant 0 : index
    %c896 = arith.constant 896 : index
    %24 = vector.load %arg13[%c0_32, %c896] : memref<32x1920xbf16, #tpu.memory_space<vmem>>, vector<32x128xbf16>
    tpu.vector_store %arg13[%c0_32, %c896], %23 {strides = array<i32>} : memref<32x1920xbf16, #tpu.memory_space<vmem>>, vector<32x128xbf16>,
    %c0_33 = arith.constant 0 : index
    %c0_34 = arith.constant 0 : index
    %c8 = arith.constant 8 : index
    %c0_35 = arith.constant 0 : index
    %25 = vector.load %arg2[%c0_33, %c0_34, %c8, %c0_35] : memref<1x1x48x128xbf16, #tpu.memory_space<vmem>>, vector<1x1x32x128xbf16>
    %26 = vector.shape_cast %25 : vector<1x1x32x128xbf16> to vector<32x128xbf16>
    %c0_36 = arith.constant 0 : index
    %c1024 = arith.constant 1024 : index
    %27 = vector.load %arg13[%c0_36, %c1024] : memref<32x1920xbf16, #tpu.memory_space<vmem>>, vector<32x128xbf16>
    tpu.vector_store %arg13[%c0_36, %c1024], %26 {strides = array<i32>} : memref<32x1920xbf16, #tpu.memory_space<vmem>>, vector<32x128xbf16>,
    %c0_37 = arith.constant 0 : index
    %c0_38 = arith.constant 0 : index
    %c9 = arith.constant 9 : index
    %c0_39 = arith.constant 0 : index
    %28 = vector.load %arg2[%c0_37, %c0_38, %c9, %c0_39] : memref<1x1x48x128xbf16, #tpu.memory_space<vmem>>, vector<1x1x32x128xbf16>
    %29 = vector.shape_cast %28 : vector<1x1x32x128xbf16> to vector<32x128xbf16>
    %c0_40 = arith.constant 0 : index
    %c1152 = arith.constant 1152 : index
    %30 = vector.load %arg13[%c0_40, %c1152] : memref<32x1920xbf16, #tpu.memory_space<vmem>>, vector<32x128xbf16>
    tpu.vector_store %arg13[%c0_40, %c1152], %29 {strides = array<i32>} : memref<32x1920xbf16, #tpu.memory_space<vmem>>, vector<32x128xbf16>,
    %c0_41 = arith.constant 0 : index
    %c0_42 = arith.constant 0 : index
    %c10 = arith.constant 10 : index
    %c0_43 = arith.constant 0 : index
    %31 = vector.load %arg2[%c0_41, %c0_42, %c10, %c0_43] : memref<1x1x48x128xbf16, #tpu.memory_space<vmem>>, vector<1x1x32x128xbf16>
    %32 = vector.shape_cast %31 : vector<1x1x32x128xbf16> to vector<32x128xbf16>
    %c0_44 = arith.constant 0 : index
    %c1280 = arith.constant 1280 : index
    %33 = vector.load %arg13[%c0_44, %c1280] : memref<32x1920xbf16, #tpu.memory_space<vmem>>, vector<32x128xbf16>
    tpu.vector_store %arg13[%c0_44, %c1280], %32 {strides = array<i32>} : memref<32x1920xbf16, #tpu.memory_space<vmem>>, vector<32x128xbf16>,
    %c0_45 = arith.constant 0 : index
    %c0_46 = arith.constant 0 : index
    %c11 = arith.constant 11 : index
    %c0_47 = arith.constant 0 : index
    %34 = vector.load %arg2[%c0_45, %c0_46, %c11, %c0_47] : memref<1x1x48x128xbf16, #tpu.memory_space<vmem>>, vector<1x1x32x128xbf16>
    %35 = vector.shape_cast %34 : vector<1x1x32x128xbf16> to vector<32x128xbf16>
    %c0_48 = arith.constant 0 : index
    %c1408 = arith.constant 1408 : index
    %36 = vector.load %arg13[%c0_48, %c1408] : memref<32x1920xbf16, #tpu.memory_space<vmem>>, vector<32x128xbf16>
    tpu.vector_store %arg13[%c0_48, %c1408], %35 {strides = array<i32>} : memref<32x1920xbf16, #tpu.memory_space<vmem>>, vector<32x128xbf16>,
    %c0_49 = arith.constant 0 : index
    %c0_50 = arith.constant 0 : index
    %c12 = arith.constant 12 : index
    %c0_51 = arith.constant 0 : index
    %37 = vector.load %arg2[%c0_49, %c0_50, %c12, %c0_51] : memref<1x1x48x128xbf16, #tpu.memory_space<vmem>>, vector<1x1x32x128xbf16>
    %38 = vector.shape_cast %37 : vector<1x1x32x128xbf16> to vector<32x128xbf16>
    %c0_52 = arith.constant 0 : index
    %c1536 = arith.constant 1536 : index
    %39 = vector.load %arg13[%c0_52, %c1536] : memref<32x1920xbf16, #tpu.memory_space<vmem>>, vector<32x128xbf16>
    tpu.vector_store %arg13[%c0_52, %c1536], %38 {strides = array<i32>} : memref<32x1920xbf16, #tpu.memory_space<vmem>>, vector<32x128xbf16>,
    %c0_53 = arith.constant 0 : index
    %c0_54 = arith.constant 0 : index
    %c13 = arith.constant 13 : index
    %c0_55 = arith.constant 0 : index
    %40 = vector.load %arg2[%c0_53, %c0_54, %c13, %c0_55] : memref<1x1x48x128xbf16, #tpu.memory_space<vmem>>, vector<1x1x32x128xbf16>
    %41 = vector.shape_cast %40 : vector<1x1x32x128xbf16> to vector<32x128xbf16>
    %c0_56 = arith.constant 0 : index
    %c1664 = arith.constant 1664 : index
    %42 = vector.load %arg13[%c0_56, %c1664] : memref<32x1920xbf16, #tpu.memory_space<vmem>>, vector<32x128xbf16>
    tpu.vector_store %arg13[%c0_56, %c1664], %41 {strides = array<i32>} : memref<32x1920xbf16, #tpu.memory_space<vmem>>, vector<32x128xbf16>,
    %c0_57 = arith.constant 0 : index
    %c0_58 = arith.constant 0 : index
    %c14 = arith.constant 14 : index
    %c0_59 = arith.constant 0 : index
    %43 = vector.load %arg2[%c0_57, %c0_58, %c14, %c0_59] : memref<1x1x48x128xbf16, #tpu.memory_space<vmem>>, vector<1x1x32x128xbf16>
    %44 = vector.shape_cast %43 : vector<1x1x32x128xbf16> to vector<32x128xbf16>
    %c0_60 = arith.constant 0 : index
    %c1792 = arith.constant 1792 : index
    %45 = vector.load %arg13[%c0_60, %c1792] : memref<32x1920xbf16, #tpu.memory_space<vmem>>, vector<32x128xbf16>
    tpu.vector_store %arg13[%c0_60, %c1792], %44 {strides = array<i32>} : memref<32x1920xbf16, #tpu.memory_space<vmem>>, vector<32x128xbf16>,
    %c0_61 = arith.constant 0 : index
    %c0_62 = arith.constant 0 : index
    %46 = vector.load %arg13[%c0_61, %c0_62] : memref<32x1920xbf16, #tpu.memory_space<vmem>>, vector<32x1920xbf16>
    %c0_63 = arith.constant 0 : index
    %c0_64 = arith.constant 0 : index
    %47 = vector.load %arg3[%c0_63, %c0_64] : memref<1920x256xbf16, #tpu.memory_space<vmem>>, vector<1920x256xbf16>
    %cst = arith.constant dense<0.000000e+00> : vector<32x256xf32>
    %48 = tpu.matmul %46, %47, %cst {dimension_numbers = #tpu.dot_dimension_numbers<[1], [0], [0], [1], [0, 0, 1, 1], [], []>} : vector<32x1920xbf16>, vector<1920x256xbf16>, vector<32x256xf32> -> vector<32x256xf32>
    %49 = vector.extract_strided_slice %48 {offsets = [0, 0], sizes = [32, 128], strides = [1, 1]} : vector<32x256xf32> to vector<32x128xf32>
    %50 = vector.extract_strided_slice %48 {offsets = [7, 128], sizes = [16, 128], strides = [1, 1]} : vector<32x256xf32> to vector<16x128xf32>
    %c0_65 = arith.constant 0 : index
    %c0_66 = arith.constant 0 : index
    %51 = vector.load %arg10[%c0_65, %c0_66] : memref<1x128xf32, #tpu.memory_space<vmem>>, vector<1x128xf32>
    %52 = vector.broadcast %51 : vector<1x128xf32> to vector<16x128xf32>
    %53 = arith.addf %50, %52 : vector<16x128xf32>
    %c0_67 = arith.constant 0 : index
    %c0_68 = arith.constant 0 : index
    %54 = vector.load %arg15[%c0_67, %c0_68] : memref<16x128xf32, #tpu.memory_space<vmem>>, vector<16x128xf32>
    tpu.vector_store %arg15[%c0_67, %c0_68], %53 {strides = array<i32>} : memref<16x128xf32, #tpu.memory_space<vmem>>, vector<16x128xf32>,
    %c0_69 = arith.constant 0 : index
    %c0_70 = arith.constant 0 : index
    %55 = vector.load %arg4[%c0_69, %c0_70] : memref<1x128xf32, #tpu.memory_space<vmem>>, vector<1x128xf32>
    %56 = vector.broadcast %55 : vector<1x128xf32> to vector<32x128xf32>
    %57 = arith.mulf %49, %56 : vector<32x128xf32>
    %c0_71 = arith.constant 0 : index
    %c0_72 = arith.constant 0 : index
    %58 = vector.load %arg5[%c0_71, %c0_72] : memref<1x128xf32, #tpu.memory_space<vmem>>, vector<1x128xf32>
    %59 = vector.broadcast %58 : vector<1x128xf32> to vector<32x128xf32>
    %60 = arith.addf %57, %59 : vector<32x128xf32>
    %cst_73 = arith.constant 1.000000e-01 : f32
    %61 = vector.broadcast %cst_73 : f32 to vector<32x128xf32>
    %62 = arith.mulf %61, %60 : vector<32x128xf32>
    %63 = arith.maximumf %60, %62 : vector<32x128xf32>
    %c7_i32 = arith.constant 7 : i32
    %64 = arith.subi %0, %c7_i32 : i32
    %65 = tpu.iota {dimensions = array<i32: 0>} : vector<32x1xi32>
    %66 = vector.broadcast %64 : i32 to vector<32x1xi32>
    %67 = arith.addi %66, %65 : vector<32x1xi32>
    %c0_i32 = arith.constant 0 : i32
    %68 = vector.broadcast %c0_i32 : i32 to vector<32x1xi32>
    %69 = arith.cmpi sge, %67, %68 : vector<32x1xi32>
    %c16_i32_74 = arith.constant 16 : i32
    %70 = vector.broadcast %c16_i32_74 : i32 to vector<32x1xi32>
    %71 = arith.cmpi slt, %67, %70 : vector<32x1xi32>
    %72 = arith.andi %69, %71 : vector<32x1xi1>
    %cst_75 = arith.constant 0.000000e+00 : f32
    %73 = vector.shape_cast %72 : vector<32x1xi1> to vector<32x1xi1>
    %74 = vector.broadcast %73 : vector<32x1xi1> to vector<32x128xi1>
    %75 = vector.broadcast %cst_75 : f32 to vector<32x128xf32>
    %76 = arith.select %74, %63, %75 : vector<32x128xi1>, vector<32x128xf32>
    %77 = arith.truncf %76 : vector<32x128xf32> to vector<32x128xbf16>
    %c0_76 = arith.constant 0 : index
    %c0_77 = arith.constant 0 : index
    %78 = vector.load %arg12[%c0_76, %c0_77] : memref<32x128xbf16, #tpu.memory_space<vmem>>, vector<32x128xbf16>
    tpu.vector_store %arg12[%c0_76, %c0_77], %77 {strides = array<i32>} : memref<32x128xbf16, #tpu.memory_space<vmem>>, vector<32x128xbf16>,
    %c0_78 = arith.constant 0 : index
    %c0_79 = arith.constant 0 : index
    %79 = vector.load %arg12[%c0_78, %c0_79] : memref<32x128xbf16, #tpu.memory_space<vmem>>, vector<16x128xbf16>
    %c0_80 = arith.constant 0 : index
    %c0_81 = arith.constant 0 : index
    %80 = vector.load %arg14[%c0_80, %c0_81] : memref<16x1920xbf16, #tpu.memory_space<vmem>>, vector<16x128xbf16>
    tpu.vector_store %arg14[%c0_80, %c0_81], %79 {strides = array<i32>} : memref<16x1920xbf16, #tpu.memory_space<vmem>>, vector<16x128xbf16>,
    %c1_82 = arith.constant 1 : index
    %c0_83 = arith.constant 0 : index
    %81 = vector.load %arg12[%c1_82, %c0_83] : memref<32x128xbf16, #tpu.memory_space<vmem>>, vector<16x128xbf16>
    %c0_84 = arith.constant 0 : index
    %c128_85 = arith.constant 128 : index
    %82 = vector.load %arg14[%c0_84, %c128_85] : memref<16x1920xbf16, #tpu.memory_space<vmem>>, vector<16x128xbf16>
    tpu.vector_store %arg14[%c0_84, %c128_85], %81 {strides = array<i32>} : memref<16x1920xbf16, #tpu.memory_space<vmem>>, vector<16x128xbf16>,
    %c2_86 = arith.constant 2 : index
    %c0_87 = arith.constant 0 : index
    %83 = vector.load %arg12[%c2_86, %c0_87] : memref<32x128xbf16, #tpu.memory_space<vmem>>, vector<16x128xbf16>
    %c0_88 = arith.constant 0 : index
    %c256_89 = arith.constant 256 : index
    %84 = vector.load %arg14[%c0_88, %c256_89] : memref<16x1920xbf16, #tpu.memory_space<vmem>>, vector<16x128xbf16>
    tpu.vector_store %arg14[%c0_88, %c256_89], %83 {strides = array<i32>} : memref<16x1920xbf16, #tpu.memory_space<vmem>>, vector<16x128xbf16>,
    %c3_90 = arith.constant 3 : index
    %c0_91 = arith.constant 0 : index
    %85 = vector.load %arg12[%c3_90, %c0_91] : memref<32x128xbf16, #tpu.memory_space<vmem>>, vector<16x128xbf16>
    %c0_92 = arith.constant 0 : index
    %c384_93 = arith.constant 384 : index
    %86 = vector.load %arg14[%c0_92, %c384_93] : memref<16x1920xbf16, #tpu.memory_space<vmem>>, vector<16x128xbf16>
    tpu.vector_store %arg14[%c0_92, %c384_93], %85 {strides = array<i32>} : memref<16x1920xbf16, #tpu.memory_space<vmem>>, vector<16x128xbf16>,
    %c4_94 = arith.constant 4 : index
    %c0_95 = arith.constant 0 : index
    %87 = vector.load %arg12[%c4_94, %c0_95] : memref<32x128xbf16, #tpu.memory_space<vmem>>, vector<16x128xbf16>
    %c0_96 = arith.constant 0 : index
    %c512_97 = arith.constant 512 : index
    %88 = vector.load %arg14[%c0_96, %c512_97] : memref<16x1920xbf16, #tpu.memory_space<vmem>>, vector<16x128xbf16>
    tpu.vector_store %arg14[%c0_96, %c512_97], %87 {strides = array<i32>} : memref<16x1920xbf16, #tpu.memory_space<vmem>>, vector<16x128xbf16>,
    %c5_98 = arith.constant 5 : index
    %c0_99 = arith.constant 0 : index
    %89 = vector.load %arg12[%c5_98, %c0_99] : memref<32x128xbf16, #tpu.memory_space<vmem>>, vector<16x128xbf16>
    %c0_100 = arith.constant 0 : index
    %c640_101 = arith.constant 640 : index
    %90 = vector.load %arg14[%c0_100, %c640_101] : memref<16x1920xbf16, #tpu.memory_space<vmem>>, vector<16x128xbf16>
    tpu.vector_store %arg14[%c0_100, %c640_101], %89 {strides = array<i32>} : memref<16x1920xbf16, #tpu.memory_space<vmem>>, vector<16x128xbf16>,
    %c6_102 = arith.constant 6 : index
    %c0_103 = arith.constant 0 : index
    %91 = vector.load %arg12[%c6_102, %c0_103] : memref<32x128xbf16, #tpu.memory_space<vmem>>, vector<16x128xbf16>
    %c0_104 = arith.constant 0 : index
    %c768_105 = arith.constant 768 : index
    %92 = vector.load %arg14[%c0_104, %c768_105] : memref<16x1920xbf16, #tpu.memory_space<vmem>>, vector<16x128xbf16>
    tpu.vector_store %arg14[%c0_104, %c768_105], %91 {strides = array<i32>} : memref<16x1920xbf16, #tpu.memory_space<vmem>>, vector<16x128xbf16>,
    %c7_106 = arith.constant 7 : index
    %c0_107 = arith.constant 0 : index
    %93 = vector.load %arg12[%c7_106, %c0_107] : memref<32x128xbf16, #tpu.memory_space<vmem>>, vector<16x128xbf16>
    %c0_108 = arith.constant 0 : index
    %c896_109 = arith.constant 896 : index
    %94 = vector.load %arg14[%c0_108, %c896_109] : memref<16x1920xbf16, #tpu.memory_space<vmem>>, vector<16x128xbf16>
    tpu.vector_store %arg14[%c0_108, %c896_109], %93 {strides = array<i32>} : memref<16x1920xbf16, #tpu.memory_space<vmem>>, vector<16x128xbf16>,
    %c8_110 = arith.constant 8 : index
    %c0_111 = arith.constant 0 : index
    %95 = vector.load %arg12[%c8_110, %c0_111] : memref<32x128xbf16, #tpu.memory_space<vmem>>, vector<16x128xbf16>
    %c0_112 = arith.constant 0 : index
    %c1024_113 = arith.constant 1024 : index
    %96 = vector.load %arg14[%c0_112, %c1024_113] : memref<16x1920xbf16, #tpu.memory_space<vmem>>, vector<16x128xbf16>
    tpu.vector_store %arg14[%c0_112, %c1024_113], %95 {strides = array<i32>} : memref<16x1920xbf16, #tpu.memory_space<vmem>>, vector<16x128xbf16>,
    %c9_114 = arith.constant 9 : index
    %c0_115 = arith.constant 0 : index
    %97 = vector.load %arg12[%c9_114, %c0_115] : memref<32x128xbf16, #tpu.memory_space<vmem>>, vector<16x128xbf16>
    %c0_116 = arith.constant 0 : index
    %c1152_117 = arith.constant 1152 : index
    %98 = vector.load %arg14[%c0_116, %c1152_117] : memref<16x1920xbf16, #tpu.memory_space<vmem>>, vector<16x128xbf16>
    tpu.vector_store %arg14[%c0_116, %c1152_117], %97 {strides = array<i32>} : memref<16x1920xbf16, #tpu.memory_space<vmem>>, vector<16x128xbf16>,
    %c10_118 = arith.constant 10 : index
    %c0_119 = arith.constant 0 : index
    %99 = vector.load %arg12[%c10_118, %c0_119] : memref<32x128xbf16, #tpu.memory_space<vmem>>, vector<16x128xbf16>
    %c0_120 = arith.constant 0 : index
    %c1280_121 = arith.constant 1280 : index
    %100 = vector.load %arg14[%c0_120, %c1280_121] : memref<16x1920xbf16, #tpu.memory_space<vmem>>, vector<16x128xbf16>
    tpu.vector_store %arg14[%c0_120, %c1280_121], %99 {strides = array<i32>} : memref<16x1920xbf16, #tpu.memory_space<vmem>>, vector<16x128xbf16>,
    %c11_122 = arith.constant 11 : index
    %c0_123 = arith.constant 0 : index
    %101 = vector.load %arg12[%c11_122, %c0_123] : memref<32x128xbf16, #tpu.memory_space<vmem>>, vector<16x128xbf16>
    %c0_124 = arith.constant 0 : index
    %c1408_125 = arith.constant 1408 : index
    %102 = vector.load %arg14[%c0_124, %c1408_125] : memref<16x1920xbf16, #tpu.memory_space<vmem>>, vector<16x128xbf16>
    tpu.vector_store %arg14[%c0_124, %c1408_125], %101 {strides = array<i32>} : memref<16x1920xbf16, #tpu.memory_space<vmem>>, vector<16x128xbf16>,
    %c12_126 = arith.constant 12 : index
    %c0_127 = arith.constant 0 : index
    %103 = vector.load %arg12[%c12_126, %c0_127] : memref<32x128xbf16, #tpu.memory_space<vmem>>, vector<16x128xbf16>
    %c0_128 = arith.constant 0 : index
    %c1536_129 = arith.constant 1536 : index
    %104 = vector.load %arg14[%c0_128, %c1536_129] : memref<16x1920xbf16, #tpu.memory_space<vmem>>, vector<16x128xbf16>
    tpu.vector_store %arg14[%c0_128, %c1536_129], %103 {strides = array<i32>} : memref<16x1920xbf16, #tpu.memory_space<vmem>>, vector<16x128xbf16>,
    %c13_130 = arith.constant 13 : index
    %c0_131 = arith.constant 0 : index
    %105 = vector.load %arg12[%c13_130, %c0_131] : memref<32x128xbf16, #tpu.memory_space<vmem>>, vector<16x128xbf16>
    %c0_132 = arith.constant 0 : index
    %c1664_133 = arith.constant 1664 : index
    %106 = vector.load %arg14[%c0_132, %c1664_133] : memref<16x1920xbf16, #tpu.memory_space<vmem>>, vector<16x128xbf16>
    tpu.vector_store %arg14[%c0_132, %c1664_133], %105 {strides = array<i32>} : memref<16x1920xbf16, #tpu.memory_space<vmem>>, vector<16x128xbf16>,
    %c14_134 = arith.constant 14 : index
    %c0_135 = arith.constant 0 : index
    %107 = vector.load %arg12[%c14_134, %c0_135] : memref<32x128xbf16, #tpu.memory_space<vmem>>, vector<16x128xbf16>
    %c0_136 = arith.constant 0 : index
    %c1792_137 = arith.constant 1792 : index
    %108 = vector.load %arg14[%c0_136, %c1792_137] : memref<16x1920xbf16, #tpu.memory_space<vmem>>, vector<16x128xbf16>
    tpu.vector_store %arg14[%c0_136, %c1792_137], %107 {strides = array<i32>} : memref<16x1920xbf16, #tpu.memory_space<vmem>>, vector<16x128xbf16>,
    %c0_138 = arith.constant 0 : index
    %c0_139 = arith.constant 0 : index
    %109 = vector.load %arg14[%c0_138, %c0_139] : memref<16x1920xbf16, #tpu.memory_space<vmem>>, vector<16x1920xbf16>
    %c0_140 = arith.constant 0 : index
    %c0_141 = arith.constant 0 : index
    %110 = vector.load %arg6[%c0_140, %c0_141] : memref<1920x128xbf16, #tpu.memory_space<vmem>>, vector<1920x128xbf16>
    %cst_142 = arith.constant dense<0.000000e+00> : vector<16x128xf32>
    %111 = tpu.matmul %109, %110, %cst_142 {dimension_numbers = #tpu.dot_dimension_numbers<[1], [0], [0], [1], [0, 0, 1, 1], [], []>} : vector<16x1920xbf16>, vector<1920x128xbf16>, vector<16x128xf32> -> vector<16x128xf32>
    %c0_143 = arith.constant 0 : index
    %c0_144 = arith.constant 0 : index
    %112 = vector.load %arg15[%c0_143, %c0_144] : memref<16x128xf32, #tpu.memory_space<vmem>>, vector<16x128xf32>
    %c0_145 = arith.constant 0 : index
    %c0_146 = arith.constant 0 : index
    %113 = vector.load %arg7[%c0_145, %c0_146] : memref<1x128xf32, #tpu.memory_space<vmem>>, vector<1x128xf32>
    %114 = vector.broadcast %113 : vector<1x128xf32> to vector<16x128xf32>
    %115 = arith.mulf %111, %114 : vector<16x128xf32>
    %c0_147 = arith.constant 0 : index
    %c0_148 = arith.constant 0 : index
    %116 = vector.load %arg8[%c0_147, %c0_148] : memref<1x128xf32, #tpu.memory_space<vmem>>, vector<1x128xf32>
    %117 = vector.broadcast %116 : vector<1x128xf32> to vector<16x128xf32>
    %118 = arith.addf %115, %117 : vector<16x128xf32>
    %119 = arith.addf %118, %112 : vector<16x128xf32>
    %cst_149 = arith.constant 1.000000e-01 : f32
    %120 = vector.broadcast %cst_149 : f32 to vector<16x128xf32>
    %121 = arith.mulf %120, %119 : vector<16x128xf32>
    %122 = arith.maximumf %119, %121 : vector<16x128xf32>
    %123 = arith.truncf %122 : vector<16x128xf32> to vector<16x128xbf16>
    %c0_150 = arith.constant 0 : index
    %c0_151 = arith.constant 0 : index
    %c0_152 = arith.constant 0 : index
    %124 = vector.load %arg11[%c0_150, %c0_151, %c0_152] : memref<1x16x128xbf16, #tpu.memory_space<vmem>>, vector<1x16x128xbf16>
    %125 = vector.shape_cast %124 : vector<1x16x128xbf16> to vector<16x128xbf16>
    %126 = vector.shape_cast %123 : vector<16x128xbf16> to vector<1x16x128xbf16>
    tpu.vector_store %arg11[%c0_150, %c0_151, %c0_152], %126 {strides = array<i32>} : memref<1x16x128xbf16, #tpu.memory_space<vmem>>, vector<1x16x128xbf16>,
    return
  }
  func.func @transform_0(%arg0: i32, %arg1: i32) -> (i32, i32, i32, i32) {
    %c0_i32 = arith.constant 0 : i32
    %c0_i32_0 = arith.constant 0 : i32
    %c0_i32_1 = arith.constant 0 : i32
    return %arg0, %arg1, %c0_i32, %c0_i32_0 : i32, i32, i32, i32
  }
  func.func @transform_1(%arg0: i32, %arg1: i32) -> (i32, i32) {
    %c0_i32 = arith.constant 0 : i32
    %c0_i32_0 = arith.constant 0 : i32
    %c0_i32_1 = arith.constant 0 : i32
    return %c0_i32, %c0_i32_0 : i32, i32
  }
  func.func @transform_2(%arg0: i32, %arg1: i32) -> (i32, i32) {
    %c0_i32 = arith.constant 0 : i32
    %c0_i32_0 = arith.constant 0 : i32
    %c0_i32_1 = arith.constant 0 : i32
    return %c0_i32, %c0_i32_0 : i32, i32
  }
  func.func @transform_3(%arg0: i32, %arg1: i32) -> (i32, i32) {
    %c0_i32 = arith.constant 0 : i32
    %c0_i32_0 = arith.constant 0 : i32
    %c0_i32_1 = arith.constant 0 : i32
    return %c0_i32, %c0_i32_0 : i32, i32
  }
  func.func @transform_4(%arg0: i32, %arg1: i32) -> (i32, i32) {
    %c0_i32 = arith.constant 0 : i32
    %c0_i32_0 = arith.constant 0 : i32
    %c0_i32_1 = arith.constant 0 : i32
    return %c0_i32, %c0_i32_0 : i32, i32
  }
  func.func @transform_5(%arg0: i32, %arg1: i32) -> (i32, i32) {
    %c0_i32 = arith.constant 0 : i32
    %c0_i32_0 = arith.constant 0 : i32
    %c0_i32_1 = arith.constant 0 : i32
    return %c0_i32, %c0_i32_0 : i32, i32
  }
  func.func @transform_6(%arg0: i32, %arg1: i32) -> (i32, i32) {
    %c0_i32 = arith.constant 0 : i32
    %c0_i32_0 = arith.constant 0 : i32
    %c0_i32_1 = arith.constant 0 : i32
    return %c0_i32, %c0_i32_0 : i32, i32
  }
  func.func @transform_7(%arg0: i32, %arg1: i32) -> (i32, i32) {
    %c0_i32 = arith.constant 0 : i32
    %c0_i32_0 = arith.constant 0 : i32
    %c0_i32_1 = arith.constant 0 : i32
    return %c0_i32, %c0_i32_0 : i32, i32
  }
  func.func @transform_8(%arg0: i32, %arg1: i32) -> (i32, i32) {
    %c0_i32 = arith.constant 0 : i32
    %c0_i32_0 = arith.constant 0 : i32
    %c0_i32_1 = arith.constant 0 : i32
    return %c0_i32, %c0_i32_0 : i32, i32
  }
  func.func @transform_9(%arg0: i32, %arg1: i32) -> (i32, i32, i32) {
    %c0_i32 = arith.constant 0 : i32
    %c0_i32_0 = arith.constant 0 : i32
    return %arg0, %arg1, %c0_i32 : i32, i32, i32
  }
}

</mosaic_0001>

<llo_original>
// kernel: tpu_custom_call.1
$region0: #{tpu_custom_call.1}
  #allocation0 [shape = 'u32[]', space=smem, size = 0x4, offset = 0x4, fixed_abs, tag = 'smem constant byte address 0x4 - core index']
  #allocation1 [shape = 'u32[144,128]{1,0:T(1,128)}', space=vmem, size = 0x12000, scoped, tag = 'internal scratch']
  #allocation2 [shape = 'bf16[32,128]{1,0:T(8,128)(2,1)}', space=vmem, size = 0x2000, scoped, tag = 'scratch operand']
  #allocation3 [shape = 'bf16[32,1920]{1,0:T(8,128)(2,1)}', space=vmem, size = 0x1e000, scoped, tag = 'scratch operand']
  #allocation4 [shape = 'bf16[16,1920]{1,0:T(8,128)(2,1)}', space=vmem, size = 0xf000, scoped, tag = 'scratch operand']
  #allocation5 [shape = 'f32[16,128]{1,0:T(8,128)}', space=vmem, size = 0x2000, scoped, tag = 'scratch operand']
  %s0 = inlined_call_operand.hbm [shape: bf16[2,1,48,128], index: 0, kind: input, shape index: {}]
  %s1 = inlined_call_operand.hbm [shape: bf16[1920,256], index: 1, kind: input, shape index: {}]
  %s2 = inlined_call_operand.vmem [shape: f32[1,128], index: 2, kind: input, shape index: {}]
  %s3 = inlined_call_operand.vmem [shape: f32[1,128], index: 3, kind: input, shape index: {}]
  %s4 = inlined_call_operand.hbm [shape: bf16[1920,128], index: 4, kind: input, shape index: {}]
  %s5 = inlined_call_operand.vmem [shape: f32[1,128], index: 5, kind: input, shape index: {}]
  %s6 = inlined_call_operand.vmem [shape: f32[1,128], index: 6, kind: input, shape index: {}]
  %s7 = inlined_call_operand.hbm [shape: bf16[128,128], index: 7, kind: input, shape index: {}]
  %s8 = inlined_call_operand.vmem [shape: f32[1,128], index: 8, kind: input, shape index: {}]
  %s9 = inlined_call_operand.hbm [shape: bf16[2,16,128], index: 9, kind: output, shape index: {}]
  %s10 = sld [smem:[#allocation0]]
  $region85: #{tpu_custom_call.1} parent=0
    _
  %s12 = ssub.s32 1, %s10
  %s13 = scalar_select 0, %s12, %s10
  $region1: #{tpu_custom_call.1} parent=0
    #allocation6 [shape = 'u8[24576]{0}', space=vmem, size = 0x6000, scoped, tag = 'input window, operand 0']
    #allocation7 [shape = 's32[2]{0}', space=sflag, size = 0x8, scoped, tag = 'scoped memory for tpu_custom_call.1']
    #allocation8 [shape = 's32[2]{0}', space=sflag, size = 0x8, scoped, tag = 'scoped memory for tpu_custom_call.1']
    #allocation9 [shape = 'u8[983040]{0}', space=vmem, size = 0xf0000, scoped, tag = 'input window, operand 1, single buffered']
    #allocation10 [shape = 's32[1]{0}', space=sflag, size = 0x4, scoped, tag = 'scoped memory for tpu_custom_call.1']
    #allocation11 [shape = 'u8[491520]{0}', space=vmem, size = 0x78000, scoped, tag = 'input window, operand 4, single buffered']
    #allocation12 [shape = 'u8[32768]{0}', space=vmem, size = 0x8000, scoped, tag = 'input window, operand 7, single buffered']
    #allocation13 [shape = 's32[1]{0}', space=sflag, size = 0x4, scoped, tag = 'scoped memory for tpu_custom_call.1']
    #allocation14 [shape = 'u8[8192]{0}', space=vmem, size = 0x2000, scoped, tag = 'output window, operand 0']
    %14 = vsyncpa [#allocation7], 0
    %s15 = scalar_lea.sflag [#allocation7], 1
    %16 = vsyncpa %s15, 0
    %17 = vsyncpa [#allocation10], 0
    %18 = vsyncpa [#allocation13], 0
    %19 = vsyncpa [#allocation8], 0
    %s20 = scalar_lea.sflag [#allocation8], 1
    %21 = vsyncpa %s20, 0
    loop: start=0, step=1, limit=4
    $region2: #{tpu_custom_call.1} parent=1 // loop_pre_header
      _
    $region3: #{tpu_custom_call.1} parent=1 // loop_header
      %s23 = sphi 0, %s27
      %p24 = scmp.ge.s32.totalorder %s23, 4
      %s30 = sphi 0, %s42
      %s31 = sphi 0, %s38
      %s32 = sphi 0, %s30
      %s33 = sphi 0, %s31
      %s34 = sphi 0, %s32
      %s35 = sphi 0, %s33
      %s47 = sphi 0, %s49
      %s50 = sphi 0, %s47
      %s51 = sphi 0, %s50
      %s67 = sphi 0, %s51
      %s71 = sphi 0, %s71
      %s73 = sphi 0, %s71
      %s74 = sphi 0, %s73
      %s88 = sphi 0, %s74
      %s92 = sphi 0, %s92
      %s94 = sphi 0, %s92
      %s95 = sphi 0, %s94
      %s109 = sphi 0, %s95
      %s113 = sphi 0, %s113
      %s115 = sphi 0, %s113
      %s116 = sphi 0, %s115
      %s130 = sphi 0, %s116
      %s134 = sphi 0, %s134
      %s136 = sphi 0, %s134
      %s137 = sphi 0, %s136
      %s151 = sphi 0, %s137
      %s155 = sphi 0, %s155
      %s157 = sphi 0, %s155
      %s158 = sphi 0, %s157
      %s172 = sphi 0, %s158
      %s176 = sphi 0, %s176
      %s178 = sphi 0, %s176
      %s179 = sphi 0, %s178
      %s193 = sphi 0, %s179
      %s197 = sphi 0, %s197
      %s199 = sphi 0, %s197
      %s200 = sphi 0, %s199
      %s214 = sphi 0, %s200
      %s218 = sphi 0, %s218
      %s220 = sphi 0, %s218
      %s221 = sphi 0, %s220
      %s235 = sphi 0, %s221
      %s243 = sphi 0, %s245
      %s246 = sphi 0, %s243
      %s247 = sphi 0, %s246
      %s263 = sphi 0, %s247
    $region4: #{tpu_custom_call.1} parent=1 // loop_header_branch
      %26 = sbr.rel (%p24) target = $region8
    $region5: #{tpu_custom_call.1} parent=1 // loop_body
      %s28 = ssub.s32 %s23, 1
      %s29 = ssub.s32 %s23, 2
      %s36 = sadd.s32 1, %s31
      %p37 = scmp.ge.s32.totalorder %s36, 1
      %s38 = scalar_select %p37, 0, %s36
      %s39 = sadd.s32 1, %s30
      %s40 = scalar_select %p37, %s39, %s30
      %p41 = scmp.ge.s32.totalorder %s40, 2
      %s42 = scalar_select %p41, 0, %s40
      %s43 = ssub.s32 %s30, %s42
      %s44 = ssub.s32 %s31, %s38
      %s45 = sor.u32 %s43, %s44
      %p46 = scmp.eq.s32.totalorder %s45, 0
      %s48 = sadd.s32 %s47, 1
      %s49 = scalar_select %p46, %s47, %s48
      %p52 = pneg %p46
      %p53 = scmp.eq.s32.totalorder %s23, 1
      %p54 = por %p52, %p53
      %p55 = scmp.ne.s32.totalorder %s47, %s50
      %p56 = scmp.eq.s32.totalorder %s23, 0
      %p57 = por %p55, %p56
      %p58 = scmp.ne.s32.totalorder %s47, %s50
      %p59 = scmp.eq.s32.totalorder %s28, 1
      %p60 = por %p58, %p59
      %p61 = scmp.ne.s32.totalorder %s50, %s51
      %p62 = scmp.eq.s32.totalorder %s28, 0
      %p63 = por %p61, %p62
      %p64 = scmp.ne.s32.totalorder %s50, %s51
      %p65 = scmp.eq.s32.totalorder %s29, 1
      %p66 = por %p64, %p65
      %p68 = scmp.ne.s32.totalorder %s51, %s67
      %p69 = scmp.eq.s32.totalorder %s29, 0
      %p70 = por %p68, %p69
      %s72 = sadd.s32 %s71, 1
      %p75 = scmp.eq.s32.totalorder %s23, 1
      %p76 = scmp.ne.s32.totalorder %s71, %s73
      %p77 = scmp.eq.s32.totalorder %s23, 0
      %p78 = por %p76, %p77
      %p79 = scmp.ne.s32.totalorder %s71, %s73
      %p80 = scmp.eq.s32.totalorder %s28, 1
      %p81 = por %p79, %p80
      %p82 = scmp.ne.s32.totalorder %s73, %s74
      %p83 = scmp.eq.s32.totalorder %s28, 0
      %p84 = por %p82, %p83
      %p85 = scmp.ne.s32.totalorder %s73, %s74
      %p86 = scmp.eq.s32.totalorder %s29, 1
      %p87 = por %p85, %p86
      %p89 = scmp.ne.s32.totalorder %s74, %s88
      %p90 = scmp.eq.s32.totalorder %s29, 0
      %p91 = por %p89, %p90
      %s93 = sadd.s32 %s92, 1
      %p96 = scmp.eq.s32.totalorder %s23, 1
      %p97 = scmp.ne.s32.totalorder %s92, %s94
      %p98 = scmp.eq.s32.totalorder %s23, 0
      %p99 = por %p97, %p98
      %p100 = scmp.ne.s32.totalorder %s92, %s94
      %p101 = scmp.eq.s32.totalorder %s28, 1
      %p102 = por %p100, %p101
      %p103 = scmp.ne.s32.totalorder %s94, %s95
      %p104 = scmp.eq.s32.totalorder %s28, 0
      %p105 = por %p103, %p104
      %p106 = scmp.ne.s32.totalorder %s94, %s95
      %p107 = scmp.eq.s32.totalorder %s29, 1
      %p108 = por %p106, %p107
      %p110 = scmp.ne.s32.totalorder %s95, %s109
      %p111 = scmp.eq.s32.totalorder %s29, 0
      %p112 = por %p110, %p111
      %s114 = sadd.s32 %s113, 1
      %p117 = scmp.eq.s32.totalorder %s23, 1
      %p118 = scmp.ne.s32.totalorder %s113, %s115
      %p119 = scmp.eq.s32.totalorder %s23, 0
      %p120 = por %p118, %p119
      %p121 = scmp.ne.s32.totalorder %s113, %s115
      %p122 = scmp.eq.s32.totalorder %s28, 1
      %p123 = por %p121, %p122
      %p124 = scmp.ne.s32.totalorder %s115, %s116
      %p125 = scmp.eq.s32.totalorder %s28, 0
      %p126 = por %p124, %p125
      %p127 = scmp.ne.s32.totalorder %s115, %s116
      %p128 = scmp.eq.s32.totalorder %s29, 1
      %p129 = por %p127, %p128
      %p131 = scmp.ne.s32.totalorder %s116, %s130
      %p132 = scmp.eq.s32.totalorder %s29, 0
      %p133 = por %p131, %p132
      %s135 = sadd.s32 %s134, 1
      %p138 = scmp.eq.s32.totalorder %s23, 1
      %p139 = scmp.ne.s32.totalorder %s134, %s136
      %p140 = scmp.eq.s32.totalorder %s23, 0
      %p141 = por %p139, %p140
      %p142 = scmp.ne.s32.totalorder %s134, %s136
      %p143 = scmp.eq.s32.totalorder %s28, 1
      %p144 = por %p142, %p143
      %p145 = scmp.ne.s32.totalorder %s136, %s137
      %p146 = scmp.eq.s32.totalorder %s28, 0
      %p147 = por %p145, %p146
      %p148 = scmp.ne.s32.totalorder %s136, %s137
      %p149 = scmp.eq.s32.totalorder %s29, 1
      %p150 = por %p148, %p149
      %p152 = scmp.ne.s32.totalorder %s137, %s151
      %p153 = scmp.eq.s32.totalorder %s29, 0
      %p154 = por %p152, %p153
      %s156 = sadd.s32 %s155, 1
      %p159 = scmp.eq.s32.totalorder %s23, 1
      %p160 = scmp.ne.s32.totalorder %s155, %s157
      %p161 = scmp.eq.s32.totalorder %s23, 0
      %p162 = por %p160, %p161
      %p163 = scmp.ne.s32.totalorder %s155, %s157
      %p164 = scmp.eq.s32.totalorder %s28, 1
      %p165 = por %p163, %p164
      %p166 = scmp.ne.s32.totalorder %s157, %s158
      %p167 = scmp.eq.s32.totalorder %s28, 0
      %p168 = por %p166, %p167
      %p169 = scmp.ne.s32.totalorder %s157, %s158
      %p170 = scmp.eq.s32.totalorder %s29, 1
      %p171 = por %p169, %p170
      %p173 = scmp.ne.s32.totalorder %s158, %s172
      %p174 = scmp.eq.s32.totalorder %s29, 0
      %p175 = por %p173, %p174
      %s177 = sadd.s32 %s176, 1
      %p180 = scmp.eq.s32.totalorder %s23, 1
      %p181 = scmp.ne.s32.totalorder %s176, %s178
      %p182 = scmp.eq.s32.totalorder %s23, 0
      %p183 = por %p181, %p182
      %p184 = scmp.ne.s32.totalorder %s176, %s178
      %p185 = scmp.eq.s32.totalorder %s28, 1
      %p186 = por %p184, %p185
      %p187 = scmp.ne.s32.totalorder %s178, %s179
      %p188 = scmp.eq.s32.totalorder %s28, 0
      %p189 = por %p187, %p188
      %p190 = scmp.ne.s32.totalorder %s178, %s179
      %p191 = scmp.eq.s32.totalorder %s29, 1
      %p192 = por %p190, %p191
      %p194 = scmp.ne.s32.totalorder %s179, %s193
      %p195 = scmp.eq.s32.totalorder %s29, 0
      %p196 = por %p194, %p195
      %s198 = sadd.s32 %s197, 1
      %p201 = scmp.eq.s32.totalorder %s23, 1
      %p202 = scmp.ne.s32.totalorder %s197, %s199
      %p203 = scmp.eq.s32.totalorder %s23, 0
      %p204 = por %p202, %p203
      %p205 = scmp.ne.s32.totalorder %s197, %s199
      %p206 = scmp.eq.s32.totalorder %s28, 1
      %p207 = por %p205, %p206
      %p208 = scmp.ne.s32.totalorder %s199, %s200
      %p209 = scmp.eq.s32.totalorder %s28, 0
      %p210 = por %p208, %p209
      %p211 = scmp.ne.s32.totalorder %s199, %s200
      %p212 = scmp.eq.s32.totalorder %s29, 1
      %p213 = por %p211, %p212
      %p215 = scmp.ne.s32.totalorder %s200, %s214
      %p216 = scmp.eq.s32.totalorder %s29, 0
      %p217 = por %p215, %p216
      %s219 = sadd.s32 %s218, 1
      %p222 = scmp.eq.s32.totalorder %s23, 1
      %p223 = scmp.ne.s32.totalorder %s218, %s220
      %p224 = scmp.eq.s32.totalorder %s23, 0
      %p225 = por %p223, %p224
      %p226 = scmp.ne.s32.totalorder %s218, %s220
      %p227 = scmp.eq.s32.totalorder %s28, 1
      %p228 = por %p226, %p227
      %p229 = scmp.ne.s32.totalorder %s220, %s221
      %p230 = scmp.eq.s32.totalorder %s28, 0
      %p231 = por %p229, %p230
      %p232 = scmp.ne.s32.totalorder %s220, %s221
      %p233 = scmp.eq.s32.totalorder %s29, 1
      %p234 = por %p232, %p233
      %p236 = scmp.ne.s32.totalorder %s221, %s235
      %p237 = scmp.eq.s32.totalorder %s29, 0
      %p238 = por %p236, %p237
      %s239 = ssub.s32 %s30, %s42
      %s240 = ssub.s32 %s31, %s38
      %s241 = sor.u32 %s239, %s240
      %p242 = scmp.eq.s32.totalorder %s241, 0
      %s244 = sadd.s32 %s243, 1
      %s245 = scalar_select %p242, %s243, %s244
      %p248 = pneg %p242
      %p249 = scmp.eq.s32.totalorder %s23, 1
      %p250 = por %p248, %p249
      %p251 = scmp.ne.s32.totalorder %s243, %s246
      %p252 = scmp.eq.s32.totalorder %s23, 0
      %p253 = por %p251, %p252
      %p254 = scmp.ne.s32.totalorder %s243, %s246
      %p255 = scmp.eq.s32.totalorder %s28, 1
      %p256 = por %p254, %p255
      %p257 = scmp.ne.s32.totalorder %s246, %s247
      %p258 = scmp.eq.s32.totalorder %s28, 0
      %p259 = por %p257, %p258
      %p260 = scmp.ne.s32.totalorder %s246, %s247
      %p261 = scmp.eq.s32.totalorder %s29, 1
      %p262 = por %p260, %p261
      %p264 = scmp.ne.s32.totalorder %s247, %s263
      %p265 = scmp.eq.s32.totalorder %s29, 0
      %p266 = por %p264, %p265
      %p267 = scmp.le.s32.totalorder 1, %s23
      %p268 = scmp.lt.s32.totalorder %s23, 3
      %p269 = pnand %p267, %p268
      %p270 = pneg %p269
      // Predicated region
      $region9: #{tpu_custom_call.1} parent=5 // pred_check
        _
      $region10: #{tpu_custom_call.1} parent=5 // pred_check_branch
        %272 = sbr.rel (%p269) target = $region12
      $region11: #{tpu_custom_call.1} parent=5 // pred_region
        %s273 = ssub.s32 %s23, 1
        // Predicated region
        $region13: #{tpu_custom_call.1} parent=11 // pred_check
          %p274 = pneg %p84
        $region14: #{tpu_custom_call.1} parent=11 // pred_check_branch
          %276 = sbr.rel (%p274) target = $region16
        $region15: #{tpu_custom_call.1} parent=11 // pred_region
          %s278 = ssub.s32 30720, 30720
          %279 = vsyncadd [#allocation10], %s278
          %s280 = sshll.u32 [#allocation9], 4
          %s281 = int_to_ptr.vmem [resolvable:$true] %s280
          %286 = dma.hbm_to_vmem [thread:$0]  %s1, 30720, %s281, [#allocation10], 128, 128, 8
        $region16: #{tpu_custom_call.1} parent=11 // pred_fallthru
          _
        // Predicated region
        $region17: #{tpu_custom_call.1} parent=11 // pred_check
          %p287 = pneg %p105
        $region18: #{tpu_custom_call.1} parent=11 // pred_check_branch
          %289 = sbr.rel (%p287) target = $region20
        $region19: #{tpu_custom_call.1} parent=11 // pred_region
          _
        $region20: #{tpu_custom_call.1} parent=11 // pred_fallthru
          _
        // Predicated region
        $region21: #{tpu_custom_call.1} parent=11 // pred_check
          %p290 = pneg %p126
        $region22: #{tpu_custom_call.1} parent=11 // pred_check_branch
          %292 = sbr.rel (%p290) target = $region24
        $region23: #{tpu_custom_call.1} parent=11 // pred_region
          _
        $region24: #{tpu_custom_call.1} parent=11 // pred_fallthru
          _
        // Predicated region
        $region25: #{tpu_custom_call.1} parent=11 // pred_check
          %p293 = pneg %p147
        $region26: #{tpu_custom_call.1} parent=11 // pred_check_branch
          %295 = sbr.rel (%p293) target = $region28
        $region27: #{tpu_custom_call.1} parent=11 // pred_region
          %s297 = ssub.s32 15360, 15360
          %298 = vsyncadd [#allocation10], %s297
          %s299 = sshll.u32 [#allocation11], 4
          %s300 = int_to_ptr.vmem [resolvable:$true] %s299
          %305 = dma.hbm_to_vmem [thread:$0]  %s4, 15360, %s300, [#allocation10], 64, 64, 4
        $region28: #{tpu_custom_call.1} parent=11 // pred_fallthru
          _
        // Predicated region
        $region29: #{tpu_custom_call.1} parent=11 // pred_check
          %p306 = pneg %p168
        $region30: #{tpu_custom_call.1} parent=11 // pred_check_branch
          %308 = sbr.rel (%p306) target = $region32
        $region31: #{tpu_custom_call.1} parent=11 // pred_region
          _
        $region32: #{tpu_custom_call.1} parent=11 // pred_fallthru
          _
        // Predicated region
        $region33: #{tpu_custom_call.1} parent=11 // pred_check
          %p309 = pneg %p189
        $region34: #{tpu_custom_call.1} parent=11 // pred_check_branch
          %311 = sbr.rel (%p309) target = $region36
        $region35: #{tpu_custom_call.1} parent=11 // pred_region
          _
        $region36: #{tpu_custom_call.1} parent=11 // pred_fallthru
          _
        // Predicated region
        $region37: #{tpu_custom_call.1} parent=11 // pred_check
          %p312 = pneg %p210
        $region38: #{tpu_custom_call.1} parent=11 // pred_check_branch
          %314 = sbr.rel (%p312) target = $region40
        $region39: #{tpu_custom_call.1} parent=11 // pred_region
          %s316 = ssub.s32 1024, 1024
          %317 = vsyncadd [#allocation13], %s316
          %s318 = sshll.u32 [#allocation12], 4
          %s319 = int_to_ptr.vmem [resolvable:$true] %s318
          %324 = dma.hbm_to_vmem [thread:$0]  %s7, 1024, %s319, [#allocation13], 64, 64, 4
        $region40: #{tpu_custom_call.1} parent=11 // pred_fallthru
          _
        // Predicated region
        $region41: #{tpu_custom_call.1} parent=11 // pred_check
          %p325 = pneg %p231
        $region42: #{tpu_custom_call.1} parent=11 // pred_check_branch
          %327 = sbr.rel (%p325) target = $region44
        $region43: #{tpu_custom_call.1} parent=11 // pred_region
          _
        $region44: #{tpu_custom_call.1} parent=11 // pred_fallthru
          _
      $region12: #{tpu_custom_call.1} parent=5 // pred_fallthru
        _
      %p328 = scmp.lt.s32.totalorder %s23, 2
      // Predicated region
      $region45: #{tpu_custom_call.1} parent=5 // pred_check
        %p329 = pneg %p328
      $region46: #{tpu_custom_call.1} parent=5 // pred_check_branch
        %331 = sbr.rel (%p329) target = $region48
      $region47: #{tpu_custom_call.1} parent=5 // pred_region
        // Predicated region
        $region49: #{tpu_custom_call.1} parent=47 // pred_check
          %p332 = pneg %p57
        $region50: #{tpu_custom_call.1} parent=47 // pred_check_branch
          %334 = sbr.rel (%p332) target = $region52
        $region51: #{tpu_custom_call.1} parent=47 // pred_region
          %s335 = sand.u32 %s47, 1
          %s336 = scalar_lea.sflag [#allocation7], %s335
          %s337 = sand.u32 %s47, 1
          %s338 = smul.addr %s337, 24
          %s339 = scalar_lea.vmem [#allocation6], %s338
          %s341 = ssub.s32 384, 384
          %342 = vsyncadd %s336, %s341
          %s343 = smul.addr %s31, 6
          %s344 = smul.addr %s30, 6
          %s345 = sadd.s32 %s343, %s344
          %s346 = smul.addr %s345, 64
          %s347 = scalar_lea.hbm %s0, %s346
          %s348 = sshll.u32 %s339, 4
          %s349 = int_to_ptr.vmem [resolvable:$true] %s348
          %354 = dma.hbm_to_vmem [thread:$0]  %s347, 384, %s349, %s336, 64, 64, 4
        $region52: #{tpu_custom_call.1} parent=47 // pred_fallthru
          _
      $region48: #{tpu_custom_call.1} parent=5 // pred_fallthru
        _
      %p355 = scmp.le.s32.totalorder 1, %s23
      %p356 = scmp.lt.s32.totalorder %s23, 3
      %p357 = pnand %p355, %p356
      %p358 = pneg %p357
      // Predicated region
      $region53: #{tpu_custom_call.1} parent=5 // pred_check
        _
      $region54: #{tpu_custom_call.1} parent=5 // pred_check_branch
        %360 = sbr.rel (%p357) target = $region56
      $region55: #{tpu_custom_call.1} parent=5 // pred_region
        %s361 = ssub.s32 %s23, 1
        %s362 = sand.u32 %s50, 1
        %s363 = scalar_lea.sflag [#allocation7], %s362
        %s364 = sand.u32 %s50, 1
        %s365 = smul.addr %s364, 24
        %s366 = scalar_lea.vmem [#allocation6], %s365
        // Predicated region
        $region57: #{tpu_custom_call.1} parent=55 // pred_check
          %p367 = pneg %p63
        $region58: #{tpu_custom_call.1} parent=55 // pred_check_branch
          %369 = sbr.rel (%p367) target = $region60
        $region59: #{tpu_custom_call.1} parent=55 // pred_region
          %370 = dma.done %s363, 384
        $region60: #{tpu_custom_call.1} parent=55 // pred_fallthru
          _
        // Predicated region
        $region61: #{tpu_custom_call.1} parent=55 // pred_check
          %p371 = pneg %p84
        $region62: #{tpu_custom_call.1} parent=55 // pred_check_branch
          %373 = sbr.rel (%p371) target = $region64
        $region63: #{tpu_custom_call.1} parent=55 // pred_region
          %374 = dma.done [#allocation10], 30720
        $region64: #{tpu_custom_call.1} parent=55 // pred_fallthru
          _
        // Predicated region
        $region65: #{tpu_custom_call.1} parent=55 // pred_check
          %p375 = pneg %p147
        $region66: #{tpu_custom_call.1} parent=55 // pred_check_branch
          %377 = sbr.rel (%p375) target = $region68
        $region67: #{tpu_custom_call.1} parent=55 // pred_region
          %378 = dma.done [#allocation10], 15360
        $region68: #{tpu_custom_call.1} parent=55 // pred_fallthru
          _
        // Predicated region
        $region69: #{tpu_custom_call.1} parent=55 // pred_check
          %p379 = pneg %p210
        $region70: #{tpu_custom_call.1} parent=55 // pred_check_branch
          %381 = sbr.rel (%p379) target = $region72
        $region71: #{tpu_custom_call.1} parent=55 // pred_region
          %382 = dma.done [#allocation13], 1024
        $region72: #{tpu_custom_call.1} parent=55 // pred_fallthru
          _
        %s383 = sand.u32 %s50, 1
        %s384 = scalar_lea.sflag [#allocation7], %s383
        %s385 = sand.u32 %s50, 1
        %s386 = smul.addr %s385, 24
        %s387 = scalar_lea.vmem [#allocation6], %s386
        %p388 = pneg %p63
        %p389 = pneg %p60
        %p390 = pneg %p84
        %p391 = pneg %p81
        %p392 = pneg %p105
        %p393 = pneg %p102
        %p394 = pneg %p126
        %p395 = pneg %p123
        %p396 = pneg %p147
        %p397 = pneg %p144
        %p398 = pneg %p168
        %p399 = pneg %p165
        %p400 = pneg %p189
        %p401 = pneg %p186
        %p402 = pneg %p210
        %p403 = pneg %p207
        %p404 = pneg %p231
        %p405 = pneg %p228
        %p406 = pneg %p259
        %p407 = pneg %p256
        %s408 = sand.u32 %s246, 1
        %s409 = scalar_lea.sflag [#allocation8], %s408
        %s410 = sand.u32 %s246, 1
        %s411 = smul.addr %s410, 8
        %s412 = scalar_lea.vmem [#allocation14], %s411
        %s413 = smul.u32 2, %s33
        %s415 = smul.u32 %s33, 16
        %v416 = vld [vmem:[%s366] sm:$0xf]
        %v417 = vld [vmem:[%s366 + $0x4] sm:$0xf]
        %v418 = vld [vmem:[%s366 + $0x8] sm:$0xf]
        %v419 = vld [vmem:[%s366 + $0xc] sm:$0xf]
        %420 = vst [vmem:[#allocation3] sm:$0xf] %v416
        %421 = vst [vmem:[#allocation3 + $0x3c] sm:$0xf] %v417
        %422 = vst [vmem:[#allocation3 + $0x78] sm:$0xf] %v418
        %423 = vst [vmem:[#allocation3 + $0xb4] sm:$0xf] %v419
        %v424 = vld [vmem:[%s366] sm:$0xf]
        %v425 = vld [vmem:[%s366 + $0x4] sm:$0xf]
        %v426 = vld [vmem:[%s366 + $0x8] sm:$0xf]
        %v427 = vld [vmem:[%s366 + $0xc] sm:$0xf]
        %v428 = vld [vmem:[%s366 + $0x10] sm:$0x1]
        %vm429 = vsmask.f32 3328
        %vm430 = vsmask.f32 7440
        %vm431 = vmor %vm429, %vm430
        %v433 = vshrl.u32 %v424, 16
        %v435 = vrot.slane %v433, 4
        %v436 = vshll.u32 %v424, 16
        %v438 = vrot.slane %v436, 5
        %v439 = vor.u32 %v435, %v438
        %v440 = vrot.slane %v439, 4
        %v442 = vshll.u32 %v425, 16
        %v444 = vrot.slane %v442, 5
        %v445 = vsel %vm431, %v440, %v444
        %v446 = vshrl.u32 %v425, 16
        %v448 = vrot.slane %v446, 4
        %v449 = vor.u32 %v448, %v444
        %v450 = vrot.slane %v449, 4
        %v452 = vshll.u32 %v426, 16
        %v454 = vrot.slane %v452, 5
        %v455 = vsel %vm431, %v450, %v454
        %v456 = vshrl.u32 %v426, 16
        %v458 = vrot.slane %v456, 4
        %v459 = vor.u32 %v458, %v454
        %v460 = vrot.slane %v459, 4
        %v462 = vshll.u32 %v427, 16
        %v464 = vrot.slane %v462, 5
        %v465 = vsel %vm431, %v460, %v464
        %v466 = vshrl.u32 %v427, 16
        %v468 = vrot.slane %v466, 4
        %v469 = vor.u32 %v468, %v464
        %v470 = vrot.slane %v469, 4
        %v472 = vshll.u32 %v428, 16
        %v474 = vrot.slane %v472, 5
        %v475 = vsel %vm431, %v470, %v474
        %480 = vst [vmem:[#allocation3 + $0x4] sm:$0xf] %v445
        %481 = vst [vmem:[#allocation3 + $0x40] sm:$0xf] %v455
        %482 = vst [vmem:[#allocation3 + $0x7c] sm:$0xf] %v465
        %483 = vst [vmem:[#allocation3 + $0xb8] sm:$0xf] %v475
        %v484 = vld [vmem:[%s366] sm:$0xe]
        %v485 = vld [vmem:[%s366 + $0x4] sm:$0xf]
        %v486 = vld [vmem:[%s366 + $0x8] sm:$0xf]
        %v487 = vld [vmem:[%s366 + $0xc] sm:$0xf]
        %v488 = vld [vmem:[%s366 + $0x10] sm:$0x1]
        %vm494 = vcmask 1042432
        %vm495 = vcmask 1046532
        %vm496 = vmor %vm494, %vm495
        %v497 = vrot.slane %v484, 5
        %v498 = vrot.slane %v497, 4
        %v499 = vrot.slane %v485, 5
        %v500 = vsel %vm496, %v498, %v499
        %v501 = vrot.slane %v499, 4
        %v502 = vrot.slane %v486, 5
        %v503 = vsel %vm496, %v501, %v502
        %v504 = vrot.slane %v502, 4
        %v505 = vrot.slane %v487, 5
        %v506 = vsel %vm496, %v504, %v505
        %v507 = vrot.slane %v505, 4
        %v508 = vrot.slane %v488, 5
        %v509 = vsel %vm496, %v507, %v508
        %514 = vst [vmem:[#allocation3 + $0x8] sm:$0xf] %v500
        %515 = vst [vmem:[#allocation3 + $0x44] sm:$0xf] %v503
        %516 = vst [vmem:[#allocation3 + $0x80] sm:$0xf] %v506
        %517 = vst [vmem:[#allocation3 + $0xbc] sm:$0xf] %v509
        %v518 = vld [vmem:[%s366] sm:$0xe]
        %v519 = vld [vmem:[%s366 + $0x4] sm:$0xf]
        %v520 = vld [vmem:[%s366 + $0x8] sm:$0xf]
        %v521 = vld [vmem:[%s366 + $0xc] sm:$0xf]
        %v522 = vld [vmem:[%s366 + $0x10] sm:$0x3]
        %vm523 = vsmask.f32 2304
        %vm524 = vsmask.f32 6416
        %vm525 = vmor %vm523, %vm524
        %v527 = vshrl.u32 %v518, 16
        %v529 = vrot.slane %v527, 5
        %v530 = vshll.u32 %v518, 16
        %v532 = vrot.slane %v530, 6
        %v533 = vor.u32 %v529, %v532
        %v534 = vrot.slane %v533, 4
        %v536 = vshrl.u32 %v519, 16
        %v538 = vrot.slane %v536, 5
        %v539 = vshll.u32 %v519, 16
        %v541 = vrot.slane %v539, 6
        %v542 = vor.u32 %v538, %v541
        %v543 = vsel %vm525, %v534, %v542
        %v544 = vrot.slane %v542, 4
        %v546 = vshrl.u32 %v520, 16
        %v548 = vrot.slane %v546, 5
        %v549 = vshll.u32 %v520, 16
        %v551 = vrot.slane %v549, 6
        %v552 = vor.u32 %v548, %v551
        %v553 = vsel %vm525, %v544, %v552
        %v554 = vrot.slane %v552, 4
        %v556 = vshrl.u32 %v521, 16
        %v558 = vrot.slane %v556, 5
        %v559 = vshll.u32 %v521, 16
        %v561 = vrot.slane %v559, 6
        %v562 = vor.u32 %v558, %v561
        %v563 = vsel %vm525, %v554, %v562
        %v564 = vrot.slane %v562, 4
        %v566 = vshrl.u32 %v522, 16
        %v568 = vrot.slane %v566, 5
        %v569 = vshll.u32 %v522, 16
        %v571 = vrot.slane %v569, 6
        %v572 = vor.u32 %v568, %v571
        %v573 = vsel %vm525, %v564, %v572
        %578 = vst [vmem:[#allocation3 + $0xc] sm:$0xf] %v543
        %579 = vst [vmem:[#allocation3 + $0x48] sm:$0xf] %v553
        %580 = vst [vmem:[#allocation3 + $0x84] sm:$0xf] %v563
        %581 = vst [vmem:[#allocation3 + $0xc0] sm:$0xf] %v573
        %v582 = vld [vmem:[%s366] sm:$0xc]
        %v583 = vld [vmem:[%s366 + $0x4] sm:$0xf]
        %v584 = vld [vmem:[%s366 + $0x8] sm:$0xf]
        %v585 = vld [vmem:[%s366 + $0xc] sm:$0xf]
        %v586 = vld [vmem:[%s366 + $0x10] sm:$0x3]
        %vm592 = vcmask 1041408
        %vm593 = vcmask 1045508
        %vm594 = vmor %vm592, %vm593
        %v595 = vrot.slane %v582, 6
        %v596 = vrot.slane %v595, 4
        %v597 = vrot.slane %v583, 6
        %v598 = vsel %vm594, %v596, %v597
        %v599 = vrot.slane %v597, 4
        %v600 = vrot.slane %v584, 6
        %v601 = vsel %vm594, %v599, %v600
        %v602 = vrot.slane %v600, 4
        %v603 = vrot.slane %v585, 6
        %v604 = vsel %vm594, %v602, %v603
        %v605 = vrot.slane %v603, 4
        %v606 = vrot.slane %v586, 6
        %v607 = vsel %vm594, %v605, %v606
        %612 = vst [vmem:[#allocation3 + $0x10] sm:$0xf] %v598
        %613 = vst [vmem:[#allocation3 + $0x4c] sm:$0xf] %v601
        %614 = vst [vmem:[#allocation3 + $0x88] sm:$0xf] %v604
        %615 = vst [vmem:[#allocation3 + $0xc4] sm:$0xf] %v607
        %v616 = vld [vmem:[%s366] sm:$0xc]
        %v617 = vld [vmem:[%s366 + $0x4] sm:$0xf]
        %v618 = vld [vmem:[%s366 + $0x8] sm:$0xf]
        %v619 = vld [vmem:[%s366 + $0xc] sm:$0xf]
        %v620 = vld [vmem:[%s366 + $0x10] sm:$0x7]
        %vm621 = vsmask.f32 1280
        %vm622 = vsmask.f32 5392
        %vm623 = vmor %vm621, %vm622
        %v625 = vshrl.u32 %v616, 16
        %v627 = vrot.slane %v625, 6
        %v628 = vshll.u32 %v616, 16
        %v630 = vrot.slane %v628, 7
        %v631 = vor.u32 %v627, %v630
        %v632 = vrot.slane %v631, 4
        %v634 = vshrl.u32 %v617, 16
        %v636 = vrot.slane %v634, 6
        %v637 = vshll.u32 %v617, 16
        %v639 = vrot.slane %v637, 7
        %v640 = vor.u32 %v636, %v639
        %v641 = vsel %vm623, %v632, %v640
        %v642 = vrot.slane %v640, 4
        %v644 = vshrl.u32 %v618, 16
        %v646 = vrot.slane %v644, 6
        %v647 = vshll.u32 %v618, 16
        %v649 = vrot.slane %v647, 7
        %v650 = vor.u32 %v646, %v649
        %v651 = vsel %vm623, %v642, %v650
        %v652 = vrot.slane %v650, 4
        %v654 = vshrl.u32 %v619, 16
        %v656 = vrot.slane %v654, 6
        %v657 = vshll.u32 %v619, 16
        %v659 = vrot.slane %v657, 7
        %v660 = vor.u32 %v656, %v659
        %v661 = vsel %vm623, %v652, %v660
        %v662 = vrot.slane %v660, 4
        %v664 = vshrl.u32 %v620, 16
        %v666 = vrot.slane %v664, 6
        %v667 = vshll.u32 %v620, 16
        %v669 = vrot.slane %v667, 7
        %v670 = vor.u32 %v666, %v669
        %v671 = vsel %vm623, %v662, %v670
        %676 = vst [vmem:[#allocation3 + $0x14] sm:$0xf] %v641
        %677 = vst [vmem:[#allocation3 + $0x50] sm:$0xf] %v651
        %678 = vst [vmem:[#allocation3 + $0x8c] sm:$0xf] %v661
        %679 = vst [vmem:[#allocation3 + $0xc8] sm:$0xf] %v671
        %v680 = vld [vmem:[%s366] sm:$0x8]
        %v681 = vld [vmem:[%s366 + $0x4] sm:$0xf]
        %v682 = vld [vmem:[%s366 + $0x8] sm:$0xf]
        %v683 = vld [vmem:[%s366 + $0xc] sm:$0xf]
        %v684 = vld [vmem:[%s366 + $0x10] sm:$0x7]
        %vm690 = vcmask 1040384
        %vm691 = vcmask 1044484
        %vm692 = vmor %vm690, %vm691
        %v693 = vrot.slane %v680, 7
        %v694 = vrot.slane %v693, 4
        %v695 = vrot.slane %v681, 7
        %v696 = vsel %vm692, %v694, %v695
        %v697 = vrot.slane %v695, 4
        %v698 = vrot.slane %v682, 7
        %v699 = vsel %vm692, %v697, %v698
        %v700 = vrot.slane %v698, 4
        %v701 = vrot.slane %v683, 7
        %v702 = vsel %vm692, %v700, %v701
        %v703 = vrot.slane %v701, 4
        %v704 = vrot.slane %v684, 7
        %v705 = vsel %vm692, %v703, %v704
        %710 = vst [vmem:[#allocation3 + $0x18] sm:$0xf] %v696
        %711 = vst [vmem:[#allocation3 + $0x54] sm:$0xf] %v699
        %712 = vst [vmem:[#allocation3 + $0x90] sm:$0xf] %v702
        %713 = vst [vmem:[#allocation3 + $0xcc] sm:$0xf] %v705
        %v714 = vld [vmem:[%s366] sm:$0x8]
        %v715 = vld [vmem:[%s366 + $0x4] sm:$0xf]
        %v716 = vld [vmem:[%s366 + $0x8] sm:$0xf]
        %v717 = vld [vmem:[%s366 + $0xc] sm:$0xf]
        %v718 = vld [vmem:[%s366 + $0x10] sm:$0xf]
        %vm719 = vsmask.f32 256
        %vm720 = vsmask.f32 4368
        %vm721 = vmor %vm719, %vm720
        %v723 = vshrl.u32 %v714, 16
        %v725 = vrot.slane %v723, 7
        %v726 = vrot.slane %v725, 4
        %v728 = vshrl.u32 %v715, 16
        %v730 = vrot.slane %v728, 7
        %v731 = vshll.u32 %v715, 16
        %v733 = vor.u32 %v730, %v731
        %v734 = vsel %vm721, %v726, %v733
        %v735 = vrot.slane %v730, 4
        %v737 = vshrl.u32 %v716, 16
        %v739 = vrot.slane %v737, 7
        %v740 = vshll.u32 %v716, 16
        %v742 = vor.u32 %v739, %v740
        %v743 = vsel %vm721, %v735, %v742
        %v744 = vrot.slane %v739, 4
        %v746 = vshrl.u32 %v717, 16
        %v748 = vrot.slane %v746, 7
        %v749 = vshll.u32 %v717, 16
        %v751 = vor.u32 %v748, %v749
        %v752 = vsel %vm721, %v744, %v751
        %v753 = vrot.slane %v748, 4
        %v755 = vshrl.u32 %v718, 16
        %v757 = vrot.slane %v755, 7
        %v758 = vshll.u32 %v718, 16
        %v760 = vor.u32 %v757, %v758
        %v761 = vsel %vm721, %v753, %v760
        %766 = vst [vmem:[#allocation3 + $0x1c] sm:$0xf] %v734
        %767 = vst [vmem:[#allocation3 + $0x58] sm:$0xf] %v743
        %768 = vst [vmem:[#allocation3 + $0x94] sm:$0xf] %v752
        %769 = vst [vmem:[#allocation3 + $0xd0] sm:$0xf] %v761
        %v770 = vld [vmem:[%s366 + $0x4] sm:$0xf]
        %v771 = vld [vmem:[%s366 + $0x8] sm:$0xf]
        %v772 = vld [vmem:[%s366 + $0xc] sm:$0xf]
        %v773 = vld [vmem:[%s366 + $0x10] sm:$0xf]
        %774 = vst [vmem:[#allocation3 + $0x20] sm:$0xf] %v770
        %775 = vst [vmem:[#allocation3 + $0x5c] sm:$0xf] %v771
        %776 = vst [vmem:[#allocation3 + $0x98] sm:$0xf] %v772
        %777 = vst [vmem:[#allocation3 + $0xd4] sm:$0xf] %v773
        %v778 = vld [vmem:[%s366 + $0x4] sm:$0xf]
        %v779 = vld [vmem:[%s366 + $0x8] sm:$0xf]
        %v780 = vld [vmem:[%s366 + $0xc] sm:$0xf]
        %v781 = vld [vmem:[%s366 + $0x10] sm:$0xf]
        %v782 = vld [vmem:[%s366 + $0x14] sm:$0x1]
        %v784 = vshrl.u32 %v778, 16
        %v786 = vrot.slane %v784, 4
        %v787 = vshll.u32 %v778, 16
        %v789 = vrot.slane %v787, 5
        %v790 = vor.u32 %v786, %v789
        %v791 = vrot.slane %v790, 4
        %v793 = vshll.u32 %v779, 16
        %v795 = vrot.slane %v793, 5
        %v796 = vsel %vm431, %v791, %v795
        %v797 = vshrl.u32 %v779, 16
        %v799 = vrot.slane %v797, 4
        %v800 = vor.u32 %v799, %v795
        %v801 = vrot.slane %v800, 4
        %v803 = vshll.u32 %v780, 16
        %v805 = vrot.slane %v803, 5
        %v806 = vsel %vm431, %v801, %v805
        %v807 = vshrl.u32 %v780, 16
        %v809 = vrot.slane %v807, 4
        %v810 = vor.u32 %v809, %v805
        %v811 = vrot.slane %v810, 4
        %v813 = vshll.u32 %v781, 16
        %v815 = vrot.slane %v813, 5
        %v816 = vsel %vm431, %v811, %v815
        %v817 = vshrl.u32 %v781, 16
        %v819 = vrot.slane %v817, 4
        %v820 = vor.u32 %v819, %v815
        %v821 = vrot.slane %v820, 4
        %v823 = vshll.u32 %v782, 16
        %v825 = vrot.slane %v823, 5
        %v826 = vsel %vm431, %v821, %v825
        %831 = vst [vmem:[#allocation3 + $0x24] sm:$0xf] %v796
        %832 = vst [vmem:[#allocation3 + $0x60] sm:$0xf] %v806
        %833 = vst [vmem:[#allocation3 + $0x9c] sm:$0xf] %v816
        %834 = vst [vmem:[#allocation3 + $0xd8] sm:$0xf] %v826
        %v835 = vld [vmem:[%s366 + $0x4] sm:$0xe]
        %v836 = vld [vmem:[%s366 + $0x8] sm:$0xf]
        %v837 = vld [vmem:[%s366 + $0xc] sm:$0xf]
        %v838 = vld [vmem:[%s366 + $0x10] sm:$0xf]
        %v839 = vld [vmem:[%s366 + $0x14] sm:$0x1]
        %v845 = vrot.slane %v835, 5
        %v846 = vrot.slane %v845, 4
        %v847 = vrot.slane %v836, 5
        %v848 = vsel %vm496, %v846, %v847
        %v849 = vrot.slane %v847, 4
        %v850 = vrot.slane %v837, 5
        %v851 = vsel %vm496, %v849, %v850
        %v852 = vrot.slane %v850, 4
        %v853 = vrot.slane %v838, 5
        %v854 = vsel %vm496, %v852, %v853
        %v855 = vrot.slane %v853, 4
        %v856 = vrot.slane %v839, 5
        %v857 = vsel %vm496, %v855, %v856
        %862 = vst [vmem:[#allocation3 + $0x28] sm:$0xf] %v848
        %863 = vst [vmem:[#allocation3 + $0x64] sm:$0xf] %v851
        %864 = vst [vmem:[#allocation3 + $0xa0] sm:$0xf] %v854
        %865 = vst [vmem:[#allocation3 + $0xdc] sm:$0xf] %v857
        %v866 = vld [vmem:[%s366 + $0x4] sm:$0xe]
        %v867 = vld [vmem:[%s366 + $0x8] sm:$0xf]
        %v868 = vld [vmem:[%s366 + $0xc] sm:$0xf]
        %v869 = vld [vmem:[%s366 + $0x10] sm:$0xf]
        %v870 = vld [vmem:[%s366 + $0x14] sm:$0x3]
        %v872 = vshrl.u32 %v866, 16
        %v874 = vrot.slane %v872, 5
        %v875 = vshll.u32 %v866, 16
        %v877 = vrot.slane %v875, 6
        %v878 = vor.u32 %v874, %v877
        %v879 = vrot.slane %v878, 4
        %v881 = vshrl.u32 %v867, 16
        %v883 = vrot.slane %v881, 5
        %v884 = vshll.u32 %v867, 16
        %v886 = vrot.slane %v884, 6
        %v887 = vor.u32 %v883, %v886
        %v888 = vsel %vm525, %v879, %v887
        %v889 = vrot.slane %v887, 4
        %v891 = vshrl.u32 %v868, 16
        %v893 = vrot.slane %v891, 5
        %v894 = vshll.u32 %v868, 16
        %v896 = vrot.slane %v894, 6
        %v897 = vor.u32 %v893, %v896
        %v898 = vsel %vm525, %v889, %v897
        %v899 = vrot.slane %v897, 4
        %v901 = vshrl.u32 %v869, 16
        %v903 = vrot.slane %v901, 5
        %v904 = vshll.u32 %v869, 16
        %v906 = vrot.slane %v904, 6
        %v907 = vor.u32 %v903, %v906
        %v908 = vsel %vm525, %v899, %v907
        %v909 = vrot.slane %v907, 4
        %v911 = vshrl.u32 %v870, 16
        %v913 = vrot.slane %v911, 5
        %v914 = vshll.u32 %v870, 16
        %v916 = vrot.slane %v914, 6
        %v917 = vor.u32 %v913, %v916
        %v918 = vsel %vm525, %v909, %v917
        %923 = vst [vmem:[#allocation3 + $0x2c] sm:$0xf] %v888
        %924 = vst [vmem:[#allocation3 + $0x68] sm:$0xf] %v898
        %925 = vst [vmem:[#allocation3 + $0xa4] sm:$0xf] %v908
        %926 = vst [vmem:[#allocation3 + $0xe0] sm:$0xf] %v918
        %v927 = vld [vmem:[%s366 + $0x4] sm:$0xc]
        %v928 = vld [vmem:[%s366 + $0x8] sm:$0xf]
        %v929 = vld [vmem:[%s366 + $0xc] sm:$0xf]
        %v930 = vld [vmem:[%s366 + $0x10] sm:$0xf]
        %v931 = vld [vmem:[%s366 + $0x14] sm:$0x3]
        %v937 = vrot.slane %v927, 6
        %v938 = vrot.slane %v937, 4
        %v939 = vrot.slane %v928, 6
        %v940 = vsel %vm594, %v938, %v939
        %v941 = vrot.slane %v939, 4
        %v942 = vrot.slane %v929, 6
        %v943 = vsel %vm594, %v941, %v942
        %v944 = vrot.slane %v942, 4
        %v945 = vrot.slane %v930, 6
        %v946 = vsel %vm594, %v944, %v945
        %v947 = vrot.slane %v945, 4
        %v948 = vrot.slane %v931, 6
        %v949 = vsel %vm594, %v947, %v948
        %954 = vst [vmem:[#allocation3 + $0x30] sm:$0xf] %v940
        %955 = vst [vmem:[#allocation3 + $0x6c] sm:$0xf] %v943
        %956 = vst [vmem:[#allocation3 + $0xa8] sm:$0xf] %v946
        %957 = vst [vmem:[#allocation3 + $0xe4] sm:$0xf] %v949
        %v958 = vld [vmem:[%s366 + $0x4] sm:$0xc]
        %v959 = vld [vmem:[%s366 + $0x8] sm:$0xf]
        %v960 = vld [vmem:[%s366 + $0xc] sm:$0xf]
        %v961 = vld [vmem:[%s366 + $0x10] sm:$0xf]
        %v962 = vld [vmem:[%s366 + $0x14] sm:$0x7]
        %v964 = vshrl.u32 %v958, 16
        %v966 = vrot.slane %v964, 6
        %v967 = vshll.u32 %v958, 16
        %v969 = vrot.slane %v967, 7
        %v970 = vor.u32 %v966, %v969
        %v971 = vrot.slane %v970, 4
        %v973 = vshrl.u32 %v959, 16
        %v975 = vrot.slane %v973, 6
        %v976 = vshll.u32 %v959, 16
        %v978 = vrot.slane %v976, 7
        %v979 = vor.u32 %v975, %v978
        %v980 = vsel %vm623, %v971, %v979
        %v981 = vrot.slane %v979, 4
        %v983 = vshrl.u32 %v960, 16
        %v985 = vrot.slane %v983, 6
        %v986 = vshll.u32 %v960, 16
        %v988 = vrot.slane %v986, 7
        %v989 = vor.u32 %v985, %v988
        %v990 = vsel %vm623, %v981, %v989
        %v991 = vrot.slane %v989, 4
        %v993 = vshrl.u32 %v961, 16
        %v995 = vrot.slane %v993, 6
        %v996 = vshll.u32 %v961, 16
        %v998 = vrot.slane %v996, 7
        %v999 = vor.u32 %v995, %v998
        %v1000 = vsel %vm623, %v991, %v999
        %v1001 = vrot.slane %v999, 4
        %v1003 = vshrl.u32 %v962, 16
        %v1005 = vrot.slane %v1003, 6
        %v1006 = vshll.u32 %v962, 16
        %v1008 = vrot.slane %v1006, 7
        %v1009 = vor.u32 %v1005, %v1008
        %v1010 = vsel %vm623, %v1001, %v1009
        %1015 = vst [vmem:[#allocation3 + $0x34] sm:$0xf] %v980
        %1016 = vst [vmem:[#allocation3 + $0x70] sm:$0xf] %v990
        %1017 = vst [vmem:[#allocation3 + $0xac] sm:$0xf] %v1000
        %1018 = vst [vmem:[#allocation3 + $0xe8] sm:$0xf] %v1010
        %v1019 = vld [vmem:[%s366 + $0x4] sm:$0x8]
        %v1020 = vld [vmem:[%s366 + $0x8] sm:$0xf]
        %v1021 = vld [vmem:[%s366 + $0xc] sm:$0xf]
        %v1022 = vld [vmem:[%s366 + $0x10] sm:$0xf]
        %v1023 = vld [vmem:[%s366 + $0x14] sm:$0x7]
        %v1029 = vrot.slane %v1019, 7
        %v1030 = vrot.slane %v1029, 4
        %v1031 = vrot.slane %v1020, 7
        %v1032 = vsel %vm692, %v1030, %v1031
        %v1033 = vrot.slane %v1031, 4
        %v1034 = vrot.slane %v1021, 7
        %v1035 = vsel %vm692, %v1033, %v1034
        %v1036 = vrot.slane %v1034, 4
        %v1037 = vrot.slane %v1022, 7
        %v1038 = vsel %vm692, %v1036, %v1037
        %v1039 = vrot.slane %v1037, 4
        %v1040 = vrot.slane %v1023, 7
        %v1041 = vsel %vm692, %v1039, %v1040
        %1046 = vst [vmem:[#allocation3 + $0x38] sm:$0xf] %v1032
        %1047 = vst [vmem:[#allocation3 + $0x74] sm:$0xf] %v1035
        %1048 = vst [vmem:[#allocation3 + $0xb0] sm:$0xf] %v1038
        %1049 = vst [vmem:[#allocation3 + $0xec] sm:$0xf] %v1041
        %v1050 = vld [vmem:[#allocation3] sm:$0xff]
        %v1051 = vld [vmem:[#allocation3 + $0x8] sm:$0xff]
        %v1052 = vld [vmem:[#allocation3 + $0x10] sm:$0xff]
        %v1053 = vld [vmem:[#allocation3 + $0x18] sm:$0xff]
        %v1054 = vld [vmem:[#allocation3 + $0x20] sm:$0xff]
        %v1055 = vld [vmem:[#allocation3 + $0x28] sm:$0xff]
        %v1056 = vld [vmem:[#allocation3 + $0x30] sm:$0xff]
        %v1057 = vld [vmem:[#allocation3 + $0x38] sm:$0xf]
        %v1058 = vld [vmem:[#allocation3 + $0x3c] sm:$0xff]
        %v1059 = vld [vmem:[#allocation3 + $0x44] sm:$0xff]
        %v1060 = vld [vmem:[#allocation3 + $0x4c] sm:$0xff]
        %v1061 = vld [vmem:[#allocation3 + $0x54] sm:$0xff]
        %v1062 = vld [vmem:[#allocation3 + $0x5c] sm:$0xff]
        %v1063 = vld [vmem:[#allocation3 + $0x64] sm:$0xff]
        %v1064 = vld [vmem:[#allocation3 + $0x6c] sm:$0xff]
        %v1065 = vld [vmem:[#allocation3 + $0x74] sm:$0xf]
        %v1066 = vld [vmem:[#allocation3 + $0x78] sm:$0xff]
        %v1067 = vld [vmem:[#allocation3 + $0x80] sm:$0xff]
        %v1068 = vld [vmem:[#allocation3 + $0x88] sm:$0xff]
        %v1069 = vld [vmem:[#allocation3 + $0x90] sm:$0xff]
        %v1070 = vld [vmem:[#allocation3 + $0x98] sm:$0xff]
        %v1071 = vld [vmem:[#allocation3 + $0xa0] sm:$0xff]
        %v1072 = vld [vmem:[#allocation3 + $0xa8] sm:$0xff]
        %v1073 = vld [vmem:[#allocation3 + $0xb0] sm:$0xf]
        %v1074 = vld [vmem:[#allocation3 + $0xb4] sm:$0xff]
        %v1075 = vld [vmem:[#allocation3 + $0xbc] sm:$0xff]
        %v1076 = vld [vmem:[#allocation3 + $0xc4] sm:$0xff]
        %v1077 = vld [vmem:[#allocation3 + $0xcc] sm:$0xff]
        %v1078 = vld [vmem:[#allocation3 + $0xd4] sm:$0xff]
        %v1079 = vld [vmem:[#allocation3 + $0xdc] sm:$0xff]
        %v1080 = vld [vmem:[#allocation3 + $0xe4] sm:$0xff]
        %v1081 = vld [vmem:[#allocation3 + $0xec] sm:$0xf]
        %v1082 = vld [vmem:[#allocation9] sm:$0xff]
        %v1083 = vld [vmem:[#allocation9 + $0x8] sm:$0xff]
        %v1084 = vld [vmem:[#allocation9 + $0x10] sm:$0xff]
        %v1085 = vld [vmem:[#allocation9 + $0x18] sm:$0xff]
        %v1086 = vld [vmem:[#allocation9 + $0x20] sm:$0xff]
        %v1087 = vld [vmem:[#allocation9 + $0x28] sm:$0xff]
        %v1088 = vld [vmem:[#allocation9 + $0x30] sm:$0xff]
        %v1089 = vld [vmem:[#allocation9 + $0x38] sm:$0xff]
        %v1090 = vld [vmem:[#allocation9 + $0x40] sm:$0xff]
        %v1091 = vld [vmem:[#allocation9 + $0x48] sm:$0xff]
        %v1092 = vld [vmem:[#allocation9 + $0x50] sm:$0xff]
        %v1093 = vld [vmem:[#allocation9 + $0x58] sm:$0xff]
        %v1094 = vld [vmem:[#allocation9 + $0x60] sm:$0xff]
        %v1095 = vld [vmem:[#allocation9 + $0x68] sm:$0xff]
        %v1096 = vld [vmem:[#allocation9 + $0x70] sm:$0xff]
        %v1097 = vld [vmem:[#allocation9 + $0x78] sm:$0xff]
        %v1098 = vld [vmem:[#allocation9 + $0x80] sm:$0xff]
        %v1099 = vld [vmem:[#allocation9 + $0x88] sm:$0xff]
        %v1100 = vld [vmem:[#allocation9 + $0x90] sm:$0xff]
        %v1101 = vld [vmem:[#allocation9 + $0x98] sm:$0xff]
        %v1102 = vld [vmem:[#allocation9 + $0xa0] sm:$0xff]
        %v1103 = vld [vmem:[#allocation9 + $0xa8] sm:$0xff]
        %v1104 = vld [vmem:[#allocation9 + $0xb0] sm:$0xff]
        %v1105 = vld [vmem:[#allocation9 + $0xb8] sm:$0xff]
        %v1106 = vld [vmem:[#allocation9 + $0xc0] sm:$0xff]
        %v1107 = vld [vmem:[#allocation9 + $0xc8] sm:$0xff]
        %v1108 = vld [vmem:[#allocation9 + $0xd0] sm:$0xff]
        %v1109 = vld [vmem:[#allocation9 + $0xd8] sm:$0xff]
        %v1110 = vld [vmem:[#allocation9 + $0xe0] sm:$0xff]
        %v1111 = vld [vmem:[#allocation9 + $0xe8] sm:$0xff]
        %v1112 = vld [vmem:[#allocation9 + $0xf0] sm:$0xff]
        %v1113 = vld [vmem:[#allocation9 + $0xf8] sm:$0xff]
        %v1114 = vld [vmem:[#allocation9 + $0x100] sm:$0xff]
        %v1115 = vld [vmem:[#allocation9 + $0x108] sm:$0xff]
        %v1116 = vld [vmem:[#allocation9 + $0x110] sm:$0xff]
        %v1117 = vld [vmem:[#allocation9 + $0x118] sm:$0xff]
        %v1118 = vld [vmem:[#allocation9 + $0x120] sm:$0xff]
        %v1119 = vld [vmem:[#allocation9 + $0x128] sm:$0xff]
        %v1120 = vld [vmem:[#allocation9 + $0x130] sm:$0xff]
        %v1121 = vld [vmem:[#allocation9 + $0x138] sm:$0xff]
        %v1122 = vld [vmem:[#allocation9 + $0x140] sm:$0xff]
        %v1123 = vld [vmem:[#allocation9 + $0x148] sm:$0xff]
        %v1124 = vld [vmem:[#allocation9 + $0x150] sm:$0xff]
        %v1125 = vld [vmem:[#allocation9 + $0x158] sm:$0xff]
        %v1126 = vld [vmem:[#allocation9 + $0x160] sm:$0xff]
        %v1127 = vld [vmem:[#allocation9 + $0x168] sm:$0xff]
        %v1128 = vld [vmem:[#allocation9 + $0x170] sm:$0xff]
        %v1129 = vld [vmem:[#allocation9 + $0x178] sm:$0xff]
        %v1130 = vld [vmem:[#allocation9 + $0x180] sm:$0xff]
        %v1131 = vld [vmem:[#allocation9 + $0x188] sm:$0xff]
        %v1132 = vld [vmem:[#allocation9 + $0x190] sm:$0xff]
        %v1133 = vld [vmem:[#allocation9 + $0x198] sm:$0xff]
        %v1134 = vld [vmem:[#allocation9 + $0x1a0] sm:$0xff]
        %v1135 = vld [vmem:[#allocation9 + $0x1a8] sm:$0xff]
        %v1136 = vld [vmem:[#allocation9 + $0x1b0] sm:$0xff]
        %v1137 = vld [vmem:[#allocation9 + $0x1b8] sm:$0xff]
        %v1138 = vld [vmem:[#allocation9 + $0x1c0] sm:$0xff]
        %v1139 = vld [vmem:[#allocation9 + $0x1c8] sm:$0xff]
        %v1140 = vld [vmem:[#allocation9 + $0x1d0] sm:$0xff]
        %v1141 = vld [vmem:[#allocation9 + $0x1d8] sm:$0xff]
        %v1142 = vld [vmem:[#allocation9 + $0x1e0] sm:$0xff]
        %v1143 = vld [vmem:[#allocation9 + $0x1e8] sm:$0xff]
        %v1144 = vld [vmem:[#allocation9 + $0x1f0] sm:$0xff]
        %v1145 = vld [vmem:[#allocation9 + $0x1f8] sm:$0xff]
        %v1146 = vld [vmem:[#allocation9 + $0x200] sm:$0xff]
        %v1147 = vld [vmem:[#allocation9 + $0x208] sm:$0xff]
        %v1148 = vld [vmem:[#allocation9 + $0x210] sm:$0xff]
        %v1149 = vld [vmem:[#allocation9 + $0x218] sm:$0xff]
        %v1150 = vld [vmem:[#allocation9 + $0x220] sm:$0xff]
        %v1151 = vld [vmem:[#allocation9 + $0x228] sm:$0xff]
        %v1152 = vld [vmem:[#allocation9 + $0x230] sm:$0xff]
        %v1153 = vld [vmem:[#allocation9 + $0x238] sm:$0xff]
        %v1154 = vld [vmem:[#allocation9 + $0x240] sm:$0xff]
        %v1155 = vld [vmem:[#allocation9 + $0x248] sm:$0xff]
        %v1156 = vld [vmem:[#allocation9 + $0x250] sm:$0xff]
        %v1157 = vld [vmem:[#allocation9 + $0x258] sm:$0xff]
        %v1158 = vld [vmem:[#allocation9 + $0x260] sm:$0xff]
        %v1159 = vld [vmem:[#allocation9 + $0x268] sm:$0xff]
        %v1160 = vld [vmem:[#allocation9 + $0x270] sm:$0xff]
        %v1161 = vld [vmem:[#allocation9 + $0x278] sm:$0xff]
        %v1162 = vld [vmem:[#allocation9 + $0x280] sm:$0xff]
        %v1163 = vld [vmem:[#allocation9 + $0x288] sm:$0xff]
        %v1164 = vld [vmem:[#allocation9 + $0x290] sm:$0xff]
        %v1165 = vld [vmem:[#allocation9 + $0x298] sm:$0xff]
        %v1166 = vld [vmem:[#allocation9 + $0x2a0] sm:$0xff]
        %v1167 = vld [vmem:[#allocation9 + $0x2a8] sm:$0xff]
        %v1168 = vld [vmem:[#allocation9 + $0x2b0] sm:$0xff]
        %v1169 = vld [vmem:[#allocation9 + $0x2b8] sm:$0xff]
        %v1170 = vld [vmem:[#allocation9 + $0x2c0] sm:$0xff]
        %v1171 = vld [vmem:[#allocation9 + $0x2c8] sm:$0xff]
        %v1172 = vld [vmem:[#allocation9 + $0x2d0] sm:$0xff]
        %v1173 = vld [vmem:[#allocation9 + $0x2d8] sm:$0xff]
        %v1174 = vld [vmem:[#allocation9 + $0x2e0] sm:$0xff]
        %v1175 = vld [vmem:[#allocation9 + $0x2e8] sm:$0xff]
        %v1176 = vld [vmem:[#allocation9 + $0x2f0] sm:$0xff]
        %v1177 = vld [vmem:[#allocation9 + $0x2f8] sm:$0xff]
        %v1178 = vld [vmem:[#allocation9 + $0x300] sm:$0xff]
        %v1179 = vld [vmem:[#allocation9 + $0x308] sm:$0xff]
        %v1180 = vld [vmem:[#allocation9 + $0x310] sm:$0xff]
        %v1181 = vld [vmem:[#allocation9 + $0x318] sm:$0xff]
        %v1182 = vld [vmem:[#allocation9 + $0x320] sm:$0xff]
        %v1183 = vld [vmem:[#allocation9 + $0x328] sm:$0xff]
        %v1184 = vld [vmem:[#allocation9 + $0x330] sm:$0xff]
        %v1185 = vld [vmem:[#allocation9 + $0x338] sm:$0xff]
        %v1186 = vld [vmem:[#allocation9 + $0x340] sm:$0xff]
        %v1187 = vld [vmem:[#allocation9 + $0x348] sm:$0xff]
        %v1188 = vld [vmem:[#allocation9 + $0x350] sm:$0xff]
        %v1189 = vld [vmem:[#allocation9 + $0x358] sm:$0xff]
        %v1190 = vld [vmem:[#allocation9 + $0x360] sm:$0xff]
        %v1191 = vld [vmem:[#allocation9 + $0x368] sm:$0xff]
        %v1192 = vld [vmem:[#allocation9 + $0x370] sm:$0xff]
        %v1193 = vld [vmem:[#allocation9 + $0x378] sm:$0xff]
        %v1194 = vld [vmem:[#allocation9 + $0x380] sm:$0xff]
        %v1195 = vld [vmem:[#allocation9 + $0x388] sm:$0xff]
        %v1196 = vld [vmem:[#allocation9 + $0x390] sm:$0xff]
        %v1197 = vld [vmem:[#allocation9 + $0x398] sm:$0xff]
        %v1198 = vld [vmem:[#allocation9 + $0x3a0] sm:$0xff]
        %v1199 = vld [vmem:[#allocation9 + $0x3a8] sm:$0xff]
        %v1200 = vld [vmem:[#allocation9 + $0x3b0] sm:$0xff]
        %v1201 = vld [vmem:[#allocation9 + $0x3b8] sm:$0xff]
        %v1202 = vld [vmem:[#allocation9 + $0x3c0] sm:$0xff]
        %v1203 = vld [vmem:[#allocation9 + $0x3c8] sm:$0xff]
        %v1204 = vld [vmem:[#allocation9 + $0x3d0] sm:$0xff]
        %v1205 = vld [vmem:[#allocation9 + $0x3d8] sm:$0xff]
        %v1206 = vld [vmem:[#allocation9 + $0x3e0] sm:$0xff]
        %v1207 = vld [vmem:[#allocation9 + $0x3e8] sm:$0xff]
        %v1208 = vld [vmem:[#allocation9 + $0x3f0] sm:$0xff]
        %v1209 = vld [vmem:[#allocation9 + $0x3f8] sm:$0xff]
        %v1210 = vld [vmem:[#allocation9 + $0x400] sm:$0xff]
        %v1211 = vld [vmem:[#allocation9 + $0x408] sm:$0xff]
        %v1212 = vld [vmem:[#allocation9 + $0x410] sm:$0xff]
        %v1213 = vld [vmem:[#allocation9 + $0x418] sm:$0xff]
        %v1214 = vld [vmem:[#allocation9 + $0x420] sm:$0xff]
        %v1215 = vld [vmem:[#allocation9 + $0x428] sm:$0xff]
        %v1216 = vld [vmem:[#allocation9 + $0x430] sm:$0xff]
        %v1217 = vld [vmem:[#allocation9 + $0x438] sm:$0xff]
        %v1218 = vld [vmem:[#allocation9 + $0x440] sm:$0xff]
        %v1219 = vld [vmem:[#allocation9 + $0x448] sm:$0xff]
        %v1220 = vld [vmem:[#allocation9 + $0x450] sm:$0xff]
        %v1221 = vld [vmem:[#allocation9 + $0x458] sm:$0xff]
        %v1222 = vld [vmem:[#allocation9 + $0x460] sm:$0xff]
        %v1223 = vld [vmem:[#allocation9 + $0x468] sm:$0xff]
        %v1224 = vld [vmem:[#allocation9 + $0x470] sm:$0xff]
        %v1225 = vld [vmem:[#allocation9 + $0x478] sm:$0xff]
        %v1226 = vld [vmem:[#allocation9 + $0x480] sm:$0xff]
        %v1227 = vld [vmem:[#allocation9 + $0x488] sm:$0xff]
        %v1228 = vld [vmem:[#allocation9 + $0x490] sm:$0xff]
        %v1229 = vld [vmem:[#allocation9 + $0x498] sm:$0xff]
        %v1230 = vld [vmem:[#allocation9 + $0x4a0] sm:$0xff]
        %v1231 = vld [vmem:[#allocation9 + $0x4a8] sm:$0xff]
        %v1232 = vld [vmem:[#allocation9 + $0x4b0] sm:$0xff]
        %v1233 = vld [vmem:[#allocation9 + $0x4b8] sm:$0xff]
        %v1234 = vld [vmem:[#allocation9 + $0x4c0] sm:$0xff]
        %v1235 = vld [vmem:[#allocation9 + $0x4c8] sm:$0xff]
        %v1236 = vld [vmem:[#allocation9 + $0x4d0] sm:$0xff]
        %v1237 = vld [vmem:[#allocation9 + $0x4d8] sm:$0xff]
        %v1238 = vld [vmem:[#allocation9 + $0x4e0] sm:$0xff]
        %v1239 = vld [vmem:[#allocation9 + $0x4e8] sm:$0xff]
        %v1240 = vld [vmem:[#allocation9 + $0x4f0] sm:$0xff]
        %v1241 = vld [vmem:[#allocation9 + $0x4f8] sm:$0xff]
        %v1242 = vld [vmem:[#allocation9 + $0x500] sm:$0xff]
        %v1243 = vld [vmem:[#allocation9 + $0x508] sm:$0xff]
        %v1244 = vld [vmem:[#allocation9 + $0x510] sm:$0xff]
        %v1245 = vld [vmem:[#allocation9 + $0x518] sm:$0xff]
        %v1246 = vld [vmem:[#allocation9 + $0x520] sm:$0xff]
        %v1247 = vld [vmem:[#allocation9 + $0x528] sm:$0xff]
        %v1248 = vld [vmem:[#allocation9 + $0x530] sm:$0xff]
        %v1249 = vld [vmem:[#allocation9 + $0x538] sm:$0xff]
        %v1250 = vld [vmem:[#allocation9 + $0x540] sm:$0xff]
        %v1251 = vld [vmem:[#allocation9 + $0x548] sm:$0xff]
        %v1252 = vld [vmem:[#allocation9 + $0x550] sm:$0xff]
        %v1253 = vld [vmem:[#allocation9 + $0x558] sm:$0xff]
        %v1254 = vld [vmem:[#allocation9 + $0x560] sm:$0xff]
        %v1255 = vld [vmem:[#allocation9 + $0x568] sm:$0xff]
        %v1256 = vld [vmem:[#allocation9 + $0x570] sm:$0xff]
        %v1257 = vld [vmem:[#allocation9 + $0x578] sm:$0xff]
        %v1258 = vld [vmem:[#allocation9 + $0x580] sm:$0xff]
        %v1259 = vld [vmem:[#allocation9 + $0x588] sm:$0xff]
        %v1260 = vld [vmem:[#allocation9 + $0x590] sm:$0xff]
        %v1261 = vld [vmem:[#allocation9 + $0x598] sm:$0xff]
        %v1262 = vld [vmem:[#allocation9 + $0x5a0] sm:$0xff]
        %v1263 = vld [vmem:[#allocation9 + $0x5a8] sm:$0xff]
        %v1264 = vld [vmem:[#allocation9 + $0x5b0] sm:$0xff]
        %v1265 = vld [vmem:[#allocation9 + $0x5b8] sm:$0xff]
        %v1266 = vld [vmem:[#allocation9 + $0x5c0] sm:$0xff]
        %v1267 = vld [vmem:[#allocation9 + $0x5c8] sm:$0xff]
        %v1268 = vld [vmem:[#allocation9 + $0x5d0] sm:$0xff]
        %v1269 = vld [vmem:[#allocation9 + $0x5d8] sm:$0xff]
        %v1270 = vld [vmem:[#allocation9 + $0x5e0] sm:$0xff]
        %v1271 = vld [vmem:[#allocation9 + $0x5e8] sm:$0xff]
        %v1272 = vld [vmem:[#allocation9 + $0x5f0] sm:$0xff]
        %v1273 = vld [vmem:[#allocation9 + $0x5f8] sm:$0xff]
        %v1274 = vld [vmem:[#allocation9 + $0x600] sm:$0xff]
        %v1275 = vld [vmem:[#allocation9 + $0x608] sm:$0xff]
        %v1276 = vld [vmem:[#allocation9 + $0x610] sm:$0xff]
        %v1277 = vld [vmem:[#allocation9 + $0x618] sm:$0xff]
        %v1278 = vld [vmem:[#allocation9 + $0x620] sm:$0xff]
        %v1279 = vld [vmem:[#allocation9 + $0x628] sm:$0xff]
        %v1280 = vld [vmem:[#allocation9 + $0x630] sm:$0xff]
        %v1281 = vld [vmem:[#allocation9 + $0x638] sm:$0xff]
        %v1282 = vld [vmem:[#allocation9 + $0x640] sm:$0xff]
        %v1283 = vld [vmem:[#allocation9 + $0x648] sm:$0xff]
        %v1284 = vld [vmem:[#allocation9 + $0x650] sm:$0xff]
        %v1285 = vld [vmem:[#allocation9 + $0x658] sm:$0xff]
        %v1286 = vld [vmem:[#allocation9 + $0x660] sm:$0xff]
        %v1287 = vld [vmem:[#allocation9 + $0x668] sm:$0xff]
        %v1288 = vld [vmem:[#allocation9 + $0x670] sm:$0xff]
        %v1289 = vld [vmem:[#allocation9 + $0x678] sm:$0xff]
        %v1290 = vld [vmem:[#allocation9 + $0x680] sm:$0xff]
        %v1291 = vld [vmem:[#allocation9 + $0x688] sm:$0xff]
        %v1292 = vld [vmem:[#allocation9 + $0x690] sm:$0xff]
        %v1293 = vld [vmem:[#allocation9 + $0x698] sm:$0xff]
        %v1294 = vld [vmem:[#allocation9 + $0x6a0] sm:$0xff]
        %v1295 = vld [vmem:[#allocation9 + $0x6a8] sm:$0xff]
        %v1296 = vld [vmem:[#allocation9 + $0x6b0] sm:$0xff]
        %v1297 = vld [vmem:[#allocation9 + $0x6b8] sm:$0xff]
        %v1298 = vld [vmem:[#allocation9 + $0x6c0] sm:$0xff]
        %v1299 = vld [vmem:[#allocation9 + $0x6c8] sm:$0xff]
        %v1300 = vld [vmem:[#allocation9 + $0x6d0] sm:$0xff]
        %v1301 = vld [vmem:[#allocation9 + $0x6d8] sm:$0xff]
        %v1302 = vld [vmem:[#allocation9 + $0x6e0] sm:$0xff]
        %v1303 = vld [vmem:[#allocation9 + $0x6e8] sm:$0xff]
        %v1304 = vld [vmem:[#allocation9 + $0x6f0] sm:$0xff]
        %v1305 = vld [vmem:[#allocation9 + $0x6f8] sm:$0xff]
        %v1306 = vld [vmem:[#allocation9 + $0x700] sm:$0xff]
        %v1307 = vld [vmem:[#allocation9 + $0x708] sm:$0xff]
        %v1308 = vld [vmem:[#allocation9 + $0x710] sm:$0xff]
        %v1309 = vld [vmem:[#allocation9 + $0x718] sm:$0xff]
        %v1310 = vld [vmem:[#allocation9 + $0x720] sm:$0xff]
        %v1311 = vld [vmem:[#allocation9 + $0x728] sm:$0xff]
        %v1312 = vld [vmem:[#allocation9 + $0x730] sm:$0xff]
        %v1313 = vld [vmem:[#allocation9 + $0x738] sm:$0xff]
        %v1314 = vld [vmem:[#allocation9 + $0x740] sm:$0xff]
        %v1315 = vld [vmem:[#allocation9 + $0x748] sm:$0xff]
        %v1316 = vld [vmem:[#allocation9 + $0x750] sm:$0xff]
        %v1317 = vld [vmem:[#allocation9 + $0x758] sm:$0xff]
        %v1318 = vld [vmem:[#allocation9 + $0x760] sm:$0xff]
        %v1319 = vld [vmem:[#allocation9 + $0x768] sm:$0xff]
        %v1320 = vld [vmem:[#allocation9 + $0x770] sm:$0xff]
        %v1321 = vld [vmem:[#allocation9 + $0x778] sm:$0xff]
        %v1354 = vunpack.c.l.b16 %v1050
        %v1355 = vunpack.c.h.b16 %v1050
        %v1356 = vunpack.c.l.b16 %v1051
        %v1357 = vunpack.c.h.b16 %v1051
        %v1358 = vunpack.c.l.b16 %v1052
        %v1359 = vunpack.c.h.b16 %v1052
        %v1360 = vunpack.c.l.b16 %v1053
        %v1361 = vunpack.c.h.b16 %v1053
        %v1362 = vunpack.c.l.b16 %v1054
        %v1363 = vunpack.c.h.b16 %v1054
        %v1364 = vunpack.c.l.b16 %v1055
        %v1365 = vunpack.c.h.b16 %v1055
        %v1366 = vunpack.c.l.b16 %v1056
        %v1367 = vunpack.c.h.b16 %v1056
        %v1368 = vunpack.c.l.b16 %v1057
        %v1369 = vunpack.c.l.b16 %v1058
        %v1370 = vunpack.c.h.b16 %v1058
        %v1371 = vunpack.c.l.b16 %v1059
        %v1372 = vunpack.c.h.b16 %v1059
        %v1373 = vunpack.c.l.b16 %v1060
        %v1374 = vunpack.c.h.b16 %v1060
        %v1375 = vunpack.c.l.b16 %v1061
        %v1376 = vunpack.c.h.b16 %v1061
        %v1377 = vunpack.c.l.b16 %v1062
        %v1378 = vunpack.c.h.b16 %v1062
        %v1379 = vunpack.c.l.b16 %v1063
        %v1380 = vunpack.c.h.b16 %v1063
        %v1381 = vunpack.c.l.b16 %v1064
        %v1382 = vunpack.c.h.b16 %v1064
        %v1383 = vunpack.c.l.b16 %v1065
        %v1384 = vunpack.c.l.b16 %v1066
        %v1385 = vunpack.c.h.b16 %v1066
        %v1386 = vunpack.c.l.b16 %v1067
        %v1387 = vunpack.c.h.b16 %v1067
        %v1388 = vunpack.c.l.b16 %v1068
        %v1389 = vunpack.c.h.b16 %v1068
        %v1390 = vunpack.c.l.b16 %v1069
        %v1391 = vunpack.c.h.b16 %v1069
        %v1392 = vunpack.c.l.b16 %v1070
        %v1393 = vunpack.c.h.b16 %v1070
        %v1394 = vunpack.c.l.b16 %v1071
        %v1395 = vunpack.c.h.b16 %v1071
        %v1396 = vunpack.c.l.b16 %v1072
        %v1397 = vunpack.c.h.b16 %v1072
        %v1398 = vunpack.c.l.b16 %v1073
        %v1399 = vunpack.c.l.b16 %v1074
        %v1400 = vunpack.c.h.b16 %v1074
        %v1401 = vunpack.c.l.b16 %v1075
        %v1402 = vunpack.c.h.b16 %v1075
        %v1403 = vunpack.c.l.b16 %v1076
        %v1404 = vunpack.c.h.b16 %v1076
        %v1405 = vunpack.c.l.b16 %v1077
        %v1406 = vunpack.c.h.b16 %v1077
        %v1407 = vunpack.c.l.b16 %v1078
        %v1408 = vunpack.c.h.b16 %v1078
        %v1409 = vunpack.c.l.b16 %v1079
        %v1410 = vunpack.c.h.b16 %v1079
        %v1411 = vunpack.c.l.b16 %v1080
        %v1412 = vunpack.c.h.b16 %v1080
        %v1413 = vunpack.c.l.b16 %v1081
        %v1414 = vpack.c.b16 %v1369, %v1354
        %v1415 = vpack.c.b16 %v1370, %v1355
        %v1416 = vpack.c.b16 %v1371, %v1356
        %v1417 = vpack.c.b16 %v1372, %v1357
        %v1418 = vpack.c.b16 %v1373, %v1358
        %v1419 = vpack.c.b16 %v1374, %v1359
        %v1420 = vpack.c.b16 %v1375, %v1360
        %v1421 = vpack.c.b16 %v1376, %v1361
        %v1422 = vpack.c.b16 %v1377, %v1362
        %v1423 = vpack.c.b16 %v1378, %v1363
        %v1424 = vpack.c.b16 %v1379, %v1364
        %v1425 = vpack.c.b16 %v1380, %v1365
        %v1426 = vpack.c.b16 %v1381, %v1366
        %v1427 = vpack.c.b16 %v1382, %v1367
        %v1428 = vpack.c.b16 %v1383, %v1368
        %v1429 = vpack.c.b16 %v1399, %v1384
        %v1430 = vpack.c.b16 %v1400, %v1385
        %v1431 = vpack.c.b16 %v1401, %v1386
        %v1432 = vpack.c.b16 %v1402, %v1387
        %v1433 = vpack.c.b16 %v1403, %v1388
        %v1434 = vpack.c.b16 %v1404, %v1389
        %v1435 = vpack.c.b16 %v1405, %v1390
        %v1436 = vpack.c.b16 %v1406, %v1391
        %v1437 = vpack.c.b16 %v1407, %v1392
        %v1438 = vpack.c.b16 %v1408, %v1393
        %v1439 = vpack.c.b16 %v1409, %v1394
        %v1440 = vpack.c.b16 %v1410, %v1395
        %v1441 = vpack.c.b16 %v1411, %v1396
        %v1442 = vpack.c.b16 %v1412, %v1397
        %v1443 = vpack.c.b16 %v1413, %v1398
        %v1714 = vunpack.c.l.b16 %v1082
        %v1715 = vunpack.c.h.b16 %v1082
        %v1716 = vunpack.c.l.b16 %v1083
        %v1717 = vunpack.c.h.b16 %v1083
        %v1718 = vunpack.c.l.b16 %v1084
        %v1719 = vunpack.c.h.b16 %v1084
        %v1720 = vunpack.c.l.b16 %v1085
        %v1721 = vunpack.c.h.b16 %v1085
        %v1722 = vunpack.c.l.b16 %v1086
        %v1723 = vunpack.c.h.b16 %v1086
        %v1724 = vunpack.c.l.b16 %v1087
        %v1725 = vunpack.c.h.b16 %v1087
        %v1726 = vunpack.c.l.b16 %v1088
        %v1727 = vunpack.c.h.b16 %v1088
        %v1728 = vunpack.c.l.b16 %v1089
        %v1729 = vunpack.c.h.b16 %v1089
        %v1730 = vunpack.c.l.b16 %v1090
        %v1731 = vunpack.c.h.b16 %v1090
        %v1732 = vunpack.c.l.b16 %v1091
        %v1733 = vunpack.c.h.b16 %v1091
        %v1734 = vunpack.c.l.b16 %v1092
        %v1735 = vunpack.c.h.b16 %v1092
        %v1736 = vunpack.c.l.b16 %v1093
        %v1737 = vunpack.c.h.b16 %v1093
        %v1738 = vunpack.c.l.b16 %v1094
        %v1739 = vunpack.c.h.b16 %v1094
        %v1740 = vunpack.c.l.b16 %v1095
        %v1741 = vunpack.c.h.b16 %v1095
        %v1742 = vunpack.c.l.b16 %v1096
        %v1743 = vunpack.c.h.b16 %v1096
        %v1744 = vunpack.c.l.b16 %v1097
        %v1745 = vunpack.c.h.b16 %v1097
        %v1746 = vunpack.c.l.b16 %v1098
        %v1747 = vunpack.c.h.b16 %v1098
        %v1748 = vunpack.c.l.b16 %v1099
        %v1749 = vunpack.c.h.b16 %v1099
        %v1750 = vunpack.c.l.b16 %v1100
        %v1751 = vunpack.c.h.b16 %v1100
        %v1752 = vunpack.c.l.b16 %v1101
        %v1753 = vunpack.c.h.b16 %v1101
        %v1754 = vunpack.c.l.b16 %v1102
        %v1755 = vunpack.c.h.b16 %v1102
        %v1756 = vunpack.c.l.b16 %v1103
        %v1757 = vunpack.c.h.b16 %v1103
        %v1758 = vunpack.c.l.b16 %v1104
        %v1759 = vunpack.c.h.b16 %v1104
        %v1760 = vunpack.c.l.b16 %v1105
        %v1761 = vunpack.c.h.b16 %v1105
        %v1762 = vunpack.c.l.b16 %v1106
        %v1763 = vunpack.c.h.b16 %v1106
        %v1764 = vunpack.c.l.b16 %v1107
        %v1765 = vunpack.c.h.b16 %v1107
        %v1766 = vunpack.c.l.b16 %v1108
        %v1767 = vunpack.c.h.b16 %v1108
        %v1768 = vunpack.c.l.b16 %v1109
        %v1769 = vunpack.c.h.b16 %v1109
        %v1770 = vunpack.c.l.b16 %v1110
        %v1771 = vunpack.c.h.b16 %v1110
        %v1772 = vunpack.c.l.b16 %v1111
        %v1773 = vunpack.c.h.b16 %v1111
        %v1774 = vunpack.c.l.b16 %v1112
        %v1775 = vunpack.c.h.b16 %v1112
        %v1776 = vunpack.c.l.b16 %v1113
        %v1777 = vunpack.c.h.b16 %v1113
        %v1778 = vunpack.c.l.b16 %v1114
        %v1779 = vunpack.c.h.b16 %v1114
        %v1780 = vunpack.c.l.b16 %v1115
        %v1781 = vunpack.c.h.b16 %v1115
        %v1782 = vunpack.c.l.b16 %v1116
        %v1783 = vunpack.c.h.b16 %v1116
        %v1784 = vunpack.c.l.b16 %v1117
        %v1785 = vunpack.c.h.b16 %v1117
        %v1786 = vunpack.c.l.b16 %v1118
        %v1787 = vunpack.c.h.b16 %v1118
        %v1788 = vunpack.c.l.b16 %v1119
        %v1789 = vunpack.c.h.b16 %v1119
        %v1790 = vunpack.c.l.b16 %v1120
        %v1791 = vunpack.c.h.b16 %v1120
        %v1792 = vunpack.c.l.b16 %v1121
        %v1793 = vunpack.c.h.b16 %v1121
        %v1794 = vunpack.c.l.b16 %v1122
        %v1795 = vunpack.c.h.b16 %v1122
        %v1796 = vunpack.c.l.b16 %v1123
        %v1797 = vunpack.c.h.b16 %v1123
        %v1798 = vunpack.c.l.b16 %v1124
        %v1799 = vunpack.c.h.b16 %v1124
        %v1800 = vunpack.c.l.b16 %v1125
        %v1801 = vunpack.c.h.b16 %v1125
        %v1802 = vunpack.c.l.b16 %v1126
        %v1803 = vunpack.c.h.b16 %v1126
        %v1804 = vunpack.c.l.b16 %v1127
        %v1805 = vunpack.c.h.b16 %v1127
        %v1806 = vunpack.c.l.b16 %v1128
        %v1807 = vunpack.c.h.b16 %v1128
        %v1808 = vunpack.c.l.b16 %v1129
        %v1809 = vunpack.c.h.b16 %v1129
        %v1810 = vunpack.c.l.b16 %v1130
        %v1811 = vunpack.c.h.b16 %v1130
        %v1812 = vunpack.c.l.b16 %v1131
        %v1813 = vunpack.c.h.b16 %v1131
        %v1814 = vunpack.c.l.b16 %v1132
        %v1815 = vunpack.c.h.b16 %v1132
        %v1816 = vunpack.c.l.b16 %v1133
        %v1817 = vunpack.c.h.b16 %v1133
        %v1818 = vunpack.c.l.b16 %v1134
        %v1819 = vunpack.c.h.b16 %v1134
        %v1820 = vunpack.c.l.b16 %v1135
        %v1821 = vunpack.c.h.b16 %v1135
        %v1822 = vunpack.c.l.b16 %v1136
        %v1823 = vunpack.c.h.b16 %v1136
        %v1824 = vunpack.c.l.b16 %v1137
        %v1825 = vunpack.c.h.b16 %v1137
        %v1826 = vunpack.c.l.b16 %v1138
        %v1827 = vunpack.c.h.b16 %v1138
        %v1828 = vunpack.c.l.b16 %v1139
        %v1829 = vunpack.c.h.b16 %v1139
        %v1830 = vunpack.c.l.b16 %v1140
        %v1831 = vunpack.c.h.b16 %v1140
        %v1832 = vunpack.c.l.b16 %v1141
        %v1833 = vunpack.c.h.b16 %v1141
        %v1834 = vunpack.c.l.b16 %v1142
        %v1835 = vunpack.c.h.b16 %v1142
        %v1836 = vunpack.c.l.b16 %v1143
        %v1837 = vunpack.c.h.b16 %v1143
        %v1838 = vunpack.c.l.b16 %v1144
        %v1839 = vunpack.c.h.b16 %v1144
        %v1840 = vunpack.c.l.b16 %v1145
        %v1841 = vunpack.c.h.b16 %v1145
        %v1842 = vunpack.c.l.b16 %v1146
        %v1843 = vunpack.c.h.b16 %v1146
        %v1844 = vunpack.c.l.b16 %v1147
        %v1845 = vunpack.c.h.b16 %v1147
        %v1846 = vunpack.c.l.b16 %v1148
        %v1847 = vunpack.c.h.b16 %v1148
        %v1848 = vunpack.c.l.b16 %v1149
        %v1849 = vunpack.c.h.b16 %v1149
        %v1850 = vunpack.c.l.b16 %v1150
        %v1851 = vunpack.c.h.b16 %v1150
        %v1852 = vunpack.c.l.b16 %v1151
        %v1853 = vunpack.c.h.b16 %v1151
        %v1854 = vunpack.c.l.b16 %v1152
        %v1855 = vunpack.c.h.b16 %v1152
        %v1856 = vunpack.c.l.b16 %v1153
        %v1857 = vunpack.c.h.b16 %v1153
        %v1858 = vunpack.c.l.b16 %v1154
        %v1859 = vunpack.c.h.b16 %v1154
        %v1860 = vunpack.c.l.b16 %v1155
        %v1861 = vunpack.c.h.b16 %v1155
        %v1862 = vunpack.c.l.b16 %v1156
        %v1863 = vunpack.c.h.b16 %v1156
        %v1864 = vunpack.c.l.b16 %v1157
        %v1865 = vunpack.c.h.b16 %v1157
        %v1866 = vunpack.c.l.b16 %v1158
        %v1867 = vunpack.c.h.b16 %v1158
        %v1868 = vunpack.c.l.b16 %v1159
        %v1869 = vunpack.c.h.b16 %v1159
        %v1870 = vunpack.c.l.b16 %v1160
        %v1871 = vunpack.c.h.b16 %v1160
        %v1872 = vunpack.c.l.b16 %v1161
        %v1873 = vunpack.c.h.b16 %v1161
        %v1874 = vunpack.c.l.b16 %v1162
        %v1875 = vunpack.c.h.b16 %v1162
        %v1876 = vunpack.c.l.b16 %v1163
        %v1877 = vunpack.c.h.b16 %v1163
        %v1878 = vunpack.c.l.b16 %v1164
        %v1879 = vunpack.c.h.b16 %v1164
        %v1880 = vunpack.c.l.b16 %v1165
        %v1881 = vunpack.c.h.b16 %v1165
        %v1882 = vunpack.c.l.b16 %v1166
        %v1883 = vunpack.c.h.b16 %v1166
        %v1884 = vunpack.c.l.b16 %v1167
        %v1885 = vunpack.c.h.b16 %v1167
        %v1886 = vunpack.c.l.b16 %v1168
        %v1887 = vunpack.c.h.b16 %v1168
        %v1888 = vunpack.c.l.b16 %v1169
        %v1889 = vunpack.c.h.b16 %v1169
        %v1890 = vunpack.c.l.b16 %v1170
        %v1891 = vunpack.c.h.b16 %v1170
        %v1892 = vunpack.c.l.b16 %v1171
        %v1893 = vunpack.c.h.b16 %v1171
        %v1894 = vunpack.c.l.b16 %v1172
        %v1895 = vunpack.c.h.b16 %v1172
        %v1896 = vunpack.c.l.b16 %v1173
        %v1897 = vunpack.c.h.b16 %v1173
        %v1898 = vunpack.c.l.b16 %v1174
        %v1899 = vunpack.c.h.b16 %v1174
        %v1900 = vunpack.c.l.b16 %v1175
        %v1901 = vunpack.c.h.b16 %v1175
        %v1902 = vunpack.c.l.b16 %v1176
        %v1903 = vunpack.c.h.b16 %v1176
        %v1904 = vunpack.c.l.b16 %v1177
        %v1905 = vunpack.c.h.b16 %v1177
        %v1906 = vunpack.c.l.b16 %v1178
        %v1907 = vunpack.c.h.b16 %v1178
        %v1908 = vunpack.c.l.b16 %v1179
        %v1909 = vunpack.c.h.b16 %v1179
        %v1910 = vunpack.c.l.b16 %v1180
        %v1911 = vunpack.c.h.b16 %v1180
        %v1912 = vunpack.c.l.b16 %v1181
        %v1913 = vunpack.c.h.b16 %v1181
        %v1914 = vunpack.c.l.b16 %v1182
        %v1915 = vunpack.c.h.b16 %v1182
        %v1916 = vunpack.c.l.b16 %v1183
        %v1917 = vunpack.c.h.b16 %v1183
        %v1918 = vunpack.c.l.b16 %v1184
        %v1919 = vunpack.c.h.b16 %v1184
        %v1920 = vunpack.c.l.b16 %v1185
        %v1921 = vunpack.c.h.b16 %v1185
        %v1922 = vunpack.c.l.b16 %v1186
        %v1923 = vunpack.c.h.b16 %v1186
        %v1924 = vunpack.c.l.b16 %v1187
        %v1925 = vunpack.c.h.b16 %v1187
        %v1926 = vunpack.c.l.b16 %v1188
        %v1927 = vunpack.c.h.b16 %v1188
        %v1928 = vunpack.c.l.b16 %v1189
        %v1929 = vunpack.c.h.b16 %v1189
        %v1930 = vunpack.c.l.b16 %v1190
        %v1931 = vunpack.c.h.b16 %v1190
        %v1932 = vunpack.c.l.b16 %v1191
        %v1933 = vunpack.c.h.b16 %v1191
        %v1934 = vunpack.c.l.b16 %v1192
        %v1935 = vunpack.c.h.b16 %v1192
        %v1936 = vunpack.c.l.b16 %v1193
        %v1937 = vunpack.c.h.b16 %v1193
        %v1938 = vunpack.c.l.b16 %v1194
        %v1939 = vunpack.c.h.b16 %v1194
        %v1940 = vunpack.c.l.b16 %v1195
        %v1941 = vunpack.c.h.b16 %v1195
        %v1942 = vunpack.c.l.b16 %v1196
        %v1943 = vunpack.c.h.b16 %v1196
        %v1944 = vunpack.c.l.b16 %v1197
        %v1945 = vunpack.c.h.b16 %v1197
        %v1946 = vunpack.c.l.b16 %v1198
        %v1947 = vunpack.c.h.b16 %v1198
        %v1948 = vunpack.c.l.b16 %v1199
        %v1949 = vunpack.c.h.b16 %v1199
        %v1950 = vunpack.c.l.b16 %v1200
        %v1951 = vunpack.c.h.b16 %v1200
        %v1952 = vunpack.c.l.b16 %v1201
        %v1953 = vunpack.c.h.b16 %v1201
        %v1954 = vunpack.c.l.b16 %v1202
        %v1955 = vunpack.c.h.b16 %v1202
        %v1956 = vunpack.c.l.b16 %v1203
        %v1957 = vunpack.c.h.b16 %v1203
        %v1958 = vunpack.c.l.b16 %v1204
        %v1959 = vunpack.c.h.b16 %v1204
        %v1960 = vunpack.c.l.b16 %v1205
        %v1961 = vunpack.c.h.b16 %v1205
        %v1962 = vunpack.c.l.b16 %v1206
        %v1963 = vunpack.c.h.b16 %v1206
        %v1964 = vunpack.c.l.b16 %v1207
        %v1965 = vunpack.c.h.b16 %v1207
        %v1966 = vunpack.c.l.b16 %v1208
        %v1967 = vunpack.c.h.b16 %v1208
        %v1968 = vunpack.c.l.b16 %v1209
        %v1969 = vunpack.c.h.b16 %v1209
        %v1970 = vunpack.c.l.b16 %v1210
        %v1971 = vunpack.c.h.b16 %v1210
        %v1972 = vunpack.c.l.b16 %v1211
        %v1973 = vunpack.c.h.b16 %v1211
        %v1974 = vunpack.c.l.b16 %v1212
        %v1975 = vunpack.c.h.b16 %v1212
        %v1976 = vunpack.c.l.b16 %v1213
        %v1977 = vunpack.c.h.b16 %v1213
        %v1978 = vunpack.c.l.b16 %v1214
        %v1979 = vunpack.c.h.b16 %v1214
        %v1980 = vunpack.c.l.b16 %v1215
        %v1981 = vunpack.c.h.b16 %v1215
        %v1982 = vunpack.c.l.b16 %v1216
        %v1983 = vunpack.c.h.b16 %v1216
        %v1984 = vunpack.c.l.b16 %v1217
        %v1985 = vunpack.c.h.b16 %v1217
        %v1986 = vunpack.c.l.b16 %v1218
        %v1987 = vunpack.c.h.b16 %v1218
        %v1988 = vunpack.c.l.b16 %v1219
        %v1989 = vunpack.c.h.b16 %v1219
        %v1990 = vunpack.c.l.b16 %v1220
        %v1991 = vunpack.c.h.b16 %v1220
        %v1992 = vunpack.c.l.b16 %v1221
        %v1993 = vunpack.c.h.b16 %v1221
        %v1994 = vunpack.c.l.b16 %v1222
        %v1995 = vunpack.c.h.b16 %v1222
        %v1996 = vunpack.c.l.b16 %v1223
        %v1997 = vunpack.c.h.b16 %v1223
        %v1998 = vunpack.c.l.b16 %v1224
        %v1999 = vunpack.c.h.b16 %v1224
        %v2000 = vunpack.c.l.b16 %v1225
        %v2001 = vunpack.c.h.b16 %v1225
        %v2002 = vunpack.c.l.b16 %v1226
        %v2003 = vunpack.c.h.b16 %v1226
        %v2004 = vunpack.c.l.b16 %v1227
        %v2005 = vunpack.c.h.b16 %v1227
        %v2006 = vunpack.c.l.b16 %v1228
        %v2007 = vunpack.c.h.b16 %v1228
        %v2008 = vunpack.c.l.b16 %v1229
        %v2009 = vunpack.c.h.b16 %v1229
        %v2010 = vunpack.c.l.b16 %v1230
        %v2011 = vunpack.c.h.b16 %v1230
        %v2012 = vunpack.c.l.b16 %v1231
        %v2013 = vunpack.c.h.b16 %v1231
        %v2014 = vunpack.c.l.b16 %v1232
        %v2015 = vunpack.c.h.b16 %v1232
        %v2016 = vunpack.c.l.b16 %v1233
        %v2017 = vunpack.c.h.b16 %v1233
        %v2018 = vunpack.c.l.b16 %v1234
        %v2019 = vunpack.c.h.b16 %v1234
        %v2020 = vunpack.c.l.b16 %v1235
        %v2021 = vunpack.c.h.b16 %v1235
        %v2022 = vunpack.c.l.b16 %v1236
        %v2023 = vunpack.c.h.b16 %v1236
        %v2024 = vunpack.c.l.b16 %v1237
        %v2025 = vunpack.c.h.b16 %v1237
        %v2026 = vunpack.c.l.b16 %v1238
        %v2027 = vunpack.c.h.b16 %v1238
        %v2028 = vunpack.c.l.b16 %v1239
        %v2029 = vunpack.c.h.b16 %v1239
        %v2030 = vunpack.c.l.b16 %v1240
        %v2031 = vunpack.c.h.b16 %v1240
        %v2032 = vunpack.c.l.b16 %v1241
        %v2033 = vunpack.c.h.b16 %v1241
        %v2034 = vunpack.c.l.b16 %v1242
        %v2035 = vunpack.c.h.b16 %v1242
        %v2036 = vunpack.c.l.b16 %v1243
        %v2037 = vunpack.c.h.b16 %v1243
        %v2038 = vunpack.c.l.b16 %v1244
        %v2039 = vunpack.c.h.b16 %v1244
        %v2040 = vunpack.c.l.b16 %v1245
        %v2041 = vunpack.c.h.b16 %v1245
        %v2042 = vunpack.c.l.b16 %v1246
        %v2043 = vunpack.c.h.b16 %v1246
        %v2044 = vunpack.c.l.b16 %v1247
        %v2045 = vunpack.c.h.b16 %v1247
        %v2046 = vunpack.c.l.b16 %v1248
        %v2047 = vunpack.c.h.b16 %v1248
        %v2048 = vunpack.c.l.b16 %v1249
        %v2049 = vunpack.c.h.b16 %v1249
        %v2050 = vunpack.c.l.b16 %v1250
        %v2051 = vunpack.c.h.b16 %v1250
        %v2052 = vunpack.c.l.b16 %v1251
        %v2053 = vunpack.c.h.b16 %v1251
        %v2054 = vunpack.c.l.b16 %v1252
        %v2055 = vunpack.c.h.b16 %v1252
        %v2056 = vunpack.c.l.b16 %v1253
        %v2057 = vunpack.c.h.b16 %v1253
        %v2058 = vunpack.c.l.b16 %v1254
        %v2059 = vunpack.c.h.b16 %v1254
        %v2060 = vunpack.c.l.b16 %v1255
        %v2061 = vunpack.c.h.b16 %v1255
        %v2062 = vunpack.c.l.b16 %v1256
        %v2063 = vunpack.c.h.b16 %v1256
        %v2064 = vunpack.c.l.b16 %v1257
        %v2065 = vunpack.c.h.b16 %v1257
        %v2066 = vunpack.c.l.b16 %v1258
        %v2067 = vunpack.c.h.b16 %v1258
        %v2068 = vunpack.c.l.b16 %v1259
        %v2069 = vunpack.c.h.b16 %v1259
        %v2070 = vunpack.c.l.b16 %v1260
        %v2071 = vunpack.c.h.b16 %v1260
        %v2072 = vunpack.c.l.b16 %v1261
        %v2073 = vunpack.c.h.b16 %v1261
        %v2074 = vunpack.c.l.b16 %v1262
        %v2075 = vunpack.c.h.b16 %v1262
        %v2076 = vunpack.c.l.b16 %v1263
        %v2077 = vunpack.c.h.b16 %v1263
        %v2078 = vunpack.c.l.b16 %v1264
        %v2079 = vunpack.c.h.b16 %v1264
        %v2080 = vunpack.c.l.b16 %v1265
        %v2081 = vunpack.c.h.b16 %v1265
        %v2082 = vunpack.c.l.b16 %v1266
        %v2083 = vunpack.c.h.b16 %v1266
        %v2084 = vunpack.c.l.b16 %v1267
        %v2085 = vunpack.c.h.b16 %v1267
        %v2086 = vunpack.c.l.b16 %v1268
        %v2087 = vunpack.c.h.b16 %v1268
        %v2088 = vunpack.c.l.b16 %v1269
        %v2089 = vunpack.c.h.b16 %v1269
        %v2090 = vunpack.c.l.b16 %v1270
        %v2091 = vunpack.c.h.b16 %v1270
        %v2092 = vunpack.c.l.b16 %v1271
        %v2093 = vunpack.c.h.b16 %v1271
        %v2094 = vunpack.c.l.b16 %v1272
        %v2095 = vunpack.c.h.b16 %v1272
        %v2096 = vunpack.c.l.b16 %v1273
        %v2097 = vunpack.c.h.b16 %v1273
        %v2098 = vunpack.c.l.b16 %v1274
        %v2099 = vunpack.c.h.b16 %v1274
        %v2100 = vunpack.c.l.b16 %v1275
        %v2101 = vunpack.c.h.b16 %v1275
        %v2102 = vunpack.c.l.b16 %v1276
        %v2103 = vunpack.c.h.b16 %v1276
        %v2104 = vunpack.c.l.b16 %v1277
        %v2105 = vunpack.c.h.b16 %v1277
        %v2106 = vunpack.c.l.b16 %v1278
        %v2107 = vunpack.c.h.b16 %v1278
        %v2108 = vunpack.c.l.b16 %v1279
        %v2109 = vunpack.c.h.b16 %v1279
        %v2110 = vunpack.c.l.b16 %v1280
        %v2111 = vunpack.c.h.b16 %v1280
        %v2112 = vunpack.c.l.b16 %v1281
        %v2113 = vunpack.c.h.b16 %v1281
        %v2114 = vunpack.c.l.b16 %v1282
        %v2115 = vunpack.c.h.b16 %v1282
        %v2116 = vunpack.c.l.b16 %v1283
        %v2117 = vunpack.c.h.b16 %v1283
        %v2118 = vunpack.c.l.b16 %v1284
        %v2119 = vunpack.c.h.b16 %v1284
        %v2120 = vunpack.c.l.b16 %v1285
        %v2121 = vunpack.c.h.b16 %v1285
        %v2122 = vunpack.c.l.b16 %v1286
        %v2123 = vunpack.c.h.b16 %v1286
        %v2124 = vunpack.c.l.b16 %v1287
        %v2125 = vunpack.c.h.b16 %v1287
        %v2126 = vunpack.c.l.b16 %v1288
        %v2127 = vunpack.c.h.b16 %v1288
        %v2128 = vunpack.c.l.b16 %v1289
        %v2129 = vunpack.c.h.b16 %v1289
        %v2130 = vunpack.c.l.b16 %v1290
        %v2131 = vunpack.c.h.b16 %v1290
        %v2132 = vunpack.c.l.b16 %v1291
        %v2133 = vunpack.c.h.b16 %v1291
        %v2134 = vunpack.c.l.b16 %v1292
        %v2135 = vunpack.c.h.b16 %v1292
        %v2136 = vunpack.c.l.b16 %v1293
        %v2137 = vunpack.c.h.b16 %v1293
        %v2138 = vunpack.c.l.b16 %v1294
        %v2139 = vunpack.c.h.b16 %v1294
        %v2140 = vunpack.c.l.b16 %v1295
        %v2141 = vunpack.c.h.b16 %v1295
        %v2142 = vunpack.c.l.b16 %v1296
        %v2143 = vunpack.c.h.b16 %v1296
        %v2144 = vunpack.c.l.b16 %v1297
        %v2145 = vunpack.c.h.b16 %v1297
        %v2146 = vunpack.c.l.b16 %v1298
        %v2147 = vunpack.c.h.b16 %v1298
        %v2148 = vunpack.c.l.b16 %v1299
        %v2149 = vunpack.c.h.b16 %v1299
        %v2150 = vunpack.c.l.b16 %v1300
        %v2151 = vunpack.c.h.b16 %v1300
        %v2152 = vunpack.c.l.b16 %v1301
        %v2153 = vunpack.c.h.b16 %v1301
        %v2154 = vunpack.c.l.b16 %v1302
        %v2155 = vunpack.c.h.b16 %v1302
        %v2156 = vunpack.c.l.b16 %v1303
        %v2157 = vunpack.c.h.b16 %v1303
        %v2158 = vunpack.c.l.b16 %v1304
        %v2159 = vunpack.c.h.b16 %v1304
        %v2160 = vunpack.c.l.b16 %v1305
        %v2161 = vunpack.c.h.b16 %v1305
        %v2162 = vunpack.c.l.b16 %v1306
        %v2163 = vunpack.c.h.b16 %v1306
        %v2164 = vunpack.c.l.b16 %v1307
        %v2165 = vunpack.c.h.b16 %v1307
        %v2166 = vunpack.c.l.b16 %v1308
        %v2167 = vunpack.c.h.b16 %v1308
        %v2168 = vunpack.c.l.b16 %v1309
        %v2169 = vunpack.c.h.b16 %v1309
        %v2170 = vunpack.c.l.b16 %v1310
        %v2171 = vunpack.c.h.b16 %v1310
        %v2172 = vunpack.c.l.b16 %v1311
        %v2173 = vunpack.c.h.b16 %v1311
        %v2174 = vunpack.c.l.b16 %v1312
        %v2175 = vunpack.c.h.b16 %v1312
        %v2176 = vunpack.c.l.b16 %v1313
        %v2177 = vunpack.c.h.b16 %v1313
        %v2178 = vunpack.c.l.b16 %v1314
        %v2179 = vunpack.c.h.b16 %v1314
        %v2180 = vunpack.c.l.b16 %v1315
        %v2181 = vunpack.c.h.b16 %v1315
        %v2182 = vunpack.c.l.b16 %v1316
        %v2183 = vunpack.c.h.b16 %v1316
        %v2184 = vunpack.c.l.b16 %v1317
        %v2185 = vunpack.c.h.b16 %v1317
        %v2186 = vunpack.c.l.b16 %v1318
        %v2187 = vunpack.c.h.b16 %v1318
        %v2188 = vunpack.c.l.b16 %v1319
        %v2189 = vunpack.c.h.b16 %v1319
        %v2190 = vunpack.c.l.b16 %v1320
        %v2191 = vunpack.c.h.b16 %v1320
        %v2192 = vunpack.c.l.b16 %v1321
        %v2193 = vunpack.c.h.b16 %v1321
        %v2194 = vpack.c.b16 %v1716, %v1714
        %v2195 = vpack.c.b16 %v1717, %v1715
        %v2196 = vpack.c.b16 %v1720, %v1718
        %v2197 = vpack.c.b16 %v1721, %v1719
        %v2198 = vpack.c.b16 %v1724, %v1722
        %v2199 = vpack.c.b16 %v1725, %v1723
        %v2200 = vpack.c.b16 %v1728, %v1726
        %v2201 = vpack.c.b16 %v1729, %v1727
        %v2202 = vpack.c.b16 %v1732, %v1730
        %v2203 = vpack.c.b16 %v1733, %v1731
        %v2204 = vpack.c.b16 %v1736, %v1734
        %v2205 = vpack.c.b16 %v1737, %v1735
        %v2206 = vpack.c.b16 %v1740, %v1738
        %v2207 = vpack.c.b16 %v1741, %v1739
        %v2208 = vpack.c.b16 %v1744, %v1742
        %v2209 = vpack.c.b16 %v1745, %v1743
        %v2210 = vpack.c.b16 %v1748, %v1746
        %v2211 = vpack.c.b16 %v1749, %v1747
        %v2212 = vpack.c.b16 %v1752, %v1750
        %v2213 = vpack.c.b16 %v1753, %v1751
        %v2214 = vpack.c.b16 %v1756, %v1754
        %v2215 = vpack.c.b16 %v1757, %v1755
        %v2216 = vpack.c.b16 %v1760, %v1758
        %v2217 = vpack.c.b16 %v1761, %v1759
        %v2218 = vpack.c.b16 %v1764, %v1762
        %v2219 = vpack.c.b16 %v1765, %v1763
        %v2220 = vpack.c.b16 %v1768, %v1766
        %v2221 = vpack.c.b16 %v1769, %v1767
        %v2222 = vpack.c.b16 %v1772, %v1770
        %v2223 = vpack.c.b16 %v1773, %v1771
        %v2224 = vpack.c.b16 %v1776, %v1774
        %v2225 = vpack.c.b16 %v1777, %v1775
        %v2226 = vpack.c.b16 %v1780, %v1778
        %v2227 = vpack.c.b16 %v1781, %v1779
        %v2228 = vpack.c.b16 %v1784, %v1782
        %v2229 = vpack.c.b16 %v1785, %v1783
        %v2230 = vpack.c.b16 %v1788, %v1786
        %v2231 = vpack.c.b16 %v1789, %v1787
        %v2232 = vpack.c.b16 %v1792, %v1790
        %v2233 = vpack.c.b16 %v1793, %v1791
        %v2234 = vpack.c.b16 %v1796, %v1794
        %v2235 = vpack.c.b16 %v1797, %v1795
        %v2236 = vpack.c.b16 %v1800, %v1798
        %v2237 = vpack.c.b16 %v1801, %v1799
        %v2238 = vpack.c.b16 %v1804, %v1802
        %v2239 = vpack.c.b16 %v1805, %v1803
        %v2240 = vpack.c.b16 %v1808, %v1806
        %v2241 = vpack.c.b16 %v1809, %v1807
        %v2242 = vpack.c.b16 %v1812, %v1810
        %v2243 = vpack.c.b16 %v1813, %v1811
        %v2244 = vpack.c.b16 %v1816, %v1814
        %v2245 = vpack.c.b16 %v1817, %v1815
        %v2246 = vpack.c.b16 %v1820, %v1818
        %v2247 = vpack.c.b16 %v1821, %v1819
        %v2248 = vpack.c.b16 %v1824, %v1822
        %v2249 = vpack.c.b16 %v1825, %v1823
        %v2250 = vpack.c.b16 %v1828, %v1826
        %v2251 = vpack.c.b16 %v1829, %v1827
        %v2252 = vpack.c.b16 %v1832, %v1830
        %v2253 = vpack.c.b16 %v1833, %v1831
        %v2254 = vpack.c.b16 %v1836, %v1834
        %v2255 = vpack.c.b16 %v1837, %v1835
        %v2256 = vpack.c.b16 %v1840, %v1838
        %v2257 = vpack.c.b16 %v1841, %v1839
        %v2258 = vpack.c.b16 %v1844, %v1842
        %v2259 = vpack.c.b16 %v1845, %v1843
        %v2260 = vpack.c.b16 %v1848, %v1846
        %v2261 = vpack.c.b16 %v1849, %v1847
        %v2262 = vpack.c.b16 %v1852, %v1850
        %v2263 = vpack.c.b16 %v1853, %v1851
        %v2264 = vpack.c.b16 %v1856, %v1854
        %v2265 = vpack.c.b16 %v1857, %v1855
        %v2266 = vpack.c.b16 %v1860, %v1858
        %v2267 = vpack.c.b16 %v1861, %v1859
        %v2268 = vpack.c.b16 %v1864, %v1862
        %v2269 = vpack.c.b16 %v1865, %v1863
        %v2270 = vpack.c.b16 %v1868, %v1866
        %v2271 = vpack.c.b16 %v1869, %v1867
        %v2272 = vpack.c.b16 %v1872, %v1870
        %v2273 = vpack.c.b16 %v1873, %v1871
        %v2274 = vpack.c.b16 %v1876, %v1874
        %v2275 = vpack.c.b16 %v1877, %v1875
        %v2276 = vpack.c.b16 %v1880, %v1878
        %v2277 = vpack.c.b16 %v1881, %v1879
        %v2278 = vpack.c.b16 %v1884, %v1882
        %v2279 = vpack.c.b16 %v1885, %v1883
        %v2280 = vpack.c.b16 %v1888, %v1886
        %v2281 = vpack.c.b16 %v1889, %v1887
        %v2282 = vpack.c.b16 %v1892, %v1890
        %v2283 = vpack.c.b16 %v1893, %v1891
        %v2284 = vpack.c.b16 %v1896, %v1894
        %v2285 = vpack.c.b16 %v1897, %v1895
        %v2286 = vpack.c.b16 %v1900, %v1898
        %v2287 = vpack.c.b16 %v1901, %v1899
        %v2288 = vpack.c.b16 %v1904, %v1902
        %v2289 = vpack.c.b16 %v1905, %v1903
        %v2290 = vpack.c.b16 %v1908, %v1906
        %v2291 = vpack.c.b16 %v1909, %v1907
        %v2292 = vpack.c.b16 %v1912, %v1910
        %v2293 = vpack.c.b16 %v1913, %v1911
        %v2294 = vpack.c.b16 %v1916, %v1914
        %v2295 = vpack.c.b16 %v1917, %v1915
        %v2296 = vpack.c.b16 %v1920, %v1918
        %v2297 = vpack.c.b16 %v1921, %v1919
        %v2298 = vpack.c.b16 %v1924, %v1922
        %v2299 = vpack.c.b16 %v1925, %v1923
        %v2300 = vpack.c.b16 %v1928, %v1926
        %v2301 = vpack.c.b16 %v1929, %v1927
        %v2302 = vpack.c.b16 %v1932, %v1930
        %v2303 = vpack.c.b16 %v1933, %v1931
        %v2304 = vpack.c.b16 %v1936, %v1934
        %v2305 = vpack.c.b16 %v1937, %v1935
        %v2306 = vpack.c.b16 %v1940, %v1938
        %v2307 = vpack.c.b16 %v1941, %v1939
        %v2308 = vpack.c.b16 %v1944, %v1942
        %v2309 = vpack.c.b16 %v1945, %v1943
        %v2310 = vpack.c.b16 %v1948, %v1946
        %v2311 = vpack.c.b16 %v1949, %v1947
        %v2312 = vpack.c.b16 %v1952, %v1950
        %v2313 = vpack.c.b16 %v1953, %v1951
        %v2314 = vpack.c.b16 %v1956, %v1954
        %v2315 = vpack.c.b16 %v1957, %v1955
        %v2316 = vpack.c.b16 %v1960, %v1958
        %v2317 = vpack.c.b16 %v1961, %v1959
        %v2318 = vpack.c.b16 %v1964, %v1962
        %v2319 = vpack.c.b16 %v1965, %v1963
        %v2320 = vpack.c.b16 %v1968, %v1966
        %v2321 = vpack.c.b16 %v1969, %v1967
        %v2322 = vpack.c.b16 %v1972, %v1970
        %v2323 = vpack.c.b16 %v1973, %v1971
        %v2324 = vpack.c.b16 %v1976, %v1974
        %v2325 = vpack.c.b16 %v1977, %v1975
        %v2326 = vpack.c.b16 %v1980, %v1978
        %v2327 = vpack.c.b16 %v1981, %v1979
        %v2328 = vpack.c.b16 %v1984, %v1982
        %v2329 = vpack.c.b16 %v1985, %v1983
        %v2330 = vpack.c.b16 %v1988, %v1986
        %v2331 = vpack.c.b16 %v1989, %v1987
        %v2332 = vpack.c.b16 %v1992, %v1990
        %v2333 = vpack.c.b16 %v1993, %v1991
        %v2334 = vpack.c.b16 %v1996, %v1994
        %v2335 = vpack.c.b16 %v1997, %v1995
        %v2336 = vpack.c.b16 %v2000, %v1998
        %v2337 = vpack.c.b16 %v2001, %v1999
        %v2338 = vpack.c.b16 %v2004, %v2002
        %v2339 = vpack.c.b16 %v2005, %v2003
        %v2340 = vpack.c.b16 %v2008, %v2006
        %v2341 = vpack.c.b16 %v2009, %v2007
        %v2342 = vpack.c.b16 %v2012, %v2010
        %v2343 = vpack.c.b16 %v2013, %v2011
        %v2344 = vpack.c.b16 %v2016, %v2014
        %v2345 = vpack.c.b16 %v2017, %v2015
        %v2346 = vpack.c.b16 %v2020, %v2018
        %v2347 = vpack.c.b16 %v2021, %v2019
        %v2348 = vpack.c.b16 %v2024, %v2022
        %v2349 = vpack.c.b16 %v2025, %v2023
        %v2350 = vpack.c.b16 %v2028, %v2026
        %v2351 = vpack.c.b16 %v2029, %v2027
        %v2352 = vpack.c.b16 %v2032, %v2030
        %v2353 = vpack.c.b16 %v2033, %v2031
        %v2354 = vpack.c.b16 %v2036, %v2034
        %v2355 = vpack.c.b16 %v2037, %v2035
        %v2356 = vpack.c.b16 %v2040, %v2038
        %v2357 = vpack.c.b16 %v2041, %v2039
        %v2358 = vpack.c.b16 %v2044, %v2042
        %v2359 = vpack.c.b16 %v2045, %v2043
        %v2360 = vpack.c.b16 %v2048, %v2046
        %v2361 = vpack.c.b16 %v2049, %v2047
        %v2362 = vpack.c.b16 %v2052, %v2050
        %v2363 = vpack.c.b16 %v2053, %v2051
        %v2364 = vpack.c.b16 %v2056, %v2054
        %v2365 = vpack.c.b16 %v2057, %v2055
        %v2366 = vpack.c.b16 %v2060, %v2058
        %v2367 = vpack.c.b16 %v2061, %v2059
        %v2368 = vpack.c.b16 %v2064, %v2062
        %v2369 = vpack.c.b16 %v2065, %v2063
        %v2370 = vpack.c.b16 %v2068, %v2066
        %v2371 = vpack.c.b16 %v2069, %v2067
        %v2372 = vpack.c.b16 %v2072, %v2070
        %v2373 = vpack.c.b16 %v2073, %v2071
        %v2374 = vpack.c.b16 %v2076, %v2074
        %v2375 = vpack.c.b16 %v2077, %v2075
        %v2376 = vpack.c.b16 %v2080, %v2078
        %v2377 = vpack.c.b16 %v2081, %v2079
        %v2378 = vpack.c.b16 %v2084, %v2082
        %v2379 = vpack.c.b16 %v2085, %v2083
        %v2380 = vpack.c.b16 %v2088, %v2086
        %v2381 = vpack.c.b16 %v2089, %v2087
        %v2382 = vpack.c.b16 %v2092, %v2090
        %v2383 = vpack.c.b16 %v2093, %v2091
        %v2384 = vpack.c.b16 %v2096, %v2094
        %v2385 = vpack.c.b16 %v2097, %v2095
        %v2386 = vpack.c.b16 %v2100, %v2098
        %v2387 = vpack.c.b16 %v2101, %v2099
        %v2388 = vpack.c.b16 %v2104, %v2102
        %v2389 = vpack.c.b16 %v2105, %v2103
        %v2390 = vpack.c.b16 %v2108, %v2106
        %v2391 = vpack.c.b16 %v2109, %v2107
        %v2392 = vpack.c.b16 %v2112, %v2110
        %v2393 = vpack.c.b16 %v2113, %v2111
        %v2394 = vpack.c.b16 %v2116, %v2114
        %v2395 = vpack.c.b16 %v2117, %v2115
        %v2396 = vpack.c.b16 %v2120, %v2118
        %v2397 = vpack.c.b16 %v2121, %v2119
        %v2398 = vpack.c.b16 %v2124, %v2122
        %v2399 = vpack.c.b16 %v2125, %v2123
        %v2400 = vpack.c.b16 %v2128, %v2126
        %v2401 = vpack.c.b16 %v2129, %v2127
        %v2402 = vpack.c.b16 %v2132, %v2130
        %v2403 = vpack.c.b16 %v2133, %v2131
        %v2404 = vpack.c.b16 %v2136, %v2134
        %v2405 = vpack.c.b16 %v2137, %v2135
        %v2406 = vpack.c.b16 %v2140, %v2138
        %v2407 = vpack.c.b16 %v2141, %v2139
        %v2408 = vpack.c.b16 %v2144, %v2142
        %v2409 = vpack.c.b16 %v2145, %v2143
        %v2410 = vpack.c.b16 %v2148, %v2146
        %v2411 = vpack.c.b16 %v2149, %v2147
        %v2412 = vpack.c.b16 %v2152, %v2150
        %v2413 = vpack.c.b16 %v2153, %v2151
        %v2414 = vpack.c.b16 %v2156, %v2154
        %v2415 = vpack.c.b16 %v2157, %v2155
        %v2416 = vpack.c.b16 %v2160, %v2158
        %v2417 = vpack.c.b16 %v2161, %v2159
        %v2418 = vpack.c.b16 %v2164, %v2162
        %v2419 = vpack.c.b16 %v2165, %v2163
        %v2420 = vpack.c.b16 %v2168, %v2166
        %v2421 = vpack.c.b16 %v2169, %v2167
        %v2422 = vpack.c.b16 %v2172, %v2170
        %v2423 = vpack.c.b16 %v2173, %v2171
        %v2424 = vpack.c.b16 %v2176, %v2174
        %v2425 = vpack.c.b16 %v2177, %v2175
        %v2426 = vpack.c.b16 %v2180, %v2178
        %v2427 = vpack.c.b16 %v2181, %v2179
        %v2428 = vpack.c.b16 %v2184, %v2182
        %v2429 = vpack.c.b16 %v2185, %v2183
        %v2430 = vpack.c.b16 %v2188, %v2186
        %v2431 = vpack.c.b16 %v2189, %v2187
        %v2432 = vpack.c.b16 %v2192, %v2190
        %v2433 = vpack.c.b16 %v2193, %v2191
        %2674 = vmatprep.subr.bf16.mxu0 %v2209
        %2675 = vmatpush1.bf16.msra.mxu0 %v2208
        %2676 = vmatprep.subr.bf16.mxu0 %v2207
        %2677 = vmatpush1.bf16.msra.mxu0 %v2206
        %2678 = vmatprep.subr.bf16.mxu0 %v2205
        %2679 = vmatpush1.bf16.msra.mxu0 %v2204
        %2680 = vmatprep.subr.bf16.mxu0 %v2203
        %2681 = vmatpush1.bf16.msra.mxu0 %v2202
        %2682 = vmatprep.subr.bf16.mxu0 %v2201
        %2683 = vmatpush1.bf16.msra.mxu0 %v2200
        %2684 = vmatprep.subr.bf16.mxu0 %v2199
        %2685 = vmatpush1.bf16.msra.mxu0 %v2198
        %2686 = vmatprep.subr.bf16.mxu0 %v2197
        %2687 = vmatpush1.bf16.msra.mxu0 %v2196
        %2688 = vmatprep.subr.bf16.mxu0 %v2195
        %2689 = vmatpush1.bf16.msra.mxu0 %v2194
        %2690 = vmatprep.subr.bf16.mxu0 %v2225
        %2691 = vmatpush2.bf16.msra.mxu0 %v2224
        %2692 = vmatprep.subr.bf16.mxu0 %v2223
        %2693 = vmatpush2.bf16.msra.mxu0 %v2222
        %2694 = vmatprep.subr.bf16.mxu0 %v2221
        %2695 = vmatpush2.bf16.msra.mxu0 %v2220
        %2696 = vmatprep.subr.bf16.mxu0 %v2219
        %2697 = vmatpush2.bf16.msra.mxu0 %v2218
        %2698 = vmatprep.subr.bf16.mxu0 %v2217
        %2699 = vmatpush2.bf16.msra.mxu0 %v2216
        %2700 = vmatprep.subr.bf16.mxu0 %v2215
        %2701 = vmatpush2.bf16.msra.mxu0 %v2214
        %2702 = vmatprep.subr.bf16.mxu0 %v2213
        %2703 = vmatpush2.bf16.msra.mxu0 %v2212
        %2704 = vmatprep.subr.bf16.mxu0 %v2211
        %2705 = vmatpush2.bf16.msra.mxu0 %v2210
        %2706 = vmatprep.mubr.bf16.mxu0 %v1415
        %2707 = vmatmul.mubr.bf16.gmra.mxu0 %v1414
        %v2708 = vpop.f32.mrf.mxu0
        %v2709 = vadd.f32 0.0, %v2708
        %v2710 = vpop.f32.mrf.mxu0
        %v2711 = vadd.f32 0.0, %v2710
        %v2712 = vpop.f32.mrf.mxu0
        %v2713 = vadd.f32 0.0, %v2712
        %v2714 = vpop.f32.mrf.mxu0
        %v2715 = vadd.f32 0.0, %v2714
        %2716 = vmatprep.mubr.bf16.mxu0 %v1430
        %2717 = vmatmul.mubr.bf16.gmra.mxu0 %v1429
        %v2718 = vpop.f32.mrf.mxu0
        %v2719 = vadd.f32 0.0, %v2718
        %v2720 = vpop.f32.mrf.mxu0
        %v2721 = vadd.f32 0.0, %v2720
        %v2722 = vpop.f32.mrf.mxu0
        %v2723 = vadd.f32 0.0, %v2722
        %v2724 = vpop.f32.mrf.mxu0
        %2725 = vdwg.mxu0
        %2726 = vmatprep.subr.bf16.mxu0 %v2241
        %2727 = vmatpush1.bf16.msra.mxu0 %v2240
        %2728 = vmatprep.subr.bf16.mxu0 %v2239
        %2729 = vmatpush1.bf16.msra.mxu0 %v2238
        %2730 = vmatprep.subr.bf16.mxu0 %v2237
        %2731 = vmatpush1.bf16.msra.mxu0 %v2236
        %2732 = vmatprep.subr.bf16.mxu0 %v2235
        %2733 = vmatpush1.bf16.msra.mxu0 %v2234
        %2734 = vmatprep.subr.bf16.mxu0 %v2233
        %2735 = vmatpush1.bf16.msra.mxu0 %v2232
        %2736 = vmatprep.subr.bf16.mxu0 %v2231
        %2737 = vmatpush1.bf16.msra.mxu0 %v2230
        %2738 = vmatprep.subr.bf16.mxu0 %v2229
        %2739 = vmatpush1.bf16.msra.mxu0 %v2228
        %2740 = vmatprep.subr.bf16.mxu0 %v2227
        %2741 = vmatpush1.bf16.msra.mxu0 %v2226
        %2742 = vmatprep.subr.bf16.mxu0 %v2257
        %2743 = vmatpush2.bf16.msra.mxu0 %v2256
        %2744 = vmatprep.subr.bf16.mxu0 %v2255
        %2745 = vmatpush2.bf16.msra.mxu0 %v2254
        %2746 = vmatprep.subr.bf16.mxu0 %v2253
        %2747 = vmatpush2.bf16.msra.mxu0 %v2252
        %2748 = vmatprep.subr.bf16.mxu0 %v2251
        %2749 = vmatpush2.bf16.msra.mxu0 %v2250
        %2750 = vmatprep.subr.bf16.mxu0 %v2249
        %2751 = vmatpush2.bf16.msra.mxu0 %v2248
        %2752 = vmatprep.subr.bf16.mxu0 %v2247
        %2753 = vmatpush2.bf16.msra.mxu0 %v2246
        %2754 = vmatprep.subr.bf16.mxu0 %v2245
        %2755 = vmatpush2.bf16.msra.mxu0 %v2244
        %2756 = vmatprep.subr.bf16.mxu0 %v2243
        %2757 = vmatpush2.bf16.msra.mxu0 %v2242
        %2758 = vmatprep.mubr.bf16.mxu0 %v1417
        %2759 = vmatmul.mubr.bf16.gmra.mxu0 %v1416
        %v2760 = vpop.f32.mrf.mxu0
        %v2761 = vadd.f32 %v2709, %v2760
        %v2762 = vpop.f32.mrf.mxu0
        %v2763 = vadd.f32 %v2711, %v2762
        %v2764 = vpop.f32.mrf.mxu0
        %v2765 = vadd.f32 %v2713, %v2764
        %v2766 = vpop.f32.mrf.mxu0
        %v2767 = vadd.f32 %v2715, %v2766
        %2768 = vmatprep.mubr.bf16.mxu0 %v1432
        %2769 = vmatmul.mubr.bf16.gmra.mxu0 %v1431
        %v2770 = vpop.f32.mrf.mxu0
        %v2771 = vadd.f32 %v2719, %v2770
        %v2772 = vpop.f32.mrf.mxu0
        %v2773 = vadd.f32 %v2721, %v2772
        %v2774 = vpop.f32.mrf.mxu0
        %v2775 = vadd.f32 %v2723, %v2774
        %v2776 = vpop.f32.mrf.mxu0
        %2777 = vdwg.mxu0
        %2778 = vmatprep.subr.bf16.mxu0 %v2273
        %2779 = vmatpush1.bf16.msra.mxu0 %v2272
        %2780 = vmatprep.subr.bf16.mxu0 %v2271
        %2781 = vmatpush1.bf16.msra.mxu0 %v2270
        %2782 = vmatprep.subr.bf16.mxu0 %v2269
        %2783 = vmatpush1.bf16.msra.mxu0 %v2268
        %2784 = vmatprep.subr.bf16.mxu0 %v2267
        %2785 = vmatpush1.bf16.msra.mxu0 %v2266
        %2786 = vmatprep.subr.bf16.mxu0 %v2265
        %2787 = vmatpush1.bf16.msra.mxu0 %v2264
        %2788 = vmatprep.subr.bf16.mxu0 %v2263
        %2789 = vmatpush1.bf16.msra.mxu0 %v2262
        %2790 = vmatprep.subr.bf16.mxu0 %v2261
        %2791 = vmatpush1.bf16.msra.mxu0 %v2260
        %2792 = vmatprep.subr.bf16.mxu0 %v2259
        %2793 = vmatpush1.bf16.msra.mxu0 %v2258
        %2794 = vmatprep.subr.bf16.mxu0 %v2289
        %2795 = vmatpush2.bf16.msra.mxu0 %v2288
        %2796 = vmatprep.subr.bf16.mxu0 %v2287
        %2797 = vmatpush2.bf16.msra.mxu0 %v2286
        %2798 = vmatprep.subr.bf16.mxu0 %v2285
        %2799 = vmatpush2.bf16.msra.mxu0 %v2284
        %2800 = vmatprep.subr.bf16.mxu0 %v2283
        %2801 = vmatpush2.bf16.msra.mxu0 %v2282
        %2802 = vmatprep.subr.bf16.mxu0 %v2281
        %2803 = vmatpush2.bf16.msra.mxu0 %v2280
        %2804 = vmatprep.subr.bf16.mxu0 %v2279
        %2805 = vmatpush2.bf16.msra.mxu0 %v2278
        %2806 = vmatprep.subr.bf16.mxu0 %v2277
        %2807 = vmatpush2.bf16.msra.mxu0 %v2276
        %2808 = vmatprep.subr.bf16.mxu0 %v2275
        %2809 = vmatpush2.bf16.msra.mxu0 %v2274
        %2810 = vmatprep.mubr.bf16.mxu0 %v1419
        %2811 = vmatmul.mubr.bf16.gmra.mxu0 %v1418
        %v2812 = vpop.f32.mrf.mxu0
        %v2813 = vadd.f32 %v2761, %v2812
        %v2814 = vpop.f32.mrf.mxu0
        %v2815 = vadd.f32 %v2763, %v2814
        %v2816 = vpop.f32.mrf.mxu0
        %v2817 = vadd.f32 %v2765, %v2816
        %v2818 = vpop.f32.mrf.mxu0
        %v2819 = vadd.f32 %v2767, %v2818
        %2820 = vmatprep.mubr.bf16.mxu0 %v1434
        %2821 = vmatmul.mubr.bf16.gmra.mxu0 %v1433
        %v2822 = vpop.f32.mrf.mxu0
        %v2823 = vadd.f32 %v2771, %v2822
        %v2824 = vpop.f32.mrf.mxu0
        %v2825 = vadd.f32 %v2773, %v2824
        %v2826 = vpop.f32.mrf.mxu0
        %v2827 = vadd.f32 %v2775, %v2826
        %v2828 = vpop.f32.mrf.mxu0
        %2829 = vdwg.mxu0
        %2830 = vmatprep.subr.bf16.mxu0 %v2305
        %2831 = vmatpush1.bf16.msra.mxu0 %v2304
        %2832 = vmatprep.subr.bf16.mxu0 %v2303
        %2833 = vmatpush1.bf16.msra.mxu0 %v2302
        %2834 = vmatprep.subr.bf16.mxu0 %v2301
        %2835 = vmatpush1.bf16.msra.mxu0 %v2300
        %2836 = vmatprep.subr.bf16.mxu0 %v2299
        %2837 = vmatpush1.bf16.msra.mxu0 %v2298
        %2838 = vmatprep.subr.bf16.mxu0 %v2297
        %2839 = vmatpush1.bf16.msra.mxu0 %v2296
        %2840 = vmatprep.subr.bf16.mxu0 %v2295
        %2841 = vmatpush1.bf16.msra.mxu0 %v2294
        %2842 = vmatprep.subr.bf16.mxu0 %v2293
        %2843 = vmatpush1.bf16.msra.mxu0 %v2292
        %2844 = vmatprep.subr.bf16.mxu0 %v2291
        %2845 = vmatpush1.bf16.msra.mxu0 %v2290
        %2846 = vmatprep.subr.bf16.mxu0 %v2321
        %2847 = vmatpush2.bf16.msra.mxu0 %v2320
        %2848 = vmatprep.subr.bf16.mxu0 %v2319
        %2849 = vmatpush2.bf16.msra.mxu0 %v2318
        %2850 = vmatprep.subr.bf16.mxu0 %v2317
        %2851 = vmatpush2.bf16.msra.mxu0 %v2316
        %2852 = vmatprep.subr.bf16.mxu0 %v2315
        %2853 = vmatpush2.bf16.msra.mxu0 %v2314
        %2854 = vmatprep.subr.bf16.mxu0 %v2313
        %2855 = vmatpush2.bf16.msra.mxu0 %v2312
        %2856 = vmatprep.subr.bf16.mxu0 %v2311
        %2857 = vmatpush2.bf16.msra.mxu0 %v2310
        %2858 = vmatprep.subr.bf16.mxu0 %v2309
        %2859 = vmatpush2.bf16.msra.mxu0 %v2308
        %2860 = vmatprep.subr.bf16.mxu0 %v2307
        %2861 = vmatpush2.bf16.msra.mxu0 %v2306
        %2862 = vmatprep.mubr.bf16.mxu0 %v1421
        %2863 = vmatmul.mubr.bf16.gmra.mxu0 %v1420
        %v2864 = vpop.f32.mrf.mxu0
        %v2865 = vadd.f32 %v2813, %v2864
        %v2866 = vpop.f32.mrf.mxu0
        %v2867 = vadd.f32 %v2815, %v2866
        %v2868 = vpop.f32.mrf.mxu0
        %v2869 = vadd.f32 %v2817, %v2868
        %v2870 = vpop.f32.mrf.mxu0
        %v2871 = vadd.f32 %v2819, %v2870
        %2872 = vmatprep.mubr.bf16.mxu0 %v1436
        %2873 = vmatmul.mubr.bf16.gmra.mxu0 %v1435
        %v2874 = vpop.f32.mrf.mxu0
        %v2875 = vadd.f32 %v2823, %v2874
        %v2876 = vpop.f32.mrf.mxu0
        %v2877 = vadd.f32 %v2825, %v2876
        %v2878 = vpop.f32.mrf.mxu0
        %v2879 = vadd.f32 %v2827, %v2878
        %v2880 = vpop.f32.mrf.mxu0
        %2881 = vdwg.mxu0
        %2882 = vmatprep.subr.bf16.mxu0 %v2337
        %2883 = vmatpush1.bf16.msra.mxu0 %v2336
        %2884 = vmatprep.subr.bf16.mxu0 %v2335
        %2885 = vmatpush1.bf16.msra.mxu0 %v2334
        %2886 = vmatprep.subr.bf16.mxu0 %v2333
        %2887 = vmatpush1.bf16.msra.mxu0 %v2332
        %2888 = vmatprep.subr.bf16.mxu0 %v2331
        %2889 = vmatpush1.bf16.msra.mxu0 %v2330
        %2890 = vmatprep.subr.bf16.mxu0 %v2329
        %2891 = vmatpush1.bf16.msra.mxu0 %v2328
        %2892 = vmatprep.subr.bf16.mxu0 %v2327
        %2893 = vmatpush1.bf16.msra.mxu0 %v2326
        %2894 = vmatprep.subr.bf16.mxu0 %v2325
        %2895 = vmatpush1.bf16.msra.mxu0 %v2324
        %2896 = vmatprep.subr.bf16.mxu0 %v2323
        %2897 = vmatpush1.bf16.msra.mxu0 %v2322
        %2898 = vmatprep.subr.bf16.mxu0 %v2353
        %2899 = vmatpush2.bf16.msra.mxu0 %v2352
        %2900 = vmatprep.subr.bf16.mxu0 %v2351
        %2901 = vmatpush2.bf16.msra.mxu0 %v2350
        %2902 = vmatprep.subr.bf16.mxu0 %v2349
        %2903 = vmatpush2.bf16.msra.mxu0 %v2348
        %2904 = vmatprep.subr.bf16.mxu0 %v2347
        %2905 = vmatpush2.bf16.msra.mxu0 %v2346
        %2906 = vmatprep.subr.bf16.mxu0 %v2345
        %2907 = vmatpush2.bf16.msra.mxu0 %v2344
        %2908 = vmatprep.subr.bf16.mxu0 %v2343
        %2909 = vmatpush2.bf16.msra.mxu0 %v2342
        %2910 = vmatprep.subr.bf16.mxu0 %v2341
        %2911 = vmatpush2.bf16.msra.mxu0 %v2340
        %2912 = vmatprep.subr.bf16.mxu0 %v2339
        %2913 = vmatpush2.bf16.msra.mxu0 %v2338
        %2914 = vmatprep.mubr.bf16.mxu0 %v1423
        %2915 = vmatmul.mubr.bf16.gmra.mxu0 %v1422
        %v2916 = vpop.f32.mrf.mxu0
        %v2917 = vadd.f32 %v2865, %v2916
        %v2918 = vpop.f32.mrf.mxu0
        %v2919 = vadd.f32 %v2867, %v2918
        %v2920 = vpop.f32.mrf.mxu0
        %v2921 = vadd.f32 %v2869, %v2920
        %v2922 = vpop.f32.mrf.mxu0
        %v2923 = vadd.f32 %v2871, %v2922
        %2924 = vmatprep.mubr.bf16.mxu0 %v1438
        %2925 = vmatmul.mubr.bf16.gmra.mxu0 %v1437
        %v2926 = vpop.f32.mrf.mxu0
        %v2927 = vadd.f32 %v2875, %v2926
        %v2928 = vpop.f32.mrf.mxu0
        %v2929 = vadd.f32 %v2877, %v2928
        %v2930 = vpop.f32.mrf.mxu0
        %v2931 = vadd.f32 %v2879, %v2930
        %v2932 = vpop.f32.mrf.mxu0
        %2933 = vdwg.mxu0
        %2934 = vmatprep.subr.bf16.mxu0 %v2369
        %2935 = vmatpush1.bf16.msra.mxu0 %v2368
        %2936 = vmatprep.subr.bf16.mxu0 %v2367
        %2937 = vmatpush1.bf16.msra.mxu0 %v2366
        %2938 = vmatprep.subr.bf16.mxu0 %v2365
        %2939 = vmatpush1.bf16.msra.mxu0 %v2364
        %2940 = vmatprep.subr.bf16.mxu0 %v2363
        %2941 = vmatpush1.bf16.msra.mxu0 %v2362
        %2942 = vmatprep.subr.bf16.mxu0 %v2361
        %2943 = vmatpush1.bf16.msra.mxu0 %v2360
        %2944 = vmatprep.subr.bf16.mxu0 %v2359
        %2945 = vmatpush1.bf16.msra.mxu0 %v2358
        %2946 = vmatprep.subr.bf16.mxu0 %v2357
        %2947 = vmatpush1.bf16.msra.mxu0 %v2356
        %2948 = vmatprep.subr.bf16.mxu0 %v2355
        %2949 = vmatpush1.bf16.msra.mxu0 %v2354
        %2950 = vmatprep.subr.bf16.mxu0 %v2385
        %2951 = vmatpush2.bf16.msra.mxu0 %v2384
        %2952 = vmatprep.subr.bf16.mxu0 %v2383
        %2953 = vmatpush2.bf16.msra.mxu0 %v2382
        %2954 = vmatprep.subr.bf16.mxu0 %v2381
        %2955 = vmatpush2.bf16.msra.mxu0 %v2380
        %2956 = vmatprep.subr.bf16.mxu0 %v2379
        %2957 = vmatpush2.bf16.msra.mxu0 %v2378
        %2958 = vmatprep.subr.bf16.mxu0 %v2377
        %2959 = vmatpush2.bf16.msra.mxu0 %v2376
        %2960 = vmatprep.subr.bf16.mxu0 %v2375
        %2961 = vmatpush2.bf16.msra.mxu0 %v2374
        %2962 = vmatprep.subr.bf16.mxu0 %v2373
        %2963 = vmatpush2.bf16.msra.mxu0 %v2372
        %2964 = vmatprep.subr.bf16.mxu0 %v2371
        %2965 = vmatpush2.bf16.msra.mxu0 %v2370
        %2966 = vmatprep.mubr.bf16.mxu0 %v1425
        %2967 = vmatmul.mubr.bf16.gmra.mxu0 %v1424
        %v2968 = vpop.f32.mrf.mxu0
        %v2969 = vadd.f32 %v2917, %v2968
        %v2970 = vpop.f32.mrf.mxu0
        %v2971 = vadd.f32 %v2919, %v2970
        %v2972 = vpop.f32.mrf.mxu0
        %v2973 = vadd.f32 %v2921, %v2972
        %v2974 = vpop.f32.mrf.mxu0
        %v2975 = vadd.f32 %v2923, %v2974
        %2976 = vmatprep.mubr.bf16.mxu0 %v1440
        %2977 = vmatmul.mubr.bf16.gmra.mxu0 %v1439
        %v2978 = vpop.f32.mrf.mxu0
        %v2979 = vadd.f32 %v2927, %v2978
        %v2980 = vpop.f32.mrf.mxu0
        %v2981 = vadd.f32 %v2929, %v2980
        %v2982 = vpop.f32.mrf.mxu0
        %v2983 = vadd.f32 %v2931, %v2982
        %v2984 = vpop.f32.mrf.mxu0
        %2985 = vdwg.mxu0
        %2986 = vmatprep.subr.bf16.mxu0 %v2401
        %2987 = vmatpush1.bf16.msra.mxu0 %v2400
        %2988 = vmatprep.subr.bf16.mxu0 %v2399
        %2989 = vmatpush1.bf16.msra.mxu0 %v2398
        %2990 = vmatprep.subr.bf16.mxu0 %v2397
        %2991 = vmatpush1.bf16.msra.mxu0 %v2396
        %2992 = vmatprep.subr.bf16.mxu0 %v2395
        %2993 = vmatpush1.bf16.msra.mxu0 %v2394
        %2994 = vmatprep.subr.bf16.mxu0 %v2393
        %2995 = vmatpush1.bf16.msra.mxu0 %v2392
        %2996 = vmatprep.subr.bf16.mxu0 %v2391
        %2997 = vmatpush1.bf16.msra.mxu0 %v2390
        %2998 = vmatprep.subr.bf16.mxu0 %v2389
        %2999 = vmatpush1.bf16.msra.mxu0 %v2388
        %3000 = vmatprep.subr.bf16.mxu0 %v2387
        %3001 = vmatpush1.bf16.msra.mxu0 %v2386
        %3002 = vmatprep.subr.bf16.mxu0 %v2417
        %3003 = vmatpush2.bf16.msra.mxu0 %v2416
        %3004 = vmatprep.subr.bf16.mxu0 %v2415
        %3005 = vmatpush2.bf16.msra.mxu0 %v2414
        %3006 = vmatprep.subr.bf16.mxu0 %v2413
        %3007 = vmatpush2.bf16.msra.mxu0 %v2412
        %3008 = vmatprep.subr.bf16.mxu0 %v2411
        %3009 = vmatpush2.bf16.msra.mxu0 %v2410
        %3010 = vmatprep.subr.bf16.mxu0 %v2409
        %3011 = vmatpush2.bf16.msra.mxu0 %v2408
        %3012 = vmatprep.subr.bf16.mxu0 %v2407
        %3013 = vmatpush2.bf16.msra.mxu0 %v2406
        %3014 = vmatprep.subr.bf16.mxu0 %v2405
        %3015 = vmatpush2.bf16.msra.mxu0 %v2404
        %3016 = vmatprep.subr.bf16.mxu0 %v2403
        %3017 = vmatpush2.bf16.msra.mxu0 %v2402
        %3018 = vmatprep.mubr.bf16.mxu0 %v1427
        %3019 = vmatmul.mubr.bf16.gmra.mxu0 %v1426
        %v3020 = vpop.f32.mrf.mxu0
        %v3021 = vadd.f32 %v2969, %v3020
        %v3022 = vpop.f32.mrf.mxu0
        %v3023 = vadd.f32 %v2971, %v3022
        %v3024 = vpop.f32.mrf.mxu0
        %v3025 = vadd.f32 %v2973, %v3024
        %v3026 = vpop.f32.mrf.mxu0
        %v3027 = vadd.f32 %v2975, %v3026
        %3028 = vmatprep.mubr.bf16.mxu0 %v1442
        %3029 = vmatmul.mubr.bf16.gmra.mxu0 %v1441
        %v3030 = vpop.f32.mrf.mxu0
        %v3031 = vadd.f32 %v2979, %v3030
        %v3032 = vpop.f32.mrf.mxu0
        %v3033 = vadd.f32 %v2981, %v3032
        %v3034 = vpop.f32.mrf.mxu0
        %v3035 = vadd.f32 %v2983, %v3034
        %v3036 = vpop.f32.mrf.mxu0
        %3037 = vdwg.mxu0
        %3038 = vmatprep.subr.bf16.mxu0 %v2433
        %3039 = vmatpush1.bf16.msra.mxu0 %v2432
        %3040 = vmatprep.subr.bf16.mxu0 %v2431
        %3041 = vmatpush1.bf16.msra.mxu0 %v2430
        %3042 = vmatprep.subr.bf16.mxu0 %v2429
        %3043 = vmatpush1.bf16.msra.mxu0 %v2428
        %3044 = vmatprep.subr.bf16.mxu0 %v2427
        %3045 = vmatpush1.bf16.msra.mxu0 %v2426
        %3046 = vmatprep.subr.bf16.mxu0 %v2425
        %3047 = vmatpush1.bf16.msra.mxu0 %v2424
        %3048 = vmatprep.subr.bf16.mxu0 %v2423
        %3049 = vmatpush1.bf16.msra.mxu0 %v2422
        %3050 = vmatprep.subr.bf16.mxu0 %v2421
        %3051 = vmatpush1.bf16.msra.mxu0 %v2420
        %3052 = vmatprep.subr.bf16.mxu0 %v2419
        %3053 = vmatpush1.bf16.msra.mxu0 %v2418
        %3054 = vmatprep.subr.bf16.mxu0 0
        %3055 = vmatpush2.bf16.msra.mxu0 0
        %3056 = vmatprep.subr.bf16.mxu0 0
        %3057 = vmatpush2.bf16.msra.mxu0 0
        %3058 = vmatprep.subr.bf16.mxu0 0
        %3059 = vmatpush2.bf16.msra.mxu0 0
        %3060 = vmatprep.subr.bf16.mxu0 0
        %3061 = vmatpush2.bf16.msra.mxu0 0
        %3062 = vmatprep.subr.bf16.mxu0 0
        %3063 = vmatpush2.bf16.msra.mxu0 0
        %3064 = vmatprep.subr.bf16.mxu0 0
        %3065 = vmatpush2.bf16.msra.mxu0 0
        %3066 = vmatprep.subr.bf16.mxu0 0
        %3067 = vmatpush2.bf16.msra.mxu0 0
        %3068 = vmatprep.subr.bf16.mxu0 0
        %3069 = vmatpush2.bf16.msra.mxu0 0
        %3070 = vmatprep.mubr.bf16.mxu0 0
        %3071 = vmatmul.mubr.bf16.gmra.mxu0 %v1428
        %v3072 = vpop.f32.mrf.mxu0
        %v3073 = vadd.f32 %v3021, %v3072
        %v3074 = vpop.f32.mrf.mxu0
        %v3075 = vadd.f32 %v3023, %v3074
        %v3076 = vpop.f32.mrf.mxu0
        %v3077 = vadd.f32 %v3025, %v3076
        %v3078 = vpop.f32.mrf.mxu0
        %v3079 = vadd.f32 %v3027, %v3078
        %3080 = vmatprep.mubr.bf16.mxu0 0
        %3081 = vmatmul.mubr.bf16.gmra.mxu0 %v1443
        %v3082 = vpop.f32.mrf.mxu0
        %v3083 = vadd.f32 %v3031, %v3082
        %v3084 = vpop.f32.mrf.mxu0
        %v3085 = vadd.f32 %v3033, %v3084
        %v3086 = vpop.f32.mrf.mxu0
        %v3087 = vadd.f32 %v3035, %v3086
        %v3088 = vpop.f32.mrf.mxu0
        %3089 = vdwg.mxu0
        %v3090 = vld [vmem:[%s8] sm:$0x1]
        %v3092 = vlaneseq
        %v3093 = vshrl.u32 %v3092, 7
        %v3094 = vsub.s32 0, %v3093
        %v3095 = vrot.slane %v3090, %v3094
        %v3097 = vadd.f32 %v3075, %v3095
        %v3098 = vadd.f32 %v3079, %v3095
        %v3099 = vadd.f32 %v3085, %v3095
        %3100 = vst [vmem:[#allocation5 - $0x7] sm:$0x80] %v3097
        %3101 = vst [vmem:[#allocation5 + $0x1] sm:$0xff] %v3098
        %3102 = vst [vmem:[#allocation5 + $0x9] sm:$0x7f] %v3099
        %v3103 = vld [vmem:[%s2] sm:$0x1]
        %v3105 = vlaneseq
        %v3106 = vshrl.u32 %v3105, 7
        %v3107 = vsub.s32 0, %v3106
        %v3108 = vrot.slane %v3103, %v3107
        %v3110 = vmul.f32 %v3073, %v3108
        %v3111 = vmul.f32 %v3077, %v3108
        %v3112 = vmul.f32 %v3083, %v3108
        %v3113 = vmul.f32 %v3087, %v3108
        %v3114 = vld [vmem:[%s3] sm:$0x1]
        %v3116 = vlaneseq
        %v3117 = vshrl.u32 %v3116, 7
        %v3118 = vsub.s32 0, %v3117
        %v3119 = vrot.slane %v3114, %v3118
        %v3121 = vadd.f32 %v3110, %v3119
        %v3122 = vadd.f32 %v3111, %v3119
        %v3123 = vadd.f32 %v3112, %v3119
        %v3124 = vadd.f32 %v3113, %v3119
        %v3125 = vmul.f32 %v3121, 0.1
        %v3126 = vmul.f32 %v3122, 0.1
        %v3127 = vmul.f32 %v3123, 0.1
        %v3128 = vmul.f32 %v3124, 0.1
        %v3129 = vmax.f32 %v3121, %v3125
        %v3130 = vmax.f32 %v3122, %v3126
        %v3131 = vmax.f32 %v3123, %v3127
        %v3132 = vmax.f32 %v3124, %v3128
        %s3133 = ssub.s32 %s415, 7
        %v3134 = vlaneseq
        %v3135 = vshrl.u32 %v3134, 7
        %v3136 = vadd.s32 %v3135, 8
        %v3137 = vadd.s32 %v3135, 16
        %v3138 = vadd.s32 %v3135, 24
        %v3139 = vstv %s3133
        %v3140 = vadd.s32 %v3139, %v3135
        %v3141 = vadd.s32 %v3139, %v3136
        %v3142 = vadd.s32 %v3139, %v3137
        %v3143 = vadd.s32 %v3139, %v3138
        %vm3144 = vcmp.ge.s32.totalorder %v3140, 0
        %vm3145 = vcmp.ge.s32.totalorder %v3141, 0
        %vm3146 = vcmp.ge.s32.totalorder %v3142, 0
        %vm3147 = vcmp.ge.s32.totalorder %v3143, 0
        %vm3148 = vcmp.lt.s32.totalorder %v3140, 16
        %vm3149 = vcmp.lt.s32.totalorder %v3141, 16
        %vm3150 = vcmp.lt.s32.totalorder %v3142, 16
        %vm3151 = vcmp.lt.s32.totalorder %v3143, 16
        %vm3152 = vmand %vm3144, %vm3148
        %vm3153 = vmand %vm3145, %vm3149
        %vm3154 = vmand %vm3146, %vm3150
        %vm3155 = vmand %vm3147, %vm3151
        %v3156 = vsel %vm3152, 1, 0
        %v3157 = vsel %vm3153, 1, 0
        %v3158 = vsel %vm3154, 1, 0
        %v3159 = vsel %vm3155, 1, 0
        %vm3160 = vcmp.eq.s32.totalorder %v3156, 1
        %vm3161 = vcmp.eq.s32.totalorder %v3157, 1
        %vm3162 = vcmp.eq.s32.totalorder %v3158, 1
        %vm3163 = vcmp.eq.s32.totalorder %v3159, 1
        %v3164 = vsel %vm3160, %v3129, 0.0
        %v3165 = vsel %vm3161, %v3130, 0.0
        %v3166 = vsel %vm3162, %v3131, 0.0
        %v3167 = vsel %vm3163, %v3132, 0.0
        %v3168 = vpack.c.bf16 %v3165, %v3164
        %v3169 = vpack.c.bf16 %v3167, %v3166
        %v3172 = vunpack.c.l.b16 %v3168
        %v3173 = vunpack.c.h.b16 %v3168
        %v3174 = vunpack.c.l.b16 %v3169
        %v3175 = vunpack.c.h.b16 %v3169
        %v3176 = vpack.c.b16 %v3172, %v3172
        %v3177 = vpack.c.b16 %v3173, %v3173
        %v3178 = vpack.c.b16 %v3174, %v3174
        %v3179 = vpack.c.b16 %v3175, %v3175
        %3184 = vst [vmem:[#allocation2] sm:$0xf] %v3176
        %3185 = vst [vmem:[#allocation2 + $0x4] sm:$0xf] %v3177
        %3186 = vst [vmem:[#allocation2 + $0x8] sm:$0xf] %v3178
        %3187 = vst [vmem:[#allocation2 + $0xc] sm:$0xf] %v3179
        %v3188 = vld [vmem:[#allocation2] sm:$0xf]
        %v3189 = vld [vmem:[#allocation2 + $0x4] sm:$0xf]
        %3190 = vst [vmem:[#allocation4] sm:$0xf] %v3188
        %3191 = vst [vmem:[#allocation4 + $0x3c] sm:$0xf] %v3189
        %v3192 = vld [vmem:[#allocation2] sm:$0xf]
        %v3193 = vld [vmem:[#allocation2 + $0x4] sm:$0xf]
        %v3194 = vld [vmem:[#allocation2 + $0x8] sm:$0x1]
        %v3196 = vshrl.u32 %v3192, 16
        %v3198 = vrot.slane %v3196, 4
        %v3199 = vshll.u32 %v3192, 16
        %v3201 = vrot.slane %v3199, 5
        %v3202 = vor.u32 %v3198, %v3201
        %v3203 = vrot.slane %v3202, 4
        %v3205 = vshll.u32 %v3193, 16
        %v3207 = vrot.slane %v3205, 5
        %v3208 = vsel %vm431, %v3203, %v3207
        %v3209 = vshrl.u32 %v3193, 16
        %v3211 = vrot.slane %v3209, 4
        %v3212 = vor.u32 %v3211, %v3207
        %v3213 = vrot.slane %v3212, 4
        %v3215 = vshll.u32 %v3194, 16
        %v3217 = vrot.slane %v3215, 5
        %v3218 = vsel %vm431, %v3213, %v3217
        %3221 = vst [vmem:[#allocation4 + $0x4] sm:$0xf] %v3208
        %3222 = vst [vmem:[#allocation4 + $0x40] sm:$0xf] %v3218
        %v3223 = vld [vmem:[#allocation2] sm:$0xe]
        %v3224 = vld [vmem:[#allocation2 + $0x4] sm:$0xf]
        %v3225 = vld [vmem:[#allocation2 + $0x8] sm:$0x1]
        %v3229 = vrot.slane %v3223, 5
        %v3230 = vrot.slane %v3229, 4
        %v3231 = vrot.slane %v3224, 5
        %v3232 = vsel %vm496, %v3230, %v3231
        %v3233 = vrot.slane %v3231, 4
        %v3234 = vrot.slane %v3225, 5
        %v3235 = vsel %vm496, %v3233, %v3234
        %3238 = vst [vmem:[#allocation4 + $0x8] sm:$0xf] %v3232
        %3239 = vst [vmem:[#allocation4 + $0x44] sm:$0xf] %v3235
        %v3240 = vld [vmem:[#allocation2] sm:$0xe]
        %v3241 = vld [vmem:[#allocation2 + $0x4] sm:$0xf]
        %v3242 = vld [vmem:[#allocation2 + $0x8] sm:$0x3]
        %v3244 = vshrl.u32 %v3240, 16
        %v3246 = vrot.slane %v3244, 5
        %v3247 = vshll.u32 %v3240, 16
        %v3249 = vrot.slane %v3247, 6
        %v3250 = vor.u32 %v3246, %v3249
        %v3251 = vrot.slane %v3250, 4
        %v3253 = vshrl.u32 %v3241, 16
        %v3255 = vrot.slane %v3253, 5
        %v3256 = vshll.u32 %v3241, 16
        %v3258 = vrot.slane %v3256, 6
        %v3259 = vor.u32 %v3255, %v3258
        %v3260 = vsel %vm525, %v3251, %v3259
        %v3261 = vrot.slane %v3259, 4
        %v3263 = vshrl.u32 %v3242, 16
        %v3265 = vrot.slane %v3263, 5
        %v3266 = vshll.u32 %v3242, 16
        %v3268 = vrot.slane %v3266, 6
        %v3269 = vor.u32 %v3265, %v3268
        %v3270 = vsel %vm525, %v3261, %v3269
        %3273 = vst [vmem:[#allocation4 + $0xc] sm:$0xf] %v3260
        %3274 = vst [vmem:[#allocation4 + $0x48] sm:$0xf] %v3270
        %v3275 = vld [vmem:[#allocation2] sm:$0xc]
        %v3276 = vld [vmem:[#allocation2 + $0x4] sm:$0xf]
        %v3277 = vld [vmem:[#allocation2 + $0x8] sm:$0x3]
        %v3281 = vrot.slane %v3275, 6
        %v3282 = vrot.slane %v3281, 4
        %v3283 = vrot.slane %v3276, 6
        %v3284 = vsel %vm594, %v3282, %v3283
        %v3285 = vrot.slane %v3283, 4
        %v3286 = vrot.slane %v3277, 6
        %v3287 = vsel %vm594, %v3285, %v3286
        %3290 = vst [vmem:[#allocation4 + $0x10] sm:$0xf] %v3284
        %3291 = vst [vmem:[#allocation4 + $0x4c] sm:$0xf] %v3287
        %v3292 = vld [vmem:[#allocation2] sm:$0xc]
        %v3293 = vld [vmem:[#allocation2 + $0x4] sm:$0xf]
        %v3294 = vld [vmem:[#allocation2 + $0x8] sm:$0x7]
        %v3296 = vshrl.u32 %v3292, 16
        %v3298 = vrot.slane %v3296, 6
        %v3299 = vshll.u32 %v3292, 16
        %v3301 = vrot.slane %v3299, 7
        %v3302 = vor.u32 %v3298, %v3301
        %v3303 = vrot.slane %v3302, 4
        %v3305 = vshrl.u32 %v3293, 16
        %v3307 = vrot.slane %v3305, 6
        %v3308 = vshll.u32 %v3293, 16
        %v3310 = vrot.slane %v3308, 7
        %v3311 = vor.u32 %v3307, %v3310
        %v3312 = vsel %vm623, %v3303, %v3311
        %v3313 = vrot.slane %v3311, 4
        %v3315 = vshrl.u32 %v3294, 16
        %v3317 = vrot.slane %v3315, 6
        %v3318 = vshll.u32 %v3294, 16
        %v3320 = vrot.slane %v3318, 7
        %v3321 = vor.u32 %v3317, %v3320
        %v3322 = vsel %vm623, %v3313, %v3321
        %3325 = vst [vmem:[#allocation4 + $0x14] sm:$0xf] %v3312
        %3326 = vst [vmem:[#allocation4 + $0x50] sm:$0xf] %v3322
        %v3327 = vld [vmem:[#allocation2] sm:$0x8]
        %v3328 = vld [vmem:[#allocation2 + $0x4] sm:$0xf]
        %v3329 = vld [vmem:[#allocation2 + $0x8] sm:$0x7]
        %v3333 = vrot.slane %v3327, 7
        %v3334 = vrot.slane %v3333, 4
        %v3335 = vrot.slane %v3328, 7
        %v3336 = vsel %vm692, %v3334, %v3335
        %v3337 = vrot.slane %v3335, 4
        %v3338 = vrot.slane %v3329, 7
        %v3339 = vsel %vm692, %v3337, %v3338
        %3342 = vst [vmem:[#allocation4 + $0x18] sm:$0xf] %v3336
        %3343 = vst [vmem:[#allocation4 + $0x54] sm:$0xf] %v3339
        %v3344 = vld [vmem:[#allocation2] sm:$0x8]
        %v3345 = vld [vmem:[#allocation2 + $0x4] sm:$0xf]
        %v3346 = vld [vmem:[#allocation2 + $0x8] sm:$0xf]
        %v3348 = vshrl.u32 %v3344, 16
        %v3350 = vrot.slane %v3348, 7
        %v3351 = vrot.slane %v3350, 4
        %v3353 = vshrl.u32 %v3345, 16
        %v3355 = vrot.slane %v3353, 7
        %v3356 = vshll.u32 %v3345, 16
        %v3358 = vor.u32 %v3355, %v3356
        %v3359 = vsel %vm721, %v3351, %v3358
        %v3360 = vrot.slane %v3355, 4
        %v3362 = vshrl.u32 %v3346, 16
        %v3364 = vrot.slane %v3362, 7
        %v3365 = vshll.u32 %v3346, 16
        %v3367 = vor.u32 %v3364, %v3365
        %v3368 = vsel %vm721, %v3360, %v3367
        %3371 = vst [vmem:[#allocation4 + $0x1c] sm:$0xf] %v3359
        %3372 = vst [vmem:[#allocation4 + $0x58] sm:$0xf] %v3368
        %v3373 = vld [vmem:[#allocation2 + $0x4] sm:$0xf]
        %v3374 = vld [vmem:[#allocation2 + $0x8] sm:$0xf]
        %3375 = vst [vmem:[#allocation4 + $0x20] sm:$0xf] %v3373
        %3376 = vst [vmem:[#allocation4 + $0x5c] sm:$0xf] %v3374
        %v3377 = vld [vmem:[#allocation2 + $0x4] sm:$0xf]
        %v3378 = vld [vmem:[#allocation2 + $0x8] sm:$0xf]
        %v3379 = vld [vmem:[#allocation2 + $0xc] sm:$0x1]
        %v3381 = vshrl.u32 %v3377, 16
        %v3383 = vrot.slane %v3381, 4
        %v3384 = vshll.u32 %v3377, 16
        %v3386 = vrot.slane %v3384, 5
        %v3387 = vor.u32 %v3383, %v3386
        %v3388 = vrot.slane %v3387, 4
        %v3390 = vshll.u32 %v3378, 16
        %v3392 = vrot.slane %v3390, 5
        %v3393 = vsel %vm431, %v3388, %v3392
        %v3394 = vshrl.u32 %v3378, 16
        %v3396 = vrot.slane %v3394, 4
        %v3397 = vor.u32 %v3396, %v3392
        %v3398 = vrot.slane %v3397, 4
        %v3400 = vshll.u32 %v3379, 16
        %v3402 = vrot.slane %v3400, 5
        %v3403 = vsel %vm431, %v3398, %v3402
        %3406 = vst [vmem:[#allocation4 + $0x24] sm:$0xf] %v3393
        %3407 = vst [vmem:[#allocation4 + $0x60] sm:$0xf] %v3403
        %v3408 = vld [vmem:[#allocation2 + $0x4] sm:$0xe]
        %v3409 = vld [vmem:[#allocation2 + $0x8] sm:$0xf]
        %v3410 = vld [vmem:[#allocation2 + $0xc] sm:$0x1]
        %v3414 = vrot.slane %v3408, 5
        %v3415 = vrot.slane %v3414, 4
        %v3416 = vrot.slane %v3409, 5
        %v3417 = vsel %vm496, %v3415, %v3416
        %v3418 = vrot.slane %v3416, 4
        %v3419 = vrot.slane %v3410, 5
        %v3420 = vsel %vm496, %v3418, %v3419
        %3423 = vst [vmem:[#allocation4 + $0x28] sm:$0xf] %v3417
        %3424 = vst [vmem:[#allocation4 + $0x64] sm:$0xf] %v3420
        %v3425 = vld [vmem:[#allocation2 + $0x4] sm:$0xe]
        %v3426 = vld [vmem:[#allocation2 + $0x8] sm:$0xf]
        %v3427 = vld [vmem:[#allocation2 + $0xc] sm:$0x3]
        %v3429 = vshrl.u32 %v3425, 16
        %v3431 = vrot.slane %v3429, 5
        %v3432 = vshll.u32 %v3425, 16
        %v3434 = vrot.slane %v3432, 6
        %v3435 = vor.u32 %v3431, %v3434
        %v3436 = vrot.slane %v3435, 4
        %v3438 = vshrl.u32 %v3426, 16
        %v3440 = vrot.slane %v3438, 5
        %v3441 = vshll.u32 %v3426, 16
        %v3443 = vrot.slane %v3441, 6
        %v3444 = vor.u32 %v3440, %v3443
        %v3445 = vsel %vm525, %v3436, %v3444
        %v3446 = vrot.slane %v3444, 4
        %v3448 = vshrl.u32 %v3427, 16
        %v3450 = vrot.slane %v3448, 5
        %v3451 = vshll.u32 %v3427, 16
        %v3453 = vrot.slane %v3451, 6
        %v3454 = vor.u32 %v3450, %v3453
        %v3455 = vsel %vm525, %v3446, %v3454
        %3458 = vst [vmem:[#allocation4 + $0x2c] sm:$0xf] %v3445
        %3459 = vst [vmem:[#allocation4 + $0x68] sm:$0xf] %v3455
        %v3460 = vld [vmem:[#allocation2 + $0x4] sm:$0xc]
        %v3461 = vld [vmem:[#allocation2 + $0x8] sm:$0xf]
        %v3462 = vld [vmem:[#allocation2 + $0xc] sm:$0x3]
        %v3466 = vrot.slane %v3460, 6
        %v3467 = vrot.slane %v3466, 4
        %v3468 = vrot.slane %v3461, 6
        %v3469 = vsel %vm594, %v3467, %v3468
        %v3470 = vrot.slane %v3468, 4
        %v3471 = vrot.slane %v3462, 6
        %v3472 = vsel %vm594, %v3470, %v3471
        %3475 = vst [vmem:[#allocation4 + $0x30] sm:$0xf] %v3469
        %3476 = vst [vmem:[#allocation4 + $0x6c] sm:$0xf] %v3472
        %v3477 = vld [vmem:[#allocation2 + $0x4] sm:$0xc]
        %v3478 = vld [vmem:[#allocation2 + $0x8] sm:$0xf]
        %v3479 = vld [vmem:[#allocation2 + $0xc] sm:$0x7]
        %v3481 = vshrl.u32 %v3477, 16
        %v3483 = vrot.slane %v3481, 6
        %v3484 = vshll.u32 %v3477, 16
        %v3486 = vrot.slane %v3484, 7
        %v3487 = vor.u32 %v3483, %v3486
        %v3488 = vrot.slane %v3487, 4
        %v3490 = vshrl.u32 %v3478, 16
        %v3492 = vrot.slane %v3490, 6
        %v3493 = vshll.u32 %v3478, 16
        %v3495 = vrot.slane %v3493, 7
        %v3496 = vor.u32 %v3492, %v3495
        %v3497 = vsel %vm623, %v3488, %v3496
        %v3498 = vrot.slane %v3496, 4
        %v3500 = vshrl.u32 %v3479, 16
        %v3502 = vrot.slane %v3500, 6
        %v3503 = vshll.u32 %v3479, 16
        %v3505 = vrot.slane %v3503, 7
        %v3506 = vor.u32 %v3502, %v3505
        %v3507 = vsel %vm623, %v3498, %v3506
        %3510 = vst [vmem:[#allocation4 + $0x34] sm:$0xf] %v3497
        %3511 = vst [vmem:[#allocation4 + $0x70] sm:$0xf] %v3507
        %v3512 = vld [vmem:[#allocation2 + $0x4] sm:$0x8]
        %v3513 = vld [vmem:[#allocation2 + $0x8] sm:$0xf]
        %v3514 = vld [vmem:[#allocation2 + $0xc] sm:$0x7]
        %v3518 = vrot.slane %v3512, 7
        %v3519 = vrot.slane %v3518, 4
        %v3520 = vrot.slane %v3513, 7
        %v3521 = vsel %vm692, %v3519, %v3520
        %v3522 = vrot.slane %v3520, 4
        %v3523 = vrot.slane %v3514, 7
        %v3524 = vsel %vm692, %v3522, %v3523
        %3527 = vst [vmem:[#allocation4 + $0x38] sm:$0xf] %v3521
        %3528 = vst [vmem:[#allocation4 + $0x74] sm:$0xf] %v3524
        %v3529 = vld [vmem:[#allocation4] sm:$0xff]
        %v3530 = vld [vmem:[#allocation4 + $0x8] sm:$0xff]
        %v3531 = vld [vmem:[#allocation4 + $0x10] sm:$0xff]
        %v3532 = vld [vmem:[#allocation4 + $0x18] sm:$0xff]
        %v3533 = vld [vmem:[#allocation4 + $0x20] sm:$0xff]
        %v3534 = vld [vmem:[#allocation4 + $0x28] sm:$0xff]
        %v3535 = vld [vmem:[#allocation4 + $0x30] sm:$0xff]
        %v3536 = vld [vmem:[#allocation4 + $0x38] sm:$0xf]
        %v3537 = vld [vmem:[#allocation4 + $0x3c] sm:$0xff]
        %v3538 = vld [vmem:[#allocation4 + $0x44] sm:$0xff]
        %v3539 = vld [vmem:[#allocation4 + $0x4c] sm:$0xff]
        %v3540 = vld [vmem:[#allocation4 + $0x54] sm:$0xff]
        %v3541 = vld [vmem:[#allocation4 + $0x5c] sm:$0xff]
        %v3542 = vld [vmem:[#allocation4 + $0x64] sm:$0xff]
        %v3543 = vld [vmem:[#allocation4 + $0x6c] sm:$0xff]
        %v3544 = vld [vmem:[#allocation4 + $0x74] sm:$0xf]
        %v3545 = vld [vmem:[#allocation11] sm:$0xf]
        %v3546 = vld [vmem:[#allocation11 + $0x4] sm:$0xf]
        %v3547 = vld [vmem:[#allocation11 + $0x8] sm:$0xf]
        %v3548 = vld [vmem:[#allocation11 + $0xc] sm:$0xf]
        %v3549 = vld [vmem:[#allocation11 + $0x10] sm:$0xf]
        %v3550 = vld [vmem:[#allocation11 + $0x14] sm:$0xf]
        %v3551 = vld [vmem:[#allocation11 + $0x18] sm:$0xf]
        %v3552 = vld [vmem:[#allocation11 + $0x1c] sm:$0xf]
        %v3553 = vld [vmem:[#allocation11 + $0x20] sm:$0xf]
        %v3554 = vld [vmem:[#allocation11 + $0x24] sm:$0xf]
        %v3555 = vld [vmem:[#allocation11 + $0x28] sm:$0xf]
        %v3556 = vld [vmem:[#allocation11 + $0x2c] sm:$0xf]
        %v3557 = vld [vmem:[#allocation11 + $0x30] sm:$0xf]
        %v3558 = vld [vmem:[#allocation11 + $0x34] sm:$0xf]
        %v3559 = vld [vmem:[#allocation11 + $0x38] sm:$0xf]
        %v3560 = vld [vmem:[#allocation11 + $0x3c] sm:$0xf]
        %v3561 = vld [vmem:[#allocation11 + $0x40] sm:$0xf]
        %v3562 = vld [vmem:[#allocation11 + $0x44] sm:$0xf]
        %v3563 = vld [vmem:[#allocation11 + $0x48] sm:$0xf]
        %v3564 = vld [vmem:[#allocation11 + $0x4c] sm:$0xf]
        %v3565 = vld [vmem:[#allocation11 + $0x50] sm:$0xf]
        %v3566 = vld [vmem:[#allocation11 + $0x54] sm:$0xf]
        %v3567 = vld [vmem:[#allocation11 + $0x58] sm:$0xf]
        %v3568 = vld [vmem:[#allocation11 + $0x5c] sm:$0xf]
        %v3569 = vld [vmem:[#allocation11 + $0x60] sm:$0xf]
        %v3570 = vld [vmem:[#allocation11 + $0x64] sm:$0xf]
        %v3571 = vld [vmem:[#allocation11 + $0x68] sm:$0xf]
        %v3572 = vld [vmem:[#allocation11 + $0x6c] sm:$0xf]
        %v3573 = vld [vmem:[#allocation11 + $0x70] sm:$0xf]
        %v3574 = vld [vmem:[#allocation11 + $0x74] sm:$0xf]
        %v3575 = vld [vmem:[#allocation11 + $0x78] sm:$0xf]
        %v3576 = vld [vmem:[#allocation11 + $0x7c] sm:$0xf]
        %v3577 = vld [vmem:[#allocation11 + $0x80] sm:$0xf]
        %v3578 = vld [vmem:[#allocation11 + $0x84] sm:$0xf]
        %v3579 = vld [vmem:[#allocation11 + $0x88] sm:$0xf]
        %v3580 = vld [vmem:[#allocation11 + $0x8c] sm:$0xf]
        %v3581 = vld [vmem:[#allocation11 + $0x90] sm:$0xf]
        %v3582 = vld [vmem:[#allocation11 + $0x94] sm:$0xf]
        %v3583 = vld [vmem:[#allocation11 + $0x98] sm:$0xf]
        %v3584 = vld [vmem:[#allocation11 + $0x9c] sm:$0xf]
        %v3585 = vld [vmem:[#allocation11 + $0xa0] sm:$0xf]
        %v3586 = vld [vmem:[#allocation11 + $0xa4] sm:$0xf]
        %v3587 = vld [vmem:[#allocation11 + $0xa8] sm:$0xf]
        %v3588 = vld [vmem:[#allocation11 + $0xac] sm:$0xf]
        %v3589 = vld [vmem:[#allocation11 + $0xb0] sm:$0xf]
        %v3590 = vld [vmem:[#allocation11 + $0xb4] sm:$0xf]
        %v3591 = vld [vmem:[#allocation11 + $0xb8] sm:$0xf]
        %v3592 = vld [vmem:[#allocation11 + $0xbc] sm:$0xf]
        %v3593 = vld [vmem:[#allocation11 + $0xc0] sm:$0xf]
        %v3594 = vld [vmem:[#allocation11 + $0xc4] sm:$0xf]
        %v3595 = vld [vmem:[#allocation11 + $0xc8] sm:$0xf]
        %v3596 = vld [vmem:[#allocation11 + $0xcc] sm:$0xf]
        %v3597 = vld [vmem:[#allocation11 + $0xd0] sm:$0xf]
        %v3598 = vld [vmem:[#allocation11 + $0xd4] sm:$0xf]
        %v3599 = vld [vmem:[#allocation11 + $0xd8] sm:$0xf]
        %v3600 = vld [vmem:[#allocation11 + $0xdc] sm:$0xf]
        %v3601 = vld [vmem:[#allocation11 + $0xe0] sm:$0xf]
        %v3602 = vld [vmem:[#allocation11 + $0xe4] sm:$0xf]
        %v3603 = vld [vmem:[#allocation11 + $0xe8] sm:$0xf]
        %v3604 = vld [vmem:[#allocation11 + $0xec] sm:$0xf]
        %v3605 = vld [vmem:[#allocation11 + $0xf0] sm:$0xf]
        %v3606 = vld [vmem:[#allocation11 + $0xf4] sm:$0xf]
        %v3607 = vld [vmem:[#allocation11 + $0xf8] sm:$0xf]
        %v3608 = vld [vmem:[#allocation11 + $0xfc] sm:$0xf]
        %v3609 = vld [vmem:[#allocation11 + $0x100] sm:$0xf]
        %v3610 = vld [vmem:[#allocation11 + $0x104] sm:$0xf]
        %v3611 = vld [vmem:[#allocation11 + $0x108] sm:$0xf]
        %v3612 = vld [vmem:[#allocation11 + $0x10c] sm:$0xf]
        %v3613 = vld [vmem:[#allocation11 + $0x110] sm:$0xf]
        %v3614 = vld [vmem:[#allocation11 + $0x114] sm:$0xf]
        %v3615 = vld [vmem:[#allocation11 + $0x118] sm:$0xf]
        %v3616 = vld [vmem:[#allocation11 + $0x11c] sm:$0xf]
        %v3617 = vld [vmem:[#allocation11 + $0x120] sm:$0xf]
        %v3618 = vld [vmem:[#allocation11 + $0x124] sm:$0xf]
        %v3619 = vld [vmem:[#allocation11 + $0x128] sm:$0xf]
        %v3620 = vld [vmem:[#allocation11 + $0x12c] sm:$0xf]
        %v3621 = vld [vmem:[#allocation11 + $0x130] sm:$0xf]
        %v3622 = vld [vmem:[#allocation11 + $0x134] sm:$0xf]
        %v3623 = vld [vmem:[#allocation11 + $0x138] sm:$0xf]
        %v3624 = vld [vmem:[#allocation11 + $0x13c] sm:$0xf]
        %v3625 = vld [vmem:[#allocation11 + $0x140] sm:$0xf]
        %v3626 = vld [vmem:[#allocation11 + $0x144] sm:$0xf]
        %v3627 = vld [vmem:[#allocation11 + $0x148] sm:$0xf]
        %v3628 = vld [vmem:[#allocation11 + $0x14c] sm:$0xf]
        %v3629 = vld [vmem:[#allocation11 + $0x150] sm:$0xf]
        %v3630 = vld [vmem:[#allocation11 + $0x154] sm:$0xf]
        %v3631 = vld [vmem:[#allocation11 + $0x158] sm:$0xf]
        %v3632 = vld [vmem:[#allocation11 + $0x15c] sm:$0xf]
        %v3633 = vld [vmem:[#allocation11 + $0x160] sm:$0xf]
        %v3634 = vld [vmem:[#allocation11 + $0x164] sm:$0xf]
        %v3635 = vld [vmem:[#allocation11 + $0x168] sm:$0xf]
        %v3636 = vld [vmem:[#allocation11 + $0x16c] sm:$0xf]
        %v3637 = vld [vmem:[#allocation11 + $0x170] sm:$0xf]
        %v3638 = vld [vmem:[#allocation11 + $0x174] sm:$0xf]
        %v3639 = vld [vmem:[#allocation11 + $0x178] sm:$0xf]
        %v3640 = vld [vmem:[#allocation11 + $0x17c] sm:$0xf]
        %v3641 = vld [vmem:[#allocation11 + $0x180] sm:$0xf]
        %v3642 = vld [vmem:[#allocation11 + $0x184] sm:$0xf]
        %v3643 = vld [vmem:[#allocation11 + $0x188] sm:$0xf]
        %v3644 = vld [vmem:[#allocation11 + $0x18c] sm:$0xf]
        %v3645 = vld [vmem:[#allocation11 + $0x190] sm:$0xf]
        %v3646 = vld [vmem:[#allocation11 + $0x194] sm:$0xf]
        %v3647 = vld [vmem:[#allocation11 + $0x198] sm:$0xf]
        %v3648 = vld [vmem:[#allocation11 + $0x19c] sm:$0xf]
        %v3649 = vld [vmem:[#allocation11 + $0x1a0] sm:$0xf]
        %v3650 = vld [vmem:[#allocation11 + $0x1a4] sm:$0xf]
        %v3651 = vld [vmem:[#allocation11 + $0x1a8] sm:$0xf]
        %v3652 = vld [vmem:[#allocation11 + $0x1ac] sm:$0xf]
        %v3653 = vld [vmem:[#allocation11 + $0x1b0] sm:$0xf]
        %v3654 = vld [vmem:[#allocation11 + $0x1b4] sm:$0xf]
        %v3655 = vld [vmem:[#allocation11 + $0x1b8] sm:$0xf]
        %v3656 = vld [vmem:[#allocation11 + $0x1bc] sm:$0xf]
        %v3657 = vld [vmem:[#allocation11 + $0x1c0] sm:$0xf]
        %v3658 = vld [vmem:[#allocation11 + $0x1c4] sm:$0xf]
        %v3659 = vld [vmem:[#allocation11 + $0x1c8] sm:$0xf]
        %v3660 = vld [vmem:[#allocation11 + $0x1cc] sm:$0xf]
        %v3661 = vld [vmem:[#allocation11 + $0x1d0] sm:$0xf]
        %v3662 = vld [vmem:[#allocation11 + $0x1d4] sm:$0xf]
        %v3663 = vld [vmem:[#allocation11 + $0x1d8] sm:$0xf]
        %v3664 = vld [vmem:[#allocation11 + $0x1dc] sm:$0xf]
        %v3665 = vld [vmem:[#allocation11 + $0x1e0] sm:$0xf]
        %v3666 = vld [vmem:[#allocation11 + $0x1e4] sm:$0xf]
        %v3667 = vld [vmem:[#allocation11 + $0x1e8] sm:$0xf]
        %v3668 = vld [vmem:[#allocation11 + $0x1ec] sm:$0xf]
        %v3669 = vld [vmem:[#allocation11 + $0x1f0] sm:$0xf]
        %v3670 = vld [vmem:[#allocation11 + $0x1f4] sm:$0xf]
        %v3671 = vld [vmem:[#allocation11 + $0x1f8] sm:$0xf]
        %v3672 = vld [vmem:[#allocation11 + $0x1fc] sm:$0xf]
        %v3673 = vld [vmem:[#allocation11 + $0x200] sm:$0xf]
        %v3674 = vld [vmem:[#allocation11 + $0x204] sm:$0xf]
        %v3675 = vld [vmem:[#allocation11 + $0x208] sm:$0xf]
        %v3676 = vld [vmem:[#allocation11 + $0x20c] sm:$0xf]
        %v3677 = vld [vmem:[#allocation11 + $0x210] sm:$0xf]
        %v3678 = vld [vmem:[#allocation11 + $0x214] sm:$0xf]
        %v3679 = vld [vmem:[#allocation11 + $0x218] sm:$0xf]
        %v3680 = vld [vmem:[#allocation11 + $0x21c] sm:$0xf]
        %v3681 = vld [vmem:[#allocation11 + $0x220] sm:$0xf]
        %v3682 = vld [vmem:[#allocation11 + $0x224] sm:$0xf]
        %v3683 = vld [vmem:[#allocation11 + $0x228] sm:$0xf]
        %v3684 = vld [vmem:[#allocation11 + $0x22c] sm:$0xf]
        %v3685 = vld [vmem:[#allocation11 + $0x230] sm:$0xf]
        %v3686 = vld [vmem:[#allocation11 + $0x234] sm:$0xf]
        %v3687 = vld [vmem:[#allocation11 + $0x238] sm:$0xf]
        %v3688 = vld [vmem:[#allocation11 + $0x23c] sm:$0xf]
        %v3689 = vld [vmem:[#allocation11 + $0x240] sm:$0xf]
        %v3690 = vld [vmem:[#allocation11 + $0x244] sm:$0xf]
        %v3691 = vld [vmem:[#allocation11 + $0x248] sm:$0xf]
        %v3692 = vld [vmem:[#allocation11 + $0x24c] sm:$0xf]
        %v3693 = vld [vmem:[#allocation11 + $0x250] sm:$0xf]
        %v3694 = vld [vmem:[#allocation11 + $0x254] sm:$0xf]
        %v3695 = vld [vmem:[#allocation11 + $0x258] sm:$0xf]
        %v3696 = vld [vmem:[#allocation11 + $0x25c] sm:$0xf]
        %v3697 = vld [vmem:[#allocation11 + $0x260] sm:$0xf]
        %v3698 = vld [vmem:[#allocation11 + $0x264] sm:$0xf]
        %v3699 = vld [vmem:[#allocation11 + $0x268] sm:$0xf]
        %v3700 = vld [vmem:[#allocation11 + $0x26c] sm:$0xf]
        %v3701 = vld [vmem:[#allocation11 + $0x270] sm:$0xf]
        %v3702 = vld [vmem:[#allocation11 + $0x274] sm:$0xf]
        %v3703 = vld [vmem:[#allocation11 + $0x278] sm:$0xf]
        %v3704 = vld [vmem:[#allocation11 + $0x27c] sm:$0xf]
        %v3705 = vld [vmem:[#allocation11 + $0x280] sm:$0xf]
        %v3706 = vld [vmem:[#allocation11 + $0x284] sm:$0xf]
        %v3707 = vld [vmem:[#allocation11 + $0x288] sm:$0xf]
        %v3708 = vld [vmem:[#allocation11 + $0x28c] sm:$0xf]
        %v3709 = vld [vmem:[#allocation11 + $0x290] sm:$0xf]
        %v3710 = vld [vmem:[#allocation11 + $0x294] sm:$0xf]
        %v3711 = vld [vmem:[#allocation11 + $0x298] sm:$0xf]
        %v3712 = vld [vmem:[#allocation11 + $0x29c] sm:$0xf]
        %v3713 = vld [vmem:[#allocation11 + $0x2a0] sm:$0xf]
        %v3714 = vld [vmem:[#allocation11 + $0x2a4] sm:$0xf]
        %v3715 = vld [vmem:[#allocation11 + $0x2a8] sm:$0xf]
        %v3716 = vld [vmem:[#allocation11 + $0x2ac] sm:$0xf]
        %v3717 = vld [vmem:[#allocation11 + $0x2b0] sm:$0xf]
        %v3718 = vld [vmem:[#allocation11 + $0x2b4] sm:$0xf]
        %v3719 = vld [vmem:[#allocation11 + $0x2b8] sm:$0xf]
        %v3720 = vld [vmem:[#allocation11 + $0x2bc] sm:$0xf]
        %v3721 = vld [vmem:[#allocation11 + $0x2c0] sm:$0xf]
        %v3722 = vld [vmem:[#allocation11 + $0x2c4] sm:$0xf]
        %v3723 = vld [vmem:[#allocation11 + $0x2c8] sm:$0xf]
        %v3724 = vld [vmem:[#allocation11 + $0x2cc] sm:$0xf]
        %v3725 = vld [vmem:[#allocation11 + $0x2d0] sm:$0xf]
        %v3726 = vld [vmem:[#allocation11 + $0x2d4] sm:$0xf]
        %v3727 = vld [vmem:[#allocation11 + $0x2d8] sm:$0xf]
        %v3728 = vld [vmem:[#allocation11 + $0x2dc] sm:$0xf]
        %v3729 = vld [vmem:[#allocation11 + $0x2e0] sm:$0xf]
        %v3730 = vld [vmem:[#allocation11 + $0x2e4] sm:$0xf]
        %v3731 = vld [vmem:[#allocation11 + $0x2e8] sm:$0xf]
        %v3732 = vld [vmem:[#allocation11 + $0x2ec] sm:$0xf]
        %v3733 = vld [vmem:[#allocation11 + $0x2f0] sm:$0xf]
        %v3734 = vld [vmem:[#allocation11 + $0x2f4] sm:$0xf]
        %v3735 = vld [vmem:[#allocation11 + $0x2f8] sm:$0xf]
        %v3736 = vld [vmem:[#allocation11 + $0x2fc] sm:$0xf]
        %v3737 = vld [vmem:[#allocation11 + $0x300] sm:$0xf]
        %v3738 = vld [vmem:[#allocation11 + $0x304] sm:$0xf]
        %v3739 = vld [vmem:[#allocation11 + $0x308] sm:$0xf]
        %v3740 = vld [vmem:[#allocation11 + $0x30c] sm:$0xf]
        %v3741 = vld [vmem:[#allocation11 + $0x310] sm:$0xf]
        %v3742 = vld [vmem:[#allocation11 + $0x314] sm:$0xf]
        %v3743 = vld [vmem:[#allocation11 + $0x318] sm:$0xf]
        %v3744 = vld [vmem:[#allocation11 + $0x31c] sm:$0xf]
        %v3745 = vld [vmem:[#allocation11 + $0x320] sm:$0xf]
        %v3746 = vld [vmem:[#allocation11 + $0x324] sm:$0xf]
        %v3747 = vld [vmem:[#allocation11 + $0x328] sm:$0xf]
        %v3748 = vld [vmem:[#allocation11 + $0x32c] sm:$0xf]
        %v3749 = vld [vmem:[#allocation11 + $0x330] sm:$0xf]
        %v3750 = vld [vmem:[#allocation11 + $0x334] sm:$0xf]
        %v3751 = vld [vmem:[#allocation11 + $0x338] sm:$0xf]
        %v3752 = vld [vmem:[#allocation11 + $0x33c] sm:$0xf]
        %v3753 = vld [vmem:[#allocation11 + $0x340] sm:$0xf]
        %v3754 = vld [vmem:[#allocation11 + $0x344] sm:$0xf]
        %v3755 = vld [vmem:[#allocation11 + $0x348] sm:$0xf]
        %v3756 = vld [vmem:[#allocation11 + $0x34c] sm:$0xf]
        %v3757 = vld [vmem:[#allocation11 + $0x350] sm:$0xf]
        %v3758 = vld [vmem:[#allocation11 + $0x354] sm:$0xf]
        %v3759 = vld [vmem:[#allocation11 + $0x358] sm:$0xf]
        %v3760 = vld [vmem:[#allocation11 + $0x35c] sm:$0xf]
        %v3761 = vld [vmem:[#allocation11 + $0x360] sm:$0xf]
        %v3762 = vld [vmem:[#allocation11 + $0x364] sm:$0xf]
        %v3763 = vld [vmem:[#allocation11 + $0x368] sm:$0xf]
        %v3764 = vld [vmem:[#allocation11 + $0x36c] sm:$0xf]
        %v3765 = vld [vmem:[#allocation11 + $0x370] sm:$0xf]
        %v3766 = vld [vmem:[#allocation11 + $0x374] sm:$0xf]
        %v3767 = vld [vmem:[#allocation11 + $0x378] sm:$0xf]
        %v3768 = vld [vmem:[#allocation11 + $0x37c] sm:$0xf]
        %v3769 = vld [vmem:[#allocation11 + $0x380] sm:$0xf]
        %v3770 = vld [vmem:[#allocation11 + $0x384] sm:$0xf]
        %v3771 = vld [vmem:[#allocation11 + $0x388] sm:$0xf]
        %v3772 = vld [vmem:[#allocation11 + $0x38c] sm:$0xf]
        %v3773 = vld [vmem:[#allocation11 + $0x390] sm:$0xf]
        %v3774 = vld [vmem:[#allocation11 + $0x394] sm:$0xf]
        %v3775 = vld [vmem:[#allocation11 + $0x398] sm:$0xf]
        %v3776 = vld [vmem:[#allocation11 + $0x39c] sm:$0xf]
        %v3777 = vld [vmem:[#allocation11 + $0x3a0] sm:$0xf]
        %v3778 = vld [vmem:[#allocation11 + $0x3a4] sm:$0xf]
        %v3779 = vld [vmem:[#allocation11 + $0x3a8] sm:$0xf]
        %v3780 = vld [vmem:[#allocation11 + $0x3ac] sm:$0xf]
        %v3781 = vld [vmem:[#allocation11 + $0x3b0] sm:$0xf]
        %v3782 = vld [vmem:[#allocation11 + $0x3b4] sm:$0xf]
        %v3783 = vld [vmem:[#allocation11 + $0x3b8] sm:$0xf]
        %v3784 = vld [vmem:[#allocation11 + $0x3bc] sm:$0xf]
        %v3801 = vunpack.c.l.b16 %v3529
        %v3802 = vunpack.c.h.b16 %v3529
        %v3803 = vunpack.c.l.b16 %v3530
        %v3804 = vunpack.c.h.b16 %v3530
        %v3805 = vunpack.c.l.b16 %v3531
        %v3806 = vunpack.c.h.b16 %v3531
        %v3807 = vunpack.c.l.b16 %v3532
        %v3808 = vunpack.c.h.b16 %v3532
        %v3809 = vunpack.c.l.b16 %v3533
        %v3810 = vunpack.c.h.b16 %v3533
        %v3811 = vunpack.c.l.b16 %v3534
        %v3812 = vunpack.c.h.b16 %v3534
        %v3813 = vunpack.c.l.b16 %v3535
        %v3814 = vunpack.c.h.b16 %v3535
        %v3815 = vunpack.c.l.b16 %v3536
        %v3816 = vunpack.c.l.b16 %v3537
        %v3817 = vunpack.c.h.b16 %v3537
        %v3818 = vunpack.c.l.b16 %v3538
        %v3819 = vunpack.c.h.b16 %v3538
        %v3820 = vunpack.c.l.b16 %v3539
        %v3821 = vunpack.c.h.b16 %v3539
        %v3822 = vunpack.c.l.b16 %v3540
        %v3823 = vunpack.c.h.b16 %v3540
        %v3824 = vunpack.c.l.b16 %v3541
        %v3825 = vunpack.c.h.b16 %v3541
        %v3826 = vunpack.c.l.b16 %v3542
        %v3827 = vunpack.c.h.b16 %v3542
        %v3828 = vunpack.c.l.b16 %v3543
        %v3829 = vunpack.c.h.b16 %v3543
        %v3830 = vunpack.c.l.b16 %v3544
        %v3831 = vpack.c.b16 %v3816, %v3801
        %v3832 = vpack.c.b16 %v3817, %v3802
        %v3833 = vpack.c.b16 %v3818, %v3803
        %v3834 = vpack.c.b16 %v3819, %v3804
        %v3835 = vpack.c.b16 %v3820, %v3805
        %v3836 = vpack.c.b16 %v3821, %v3806
        %v3837 = vpack.c.b16 %v3822, %v3807
        %v3838 = vpack.c.b16 %v3823, %v3808
        %v3839 = vpack.c.b16 %v3824, %v3809
        %v3840 = vpack.c.b16 %v3825, %v3810
        %v3841 = vpack.c.b16 %v3826, %v3811
        %v3842 = vpack.c.b16 %v3827, %v3812
        %v3843 = vpack.c.b16 %v3828, %v3813
        %v3844 = vpack.c.b16 %v3829, %v3814
        %v3845 = vpack.c.b16 %v3830, %v3815
        %v4101 = vunpack.c.l.b16 %v3545
        %v4102 = vunpack.c.l.b16 %v3546
        %v4103 = vunpack.c.l.b16 %v3547
        %v4104 = vunpack.c.l.b16 %v3548
        %v4105 = vunpack.c.l.b16 %v3549
        %v4106 = vunpack.c.l.b16 %v3550
        %v4107 = vunpack.c.l.b16 %v3551
        %v4108 = vunpack.c.l.b16 %v3552
        %v4109 = vunpack.c.l.b16 %v3553
        %v4110 = vunpack.c.l.b16 %v3554
        %v4111 = vunpack.c.l.b16 %v3555
        %v4112 = vunpack.c.l.b16 %v3556
        %v4113 = vunpack.c.l.b16 %v3557
        %v4114 = vunpack.c.l.b16 %v3558
        %v4115 = vunpack.c.l.b16 %v3559
        %v4116 = vunpack.c.l.b16 %v3560
        %v4117 = vunpack.c.l.b16 %v3561
        %v4118 = vunpack.c.l.b16 %v3562
        %v4119 = vunpack.c.l.b16 %v3563
        %v4120 = vunpack.c.l.b16 %v3564
        %v4121 = vunpack.c.l.b16 %v3565
        %v4122 = vunpack.c.l.b16 %v3566
        %v4123 = vunpack.c.l.b16 %v3567
        %v4124 = vunpack.c.l.b16 %v3568
        %v4125 = vunpack.c.l.b16 %v3569
        %v4126 = vunpack.c.l.b16 %v3570
        %v4127 = vunpack.c.l.b16 %v3571
        %v4128 = vunpack.c.l.b16 %v3572
        %v4129 = vunpack.c.l.b16 %v3573
        %v4130 = vunpack.c.l.b16 %v3574
        %v4131 = vunpack.c.l.b16 %v3575
        %v4132 = vunpack.c.l.b16 %v3576
        %v4133 = vunpack.c.l.b16 %v3577
        %v4134 = vunpack.c.l.b16 %v3578
        %v4135 = vunpack.c.l.b16 %v3579
        %v4136 = vunpack.c.l.b16 %v3580
        %v4137 = vunpack.c.l.b16 %v3581
        %v4138 = vunpack.c.l.b16 %v3582
        %v4139 = vunpack.c.l.b16 %v3583
        %v4140 = vunpack.c.l.b16 %v3584
        %v4141 = vunpack.c.l.b16 %v3585
        %v4142 = vunpack.c.l.b16 %v3586
        %v4143 = vunpack.c.l.b16 %v3587
        %v4144 = vunpack.c.l.b16 %v3588
        %v4145 = vunpack.c.l.b16 %v3589
        %v4146 = vunpack.c.l.b16 %v3590
        %v4147 = vunpack.c.l.b16 %v3591
        %v4148 = vunpack.c.l.b16 %v3592
        %v4149 = vunpack.c.l.b16 %v3593
        %v4150 = vunpack.c.l.b16 %v3594
        %v4151 = vunpack.c.l.b16 %v3595
        %v4152 = vunpack.c.l.b16 %v3596
        %v4153 = vunpack.c.l.b16 %v3597
        %v4154 = vunpack.c.l.b16 %v3598
        %v4155 = vunpack.c.l.b16 %v3599
        %v4156 = vunpack.c.l.b16 %v3600
        %v4157 = vunpack.c.l.b16 %v3601
        %v4158 = vunpack.c.l.b16 %v3602
        %v4159 = vunpack.c.l.b16 %v3603
        %v4160 = vunpack.c.l.b16 %v3604
        %v4161 = vunpack.c.l.b16 %v3605
        %v4162 = vunpack.c.l.b16 %v3606
        %v4163 = vunpack.c.l.b16 %v3607
        %v4164 = vunpack.c.l.b16 %v3608
        %v4165 = vunpack.c.l.b16 %v3609
        %v4166 = vunpack.c.l.b16 %v3610
        %v4167 = vunpack.c.l.b16 %v3611
        %v4168 = vunpack.c.l.b16 %v3612
        %v4169 = vunpack.c.l.b16 %v3613
        %v4170 = vunpack.c.l.b16 %v3614
        %v4171 = vunpack.c.l.b16 %v3615
        %v4172 = vunpack.c.l.b16 %v3616
        %v4173 = vunpack.c.l.b16 %v3617
        %v4174 = vunpack.c.l.b16 %v3618
        %v4175 = vunpack.c.l.b16 %v3619
        %v4176 = vunpack.c.l.b16 %v3620
        %v4177 = vunpack.c.l.b16 %v3621
        %v4178 = vunpack.c.l.b16 %v3622
        %v4179 = vunpack.c.l.b16 %v3623
        %v4180 = vunpack.c.l.b16 %v3624
        %v4181 = vunpack.c.l.b16 %v3625
        %v4182 = vunpack.c.l.b16 %v3626
        %v4183 = vunpack.c.l.b16 %v3627
        %v4184 = vunpack.c.l.b16 %v3628
        %v4185 = vunpack.c.l.b16 %v3629
        %v4186 = vunpack.c.l.b16 %v3630
        %v4187 = vunpack.c.l.b16 %v3631
        %v4188 = vunpack.c.l.b16 %v3632
        %v4189 = vunpack.c.l.b16 %v3633
        %v4190 = vunpack.c.l.b16 %v3634
        %v4191 = vunpack.c.l.b16 %v3635
        %v4192 = vunpack.c.l.b16 %v3636
        %v4193 = vunpack.c.l.b16 %v3637
        %v4194 = vunpack.c.l.b16 %v3638
        %v4195 = vunpack.c.l.b16 %v3639
        %v4196 = vunpack.c.l.b16 %v3640
        %v4197 = vunpack.c.l.b16 %v3641
        %v4198 = vunpack.c.l.b16 %v3642
        %v4199 = vunpack.c.l.b16 %v3643
        %v4200 = vunpack.c.l.b16 %v3644
        %v4201 = vunpack.c.l.b16 %v3645
        %v4202 = vunpack.c.l.b16 %v3646
        %v4203 = vunpack.c.l.b16 %v3647
        %v4204 = vunpack.c.l.b16 %v3648
        %v4205 = vunpack.c.l.b16 %v3649
        %v4206 = vunpack.c.l.b16 %v3650
        %v4207 = vunpack.c.l.b16 %v3651
        %v4208 = vunpack.c.l.b16 %v3652
        %v4209 = vunpack.c.l.b16 %v3653
        %v4210 = vunpack.c.l.b16 %v3654
        %v4211 = vunpack.c.l.b16 %v3655
        %v4212 = vunpack.c.l.b16 %v3656
        %v4213 = vunpack.c.l.b16 %v3657
        %v4214 = vunpack.c.l.b16 %v3658
        %v4215 = vunpack.c.l.b16 %v3659
        %v4216 = vunpack.c.l.b16 %v3660
        %v4217 = vunpack.c.l.b16 %v3661
        %v4218 = vunpack.c.l.b16 %v3662
        %v4219 = vunpack.c.l.b16 %v3663
        %v4220 = vunpack.c.l.b16 %v3664
        %v4221 = vunpack.c.l.b16 %v3665
        %v4222 = vunpack.c.l.b16 %v3666
        %v4223 = vunpack.c.l.b16 %v3667
        %v4224 = vunpack.c.l.b16 %v3668
        %v4225 = vunpack.c.l.b16 %v3669
        %v4226 = vunpack.c.l.b16 %v3670
        %v4227 = vunpack.c.l.b16 %v3671
        %v4228 = vunpack.c.l.b16 %v3672
        %v4229 = vunpack.c.l.b16 %v3673
        %v4230 = vunpack.c.l.b16 %v3674
        %v4231 = vunpack.c.l.b16 %v3675
        %v4232 = vunpack.c.l.b16 %v3676
        %v4233 = vunpack.c.l.b16 %v3677
        %v4234 = vunpack.c.l.b16 %v3678
        %v4235 = vunpack.c.l.b16 %v3679
        %v4236 = vunpack.c.l.b16 %v3680
        %v4237 = vunpack.c.l.b16 %v3681
        %v4238 = vunpack.c.l.b16 %v3682
        %v4239 = vunpack.c.l.b16 %v3683
        %v4240 = vunpack.c.l.b16 %v3684
        %v4241 = vunpack.c.l.b16 %v3685
        %v4242 = vunpack.c.l.b16 %v3686
        %v4243 = vunpack.c.l.b16 %v3687
        %v4244 = vunpack.c.l.b16 %v3688
        %v4245 = vunpack.c.l.b16 %v3689
        %v4246 = vunpack.c.l.b16 %v3690
        %v4247 = vunpack.c.l.b16 %v3691
        %v4248 = vunpack.c.l.b16 %v3692
        %v4249 = vunpack.c.l.b16 %v3693
        %v4250 = vunpack.c.l.b16 %v3694
        %v4251 = vunpack.c.l.b16 %v3695
        %v4252 = vunpack.c.l.b16 %v3696
        %v4253 = vunpack.c.l.b16 %v3697
        %v4254 = vunpack.c.l.b16 %v3698
        %v4255 = vunpack.c.l.b16 %v3699
        %v4256 = vunpack.c.l.b16 %v3700
        %v4257 = vunpack.c.l.b16 %v3701
        %v4258 = vunpack.c.l.b16 %v3702
        %v4259 = vunpack.c.l.b16 %v3703
        %v4260 = vunpack.c.l.b16 %v3704
        %v4261 = vunpack.c.l.b16 %v3705
        %v4262 = vunpack.c.l.b16 %v3706
        %v4263 = vunpack.c.l.b16 %v3707
        %v4264 = vunpack.c.l.b16 %v3708
        %v4265 = vunpack.c.l.b16 %v3709
        %v4266 = vunpack.c.l.b16 %v3710
        %v4267 = vunpack.c.l.b16 %v3711
        %v4268 = vunpack.c.l.b16 %v3712
        %v4269 = vunpack.c.l.b16 %v3713
        %v4270 = vunpack.c.l.b16 %v3714
        %v4271 = vunpack.c.l.b16 %v3715
        %v4272 = vunpack.c.l.b16 %v3716
        %v4273 = vunpack.c.l.b16 %v3717
        %v4274 = vunpack.c.l.b16 %v3718
        %v4275 = vunpack.c.l.b16 %v3719
        %v4276 = vunpack.c.l.b16 %v3720
        %v4277 = vunpack.c.l.b16 %v3721
        %v4278 = vunpack.c.l.b16 %v3722
        %v4279 = vunpack.c.l.b16 %v3723
        %v4280 = vunpack.c.l.b16 %v3724
        %v4281 = vunpack.c.l.b16 %v3725
        %v4282 = vunpack.c.l.b16 %v3726
        %v4283 = vunpack.c.l.b16 %v3727
        %v4284 = vunpack.c.l.b16 %v3728
        %v4285 = vunpack.c.l.b16 %v3729
        %v4286 = vunpack.c.l.b16 %v3730
        %v4287 = vunpack.c.l.b16 %v3731
        %v4288 = vunpack.c.l.b16 %v3732
        %v4289 = vunpack.c.l.b16 %v3733
        %v4290 = vunpack.c.l.b16 %v3734
        %v4291 = vunpack.c.l.b16 %v3735
        %v4292 = vunpack.c.l.b16 %v3736
        %v4293 = vunpack.c.l.b16 %v3737
        %v4294 = vunpack.c.l.b16 %v3738
        %v4295 = vunpack.c.l.b16 %v3739
        %v4296 = vunpack.c.l.b16 %v3740
        %v4297 = vunpack.c.l.b16 %v3741
        %v4298 = vunpack.c.l.b16 %v3742
        %v4299 = vunpack.c.l.b16 %v3743
        %v4300 = vunpack.c.l.b16 %v3744
        %v4301 = vunpack.c.l.b16 %v3745
        %v4302 = vunpack.c.l.b16 %v3746
        %v4303 = vunpack.c.l.b16 %v3747
        %v4304 = vunpack.c.l.b16 %v3748
        %v4305 = vunpack.c.l.b16 %v3749
        %v4306 = vunpack.c.l.b16 %v3750
        %v4307 = vunpack.c.l.b16 %v3751
        %v4308 = vunpack.c.l.b16 %v3752
        %v4309 = vunpack.c.l.b16 %v3753
        %v4310 = vunpack.c.l.b16 %v3754
        %v4311 = vunpack.c.l.b16 %v3755
        %v4312 = vunpack.c.l.b16 %v3756
        %v4313 = vunpack.c.l.b16 %v3757
        %v4314 = vunpack.c.l.b16 %v3758
        %v4315 = vunpack.c.l.b16 %v3759
        %v4316 = vunpack.c.l.b16 %v3760
        %v4317 = vunpack.c.l.b16 %v3761
        %v4318 = vunpack.c.l.b16 %v3762
        %v4319 = vunpack.c.l.b16 %v3763
        %v4320 = vunpack.c.l.b16 %v3764
        %v4321 = vunpack.c.l.b16 %v3765
        %v4322 = vunpack.c.l.b16 %v3766
        %v4323 = vunpack.c.l.b16 %v3767
        %v4324 = vunpack.c.l.b16 %v3768
        %v4325 = vunpack.c.l.b16 %v3769
        %v4326 = vunpack.c.l.b16 %v3770
        %v4327 = vunpack.c.l.b16 %v3771
        %v4328 = vunpack.c.l.b16 %v3772
        %v4329 = vunpack.c.l.b16 %v3773
        %v4330 = vunpack.c.l.b16 %v3774
        %v4331 = vunpack.c.l.b16 %v3775
        %v4332 = vunpack.c.l.b16 %v3776
        %v4333 = vunpack.c.l.b16 %v3777
        %v4334 = vunpack.c.l.b16 %v3778
        %v4335 = vunpack.c.l.b16 %v3779
        %v4336 = vunpack.c.l.b16 %v3780
        %v4337 = vunpack.c.l.b16 %v3781
        %v4338 = vunpack.c.l.b16 %v3782
        %v4339 = vunpack.c.l.b16 %v3783
        %v4340 = vunpack.c.l.b16 %v3784
        %v4341 = vpack.c.b16 %v4102, %v4101
        %v4342 = vpack.c.b16 %v4104, %v4103
        %v4343 = vpack.c.b16 %v4106, %v4105
        %v4344 = vpack.c.b16 %v4108, %v4107
        %v4345 = vpack.c.b16 %v4110, %v4109
        %v4346 = vpack.c.b16 %v4112, %v4111
        %v4347 = vpack.c.b16 %v4114, %v4113
        %v4348 = vpack.c.b16 %v4116, %v4115
        %v4349 = vpack.c.b16 %v4118, %v4117
        %v4350 = vpack.c.b16 %v4120, %v4119
        %v4351 = vpack.c.b16 %v4122, %v4121
        %v4352 = vpack.c.b16 %v4124, %v4123
        %v4353 = vpack.c.b16 %v4126, %v4125
        %v4354 = vpack.c.b16 %v4128, %v4127
        %v4355 = vpack.c.b16 %v4130, %v4129
        %v4356 = vpack.c.b16 %v4132, %v4131
        %v4357 = vpack.c.b16 %v4134, %v4133
        %v4358 = vpack.c.b16 %v4136, %v4135
        %v4359 = vpack.c.b16 %v4138, %v4137
        %v4360 = vpack.c.b16 %v4140, %v4139
        %v4361 = vpack.c.b16 %v4142, %v4141
        %v4362 = vpack.c.b16 %v4144, %v4143
        %v4363 = vpack.c.b16 %v4146, %v4145
        %v4364 = vpack.c.b16 %v4148, %v4147
        %v4365 = vpack.c.b16 %v4150, %v4149
        %v4366 = vpack.c.b16 %v4152, %v4151
        %v4367 = vpack.c.b16 %v4154, %v4153
        %v4368 = vpack.c.b16 %v4156, %v4155
        %v4369 = vpack.c.b16 %v4158, %v4157
        %v4370 = vpack.c.b16 %v4160, %v4159
        %v4371 = vpack.c.b16 %v4162, %v4161
        %v4372 = vpack.c.b16 %v4164, %v4163
        %v4373 = vpack.c.b16 %v4166, %v4165
        %v4374 = vpack.c.b16 %v4168, %v4167
        %v4375 = vpack.c.b16 %v4170, %v4169
        %v4376 = vpack.c.b16 %v4172, %v4171
        %v4377 = vpack.c.b16 %v4174, %v4173
        %v4378 = vpack.c.b16 %v4176, %v4175
        %v4379 = vpack.c.b16 %v4178, %v4177
        %v4380 = vpack.c.b16 %v4180, %v4179
        %v4381 = vpack.c.b16 %v4182, %v4181
        %v4382 = vpack.c.b16 %v4184, %v4183
        %v4383 = vpack.c.b16 %v4186, %v4185
        %v4384 = vpack.c.b16 %v4188, %v4187
        %v4385 = vpack.c.b16 %v4190, %v4189
        %v4386 = vpack.c.b16 %v4192, %v4191
        %v4387 = vpack.c.b16 %v4194, %v4193
        %v4388 = vpack.c.b16 %v4196, %v4195
        %v4389 = vpack.c.b16 %v4198, %v4197
        %v4390 = vpack.c.b16 %v4200, %v4199
        %v4391 = vpack.c.b16 %v4202, %v4201
        %v4392 = vpack.c.b16 %v4204, %v4203
        %v4393 = vpack.c.b16 %v4206, %v4205
        %v4394 = vpack.c.b16 %v4208, %v4207
        %v4395 = vpack.c.b16 %v4210, %v4209
        %v4396 = vpack.c.b16 %v4212, %v4211
        %v4397 = vpack.c.b16 %v4214, %v4213
        %v4398 = vpack.c.b16 %v4216, %v4215
        %v4399 = vpack.c.b16 %v4218, %v4217
        %v4400 = vpack.c.b16 %v4220, %v4219
        %v4401 = vpack.c.b16 %v4222, %v4221
        %v4402 = vpack.c.b16 %v4224, %v4223
        %v4403 = vpack.c.b16 %v4226, %v4225
        %v4404 = vpack.c.b16 %v4228, %v4227
        %v4405 = vpack.c.b16 %v4230, %v4229
        %v4406 = vpack.c.b16 %v4232, %v4231
        %v4407 = vpack.c.b16 %v4234, %v4233
        %v4408 = vpack.c.b16 %v4236, %v4235
        %v4409 = vpack.c.b16 %v4238, %v4237
        %v4410 = vpack.c.b16 %v4240, %v4239
        %v4411 = vpack.c.b16 %v4242, %v4241
        %v4412 = vpack.c.b16 %v4244, %v4243
        %v4413 = vpack.c.b16 %v4246, %v4245
        %v4414 = vpack.c.b16 %v4248, %v4247
        %v4415 = vpack.c.b16 %v4250, %v4249
        %v4416 = vpack.c.b16 %v4252, %v4251
        %v4417 = vpack.c.b16 %v4254, %v4253
        %v4418 = vpack.c.b16 %v4256, %v4255
        %v4419 = vpack.c.b16 %v4258, %v4257
        %v4420 = vpack.c.b16 %v4260, %v4259
        %v4421 = vpack.c.b16 %v4262, %v4261
        %v4422 = vpack.c.b16 %v4264, %v4263
        %v4423 = vpack.c.b16 %v4266, %v4265
        %v4424 = vpack.c.b16 %v4268, %v4267
        %v4425 = vpack.c.b16 %v4270, %v4269
        %v4426 = vpack.c.b16 %v4272, %v4271
        %v4427 = vpack.c.b16 %v4274, %v4273
        %v4428 = vpack.c.b16 %v4276, %v4275
        %v4429 = vpack.c.b16 %v4278, %v4277
        %v4430 = vpack.c.b16 %v4280, %v4279
        %v4431 = vpack.c.b16 %v4282, %v4281
        %v4432 = vpack.c.b16 %v4284, %v4283
        %v4433 = vpack.c.b16 %v4286, %v4285
        %v4434 = vpack.c.b16 %v4288, %v4287
        %v4435 = vpack.c.b16 %v4290, %v4289
        %v4436 = vpack.c.b16 %v4292, %v4291
        %v4437 = vpack.c.b16 %v4294, %v4293
        %v4438 = vpack.c.b16 %v4296, %v4295
        %v4439 = vpack.c.b16 %v4298, %v4297
        %v4440 = vpack.c.b16 %v4300, %v4299
        %v4441 = vpack.c.b16 %v4302, %v4301
        %v4442 = vpack.c.b16 %v4304, %v4303
        %v4443 = vpack.c.b16 %v4306, %v4305
        %v4444 = vpack.c.b16 %v4308, %v4307
        %v4445 = vpack.c.b16 %v4310, %v4309
        %v4446 = vpack.c.b16 %v4312, %v4311
        %v4447 = vpack.c.b16 %v4314, %v4313
        %v4448 = vpack.c.b16 %v4316, %v4315
        %v4449 = vpack.c.b16 %v4318, %v4317
        %v4450 = vpack.c.b16 %v4320, %v4319
        %v4451 = vpack.c.b16 %v4322, %v4321
        %v4452 = vpack.c.b16 %v4324, %v4323
        %v4453 = vpack.c.b16 %v4326, %v4325
        %v4454 = vpack.c.b16 %v4328, %v4327
        %v4455 = vpack.c.b16 %v4330, %v4329
        %v4456 = vpack.c.b16 %v4332, %v4331
        %v4457 = vpack.c.b16 %v4334, %v4333
        %v4458 = vpack.c.b16 %v4336, %v4335
        %v4459 = vpack.c.b16 %v4338, %v4337
        %v4460 = vpack.c.b16 %v4340, %v4339
        %4581 = vmatprep.subr.bf16.mxu0 0
        %4582 = vmatpush1.bf16.msra.mxu0 %v4348
        %4583 = vmatprep.subr.bf16.mxu0 0
        %4584 = vmatpush1.bf16.msra.mxu0 %v4347
        %4585 = vmatprep.subr.bf16.mxu0 0
        %4586 = vmatpush1.bf16.msra.mxu0 %v4346
        %4587 = vmatprep.subr.bf16.mxu0 0
        %4588 = vmatpush1.bf16.msra.mxu0 %v4345
        %4589 = vmatprep.subr.bf16.mxu0 0
        %4590 = vmatpush1.bf16.msra.mxu0 %v4344
        %4591 = vmatprep.subr.bf16.mxu0 0
        %4592 = vmatpush1.bf16.msra.mxu0 %v4343
        %4593 = vmatprep.subr.bf16.mxu0 0
        %4594 = vmatpush1.bf16.msra.mxu0 %v4342
        %4595 = vmatprep.subr.bf16.mxu0 0
        %4596 = vmatpush1.bf16.msra.mxu0 %v4341
        %4597 = vmatprep.subr.bf16.mxu0 0
        %4598 = vmatpush2.bf16.msra.mxu0 %v4356
        %4599 = vmatprep.subr.bf16.mxu0 0
        %4600 = vmatpush2.bf16.msra.mxu0 %v4355
        %4601 = vmatprep.subr.bf16.mxu0 0
        %4602 = vmatpush2.bf16.msra.mxu0 %v4354
        %4603 = vmatprep.subr.bf16.mxu0 0
        %4604 = vmatpush2.bf16.msra.mxu0 %v4353
        %4605 = vmatprep.subr.bf16.mxu0 0
        %4606 = vmatpush2.bf16.msra.mxu0 %v4352
        %4607 = vmatprep.subr.bf16.mxu0 0
        %4608 = vmatpush2.bf16.msra.mxu0 %v4351
        %4609 = vmatprep.subr.bf16.mxu0 0
        %4610 = vmatpush2.bf16.msra.mxu0 %v4350
        %4611 = vmatprep.subr.bf16.mxu0 0
        %4612 = vmatpush2.bf16.msra.mxu0 %v4349
        %4613 = vmatprep.mubr.bf16.mxu0 %v3832
        %4614 = vmatmul.mubr.bf16.gmra.mxu0 %v3831
        %v4615 = vpop.f32.mrf.mxu0
        %v4616 = vadd.f32 0.0, %v4615
        %v4617 = vpop.f32.mrf.mxu0
        %v4618 = vpop.f32.mrf.mxu0
        %v4619 = vadd.f32 0.0, %v4618
        %v4620 = vpop.f32.mrf.mxu0
        %4621 = vdwg.mxu0
        %4622 = vmatprep.subr.bf16.mxu0 0
        %4623 = vmatpush1.bf16.msra.mxu0 %v4364
        %4624 = vmatprep.subr.bf16.mxu0 0
        %4625 = vmatpush1.bf16.msra.mxu0 %v4363
        %4626 = vmatprep.subr.bf16.mxu0 0
        %4627 = vmatpush1.bf16.msra.mxu0 %v4362
        %4628 = vmatprep.subr.bf16.mxu0 0
        %4629 = vmatpush1.bf16.msra.mxu0 %v4361
        %4630 = vmatprep.subr.bf16.mxu0 0
        %4631 = vmatpush1.bf16.msra.mxu0 %v4360
        %4632 = vmatprep.subr.bf16.mxu0 0
        %4633 = vmatpush1.bf16.msra.mxu0 %v4359
        %4634 = vmatprep.subr.bf16.mxu0 0
        %4635 = vmatpush1.bf16.msra.mxu0 %v4358
        %4636 = vmatprep.subr.bf16.mxu0 0
        %4637 = vmatpush1.bf16.msra.mxu0 %v4357
        %4638 = vmatprep.subr.bf16.mxu0 0
        %4639 = vmatpush2.bf16.msra.mxu0 %v4372
        %4640 = vmatprep.subr.bf16.mxu0 0
        %4641 = vmatpush2.bf16.msra.mxu0 %v4371
        %4642 = vmatprep.subr.bf16.mxu0 0
        %4643 = vmatpush2.bf16.msra.mxu0 %v4370
        %4644 = vmatprep.subr.bf16.mxu0 0
        %4645 = vmatpush2.bf16.msra.mxu0 %v4369
        %4646 = vmatprep.subr.bf16.mxu0 0
        %4647 = vmatpush2.bf16.msra.mxu0 %v4368
        %4648 = vmatprep.subr.bf16.mxu0 0
        %4649 = vmatpush2.bf16.msra.mxu0 %v4367
        %4650 = vmatprep.subr.bf16.mxu0 0
        %4651 = vmatpush2.bf16.msra.mxu0 %v4366
        %4652 = vmatprep.subr.bf16.mxu0 0
        %4653 = vmatpush2.bf16.msra.mxu0 %v4365
        %4654 = vmatprep.mubr.bf16.mxu0 %v3834
        %4655 = vmatmul.mubr.bf16.gmra.mxu0 %v3833
        %v4656 = vpop.f32.mrf.mxu0
        %v4657 = vadd.f32 %v4616, %v4656
        %v4658 = vpop.f32.mrf.mxu0
        %v4659 = vpop.f32.mrf.mxu0
        %v4660 = vadd.f32 %v4619, %v4659
        %v4661 = vpop.f32.mrf.mxu0
        %4662 = vdwg.mxu0
        %4663 = vmatprep.subr.bf16.mxu0 0
        %4664 = vmatpush1.bf16.msra.mxu0 %v4380
        %4665 = vmatprep.subr.bf16.mxu0 0
        %4666 = vmatpush1.bf16.msra.mxu0 %v4379
        %4667 = vmatprep.subr.bf16.mxu0 0
        %4668 = vmatpush1.bf16.msra.mxu0 %v4378
        %4669 = vmatprep.subr.bf16.mxu0 0
        %4670 = vmatpush1.bf16.msra.mxu0 %v4377
        %4671 = vmatprep.subr.bf16.mxu0 0
        %4672 = vmatpush1.bf16.msra.mxu0 %v4376
        %4673 = vmatprep.subr.bf16.mxu0 0
        %4674 = vmatpush1.bf16.msra.mxu0 %v4375
        %4675 = vmatprep.subr.bf16.mxu0 0
        %4676 = vmatpush1.bf16.msra.mxu0 %v4374
        %4677 = vmatprep.subr.bf16.mxu0 0
        %4678 = vmatpush1.bf16.msra.mxu0 %v4373
        %4679 = vmatprep.subr.bf16.mxu0 0
        %4680 = vmatpush2.bf16.msra.mxu0 %v4388
        %4681 = vmatprep.subr.bf16.mxu0 0
        %4682 = vmatpush2.bf16.msra.mxu0 %v4387
        %4683 = vmatprep.subr.bf16.mxu0 0
        %4684 = vmatpush2.bf16.msra.mxu0 %v4386
        %4685 = vmatprep.subr.bf16.mxu0 0
        %4686 = vmatpush2.bf16.msra.mxu0 %v4385
        %4687 = vmatprep.subr.bf16.mxu0 0
        %4688 = vmatpush2.bf16.msra.mxu0 %v4384
        %4689 = vmatprep.subr.bf16.mxu0 0
        %4690 = vmatpush2.bf16.msra.mxu0 %v4383
        %4691 = vmatprep.subr.bf16.mxu0 0
        %4692 = vmatpush2.bf16.msra.mxu0 %v4382
        %4693 = vmatprep.subr.bf16.mxu0 0
        %4694 = vmatpush2.bf16.msra.mxu0 %v4381
        %4695 = vmatprep.mubr.bf16.mxu0 %v3836
        %4696 = vmatmul.mubr.bf16.gmra.mxu0 %v3835
        %v4697 = vpop.f32.mrf.mxu0
        %v4698 = vadd.f32 %v4657, %v4697
        %v4699 = vpop.f32.mrf.mxu0
        %v4700 = vpop.f32.mrf.mxu0
        %v4701 = vadd.f32 %v4660, %v4700
        %v4702 = vpop.f32.mrf.mxu0
        %4703 = vdwg.mxu0
        %4704 = vmatprep.subr.bf16.mxu0 0
        %4705 = vmatpush1.bf16.msra.mxu0 %v4396
        %4706 = vmatprep.subr.bf16.mxu0 0
        %4707 = vmatpush1.bf16.msra.mxu0 %v4395
        %4708 = vmatprep.subr.bf16.mxu0 0
        %4709 = vmatpush1.bf16.msra.mxu0 %v4394
        %4710 = vmatprep.subr.bf16.mxu0 0
        %4711 = vmatpush1.bf16.msra.mxu0 %v4393
        %4712 = vmatprep.subr.bf16.mxu0 0
        %4713 = vmatpush1.bf16.msra.mxu0 %v4392
        %4714 = vmatprep.subr.bf16.mxu0 0
        %4715 = vmatpush1.bf16.msra.mxu0 %v4391
        %4716 = vmatprep.subr.bf16.mxu0 0
        %4717 = vmatpush1.bf16.msra.mxu0 %v4390
        %4718 = vmatprep.subr.bf16.mxu0 0
        %4719 = vmatpush1.bf16.msra.mxu0 %v4389
        %4720 = vmatprep.subr.bf16.mxu0 0
        %4721 = vmatpush2.bf16.msra.mxu0 %v4404
        %4722 = vmatprep.subr.bf16.mxu0 0
        %4723 = vmatpush2.bf16.msra.mxu0 %v4403
        %4724 = vmatprep.subr.bf16.mxu0 0
        %4725 = vmatpush2.bf16.msra.mxu0 %v4402
        %4726 = vmatprep.subr.bf16.mxu0 0
        %4727 = vmatpush2.bf16.msra.mxu0 %v4401
        %4728 = vmatprep.subr.bf16.mxu0 0
        %4729 = vmatpush2.bf16.msra.mxu0 %v4400
        %4730 = vmatprep.subr.bf16.mxu0 0
        %4731 = vmatpush2.bf16.msra.mxu0 %v4399
        %4732 = vmatprep.subr.bf16.mxu0 0
        %4733 = vmatpush2.bf16.msra.mxu0 %v4398
        %4734 = vmatprep.subr.bf16.mxu0 0
        %4735 = vmatpush2.bf16.msra.mxu0 %v4397
        %4736 = vmatprep.mubr.bf16.mxu0 %v3838
        %4737 = vmatmul.mubr.bf16.gmra.mxu0 %v3837
        %v4738 = vpop.f32.mrf.mxu0
        %v4739 = vadd.f32 %v4698, %v4738
        %v4740 = vpop.f32.mrf.mxu0
        %v4741 = vpop.f32.mrf.mxu0
        %v4742 = vadd.f32 %v4701, %v4741
        %v4743 = vpop.f32.mrf.mxu0
        %4744 = vdwg.mxu0
        %4745 = vmatprep.subr.bf16.mxu0 0
        %4746 = vmatpush1.bf16.msra.mxu0 %v4412
        %4747 = vmatprep.subr.bf16.mxu0 0
        %4748 = vmatpush1.bf16.msra.mxu0 %v4411
        %4749 = vmatprep.subr.bf16.mxu0 0
        %4750 = vmatpush1.bf16.msra.mxu0 %v4410
        %4751 = vmatprep.subr.bf16.mxu0 0
        %4752 = vmatpush1.bf16.msra.mxu0 %v4409
        %4753 = vmatprep.subr.bf16.mxu0 0
        %4754 = vmatpush1.bf16.msra.mxu0 %v4408
        %4755 = vmatprep.subr.bf16.mxu0 0
        %4756 = vmatpush1.bf16.msra.mxu0 %v4407
        %4757 = vmatprep.subr.bf16.mxu0 0
        %4758 = vmatpush1.bf16.msra.mxu0 %v4406
        %4759 = vmatprep.subr.bf16.mxu0 0
        %4760 = vmatpush1.bf16.msra.mxu0 %v4405
        %4761 = vmatprep.subr.bf16.mxu0 0
        %4762 = vmatpush2.bf16.msra.mxu0 %v4420
        %4763 = vmatprep.subr.bf16.mxu0 0
        %4764 = vmatpush2.bf16.msra.mxu0 %v4419
        %4765 = vmatprep.subr.bf16.mxu0 0
        %4766 = vmatpush2.bf16.msra.mxu0 %v4418
        %4767 = vmatprep.subr.bf16.mxu0 0
        %4768 = vmatpush2.bf16.msra.mxu0 %v4417
        %4769 = vmatprep.subr.bf16.mxu0 0
        %4770 = vmatpush2.bf16.msra.mxu0 %v4416
        %4771 = vmatprep.subr.bf16.mxu0 0
        %4772 = vmatpush2.bf16.msra.mxu0 %v4415
        %4773 = vmatprep.subr.bf16.mxu0 0
        %4774 = vmatpush2.bf16.msra.mxu0 %v4414
        %4775 = vmatprep.subr.bf16.mxu0 0
        %4776 = vmatpush2.bf16.msra.mxu0 %v4413
        %4777 = vmatprep.mubr.bf16.mxu0 %v3840
        %4778 = vmatmul.mubr.bf16.gmra.mxu0 %v3839
        %v4779 = vpop.f32.mrf.mxu0
        %v4780 = vadd.f32 %v4739, %v4779
        %v4781 = vpop.f32.mrf.mxu0
        %v4782 = vpop.f32.mrf.mxu0
        %v4783 = vadd.f32 %v4742, %v4782
        %v4784 = vpop.f32.mrf.mxu0
        %4785 = vdwg.mxu0
        %4786 = vmatprep.subr.bf16.mxu0 0
        %4787 = vmatpush1.bf16.msra.mxu0 %v4428
        %4788 = vmatprep.subr.bf16.mxu0 0
        %4789 = vmatpush1.bf16.msra.mxu0 %v4427
        %4790 = vmatprep.subr.bf16.mxu0 0
        %4791 = vmatpush1.bf16.msra.mxu0 %v4426
        %4792 = vmatprep.subr.bf16.mxu0 0
        %4793 = vmatpush1.bf16.msra.mxu0 %v4425
        %4794 = vmatprep.subr.bf16.mxu0 0
        %4795 = vmatpush1.bf16.msra.mxu0 %v4424
        %4796 = vmatprep.subr.bf16.mxu0 0
        %4797 = vmatpush1.bf16.msra.mxu0 %v4423
        %4798 = vmatprep.subr.bf16.mxu0 0
        %4799 = vmatpush1.bf16.msra.mxu0 %v4422
        %4800 = vmatprep.subr.bf16.mxu0 0
        %4801 = vmatpush1.bf16.msra.mxu0 %v4421
        %4802 = vmatprep.subr.bf16.mxu0 0
        %4803 = vmatpush2.bf16.msra.mxu0 %v4436
        %4804 = vmatprep.subr.bf16.mxu0 0
        %4805 = vmatpush2.bf16.msra.mxu0 %v4435
        %4806 = vmatprep.subr.bf16.mxu0 0
        %4807 = vmatpush2.bf16.msra.mxu0 %v4434
        %4808 = vmatprep.subr.bf16.mxu0 0
        %4809 = vmatpush2.bf16.msra.mxu0 %v4433
        %4810 = vmatprep.subr.bf16.mxu0 0
        %4811 = vmatpush2.bf16.msra.mxu0 %v4432
        %4812 = vmatprep.subr.bf16.mxu0 0
        %4813 = vmatpush2.bf16.msra.mxu0 %v4431
        %4814 = vmatprep.subr.bf16.mxu0 0
        %4815 = vmatpush2.bf16.msra.mxu0 %v4430
        %4816 = vmatprep.subr.bf16.mxu0 0
        %4817 = vmatpush2.bf16.msra.mxu0 %v4429
        %4818 = vmatprep.mubr.bf16.mxu0 %v3842
        %4819 = vmatmul.mubr.bf16.gmra.mxu0 %v3841
        %v4820 = vpop.f32.mrf.mxu0
        %v4821 = vadd.f32 %v4780, %v4820
        %v4822 = vpop.f32.mrf.mxu0
        %v4823 = vpop.f32.mrf.mxu0
        %v4824 = vadd.f32 %v4783, %v4823
        %v4825 = vpop.f32.mrf.mxu0
        %4826 = vdwg.mxu0
        %4827 = vmatprep.subr.bf16.mxu0 0
        %4828 = vmatpush1.bf16.msra.mxu0 %v4444
        %4829 = vmatprep.subr.bf16.mxu0 0
        %4830 = vmatpush1.bf16.msra.mxu0 %v4443
        %4831 = vmatprep.subr.bf16.mxu0 0
        %4832 = vmatpush1.bf16.msra.mxu0 %v4442
        %4833 = vmatprep.subr.bf16.mxu0 0
        %4834 = vmatpush1.bf16.msra.mxu0 %v4441
        %4835 = vmatprep.subr.bf16.mxu0 0
        %4836 = vmatpush1.bf16.msra.mxu0 %v4440
        %4837 = vmatprep.subr.bf16.mxu0 0
        %4838 = vmatpush1.bf16.msra.mxu0 %v4439
        %4839 = vmatprep.subr.bf16.mxu0 0
        %4840 = vmatpush1.bf16.msra.mxu0 %v4438
        %4841 = vmatprep.subr.bf16.mxu0 0
        %4842 = vmatpush1.bf16.msra.mxu0 %v4437
        %4843 = vmatprep.subr.bf16.mxu0 0
        %4844 = vmatpush2.bf16.msra.mxu0 %v4452
        %4845 = vmatprep.subr.bf16.mxu0 0
        %4846 = vmatpush2.bf16.msra.mxu0 %v4451
        %4847 = vmatprep.subr.bf16.mxu0 0
        %4848 = vmatpush2.bf16.msra.mxu0 %v4450
        %4849 = vmatprep.subr.bf16.mxu0 0
        %4850 = vmatpush2.bf16.msra.mxu0 %v4449
        %4851 = vmatprep.subr.bf16.mxu0 0
        %4852 = vmatpush2.bf16.msra.mxu0 %v4448
        %4853 = vmatprep.subr.bf16.mxu0 0
        %4854 = vmatpush2.bf16.msra.mxu0 %v4447
        %4855 = vmatprep.subr.bf16.mxu0 0
        %4856 = vmatpush2.bf16.msra.mxu0 %v4446
        %4857 = vmatprep.subr.bf16.mxu0 0
        %4858 = vmatpush2.bf16.msra.mxu0 %v4445
        %4859 = vmatprep.mubr.bf16.mxu0 %v3844
        %4860 = vmatmul.mubr.bf16.gmra.mxu0 %v3843
        %v4861 = vpop.f32.mrf.mxu0
        %v4862 = vadd.f32 %v4821, %v4861
        %v4863 = vpop.f32.mrf.mxu0
        %v4864 = vpop.f32.mrf.mxu0
        %v4865 = vadd.f32 %v4824, %v4864
        %v4866 = vpop.f32.mrf.mxu0
        %4867 = vdwg.mxu0
        %4868 = vmatprep.subr.bf16.mxu0 0
        %4869 = vmatpush1.bf16.msra.mxu0 %v4460
        %4870 = vmatprep.subr.bf16.mxu0 0
        %4871 = vmatpush1.bf16.msra.mxu0 %v4459
        %4872 = vmatprep.subr.bf16.mxu0 0
        %4873 = vmatpush1.bf16.msra.mxu0 %v4458
        %4874 = vmatprep.subr.bf16.mxu0 0
        %4875 = vmatpush1.bf16.msra.mxu0 %v4457
        %4876 = vmatprep.subr.bf16.mxu0 0
        %4877 = vmatpush1.bf16.msra.mxu0 %v4456
        %4878 = vmatprep.subr.bf16.mxu0 0
        %4879 = vmatpush1.bf16.msra.mxu0 %v4455
        %4880 = vmatprep.subr.bf16.mxu0 0
        %4881 = vmatpush1.bf16.msra.mxu0 %v4454
        %4882 = vmatprep.subr.bf16.mxu0 0
        %4883 = vmatpush1.bf16.msra.mxu0 %v4453
        %4884 = vmatprep.subr.bf16.mxu0 0
        %4885 = vmatpush2.bf16.msra.mxu0 0
        %4886 = vmatprep.subr.bf16.mxu0 0
        %4887 = vmatpush2.bf16.msra.mxu0 0
        %4888 = vmatprep.subr.bf16.mxu0 0
        %4889 = vmatpush2.bf16.msra.mxu0 0
        %4890 = vmatprep.subr.bf16.mxu0 0
        %4891 = vmatpush2.bf16.msra.mxu0 0
        %4892 = vmatprep.subr.bf16.mxu0 0
        %4893 = vmatpush2.bf16.msra.mxu0 0
        %4894 = vmatprep.subr.bf16.mxu0 0
        %4895 = vmatpush2.bf16.msra.mxu0 0
        %4896 = vmatprep.subr.bf16.mxu0 0
        %4897 = vmatpush2.bf16.msra.mxu0 0
        %4898 = vmatprep.subr.bf16.mxu0 0
        %4899 = vmatpush2.bf16.msra.mxu0 0
        %4900 = vmatprep.mubr.bf16.mxu0 0
        %4901 = vmatmul.mubr.bf16.gmra.mxu0 %v3845
        %v4902 = vpop.f32.mrf.mxu0
        %v4903 = vadd.f32 %v4862, %v4902
        %v4904 = vpop.f32.mrf.mxu0
        %v4905 = vpop.f32.mrf.mxu0
        %v4906 = vadd.f32 %v4865, %v4905
        %v4907 = vpop.f32.mrf.mxu0
        %4908 = vdwg.mxu0
        %v4909 = vld [vmem:[#allocation5] sm:$0xff]
        %v4910 = vld [vmem:[#allocation5 + $0x8] sm:$0xff]
        %v4911 = vld [vmem:[%s5] sm:$0x1]
        %v4913 = vlaneseq
        %v4914 = vshrl.u32 %v4913, 7
        %v4915 = vsub.s32 0, %v4914
        %v4916 = vrot.slane %v4911, %v4915
        %v4918 = vmul.f32 %v4903, %v4916
        %v4919 = vmul.f32 %v4906, %v4916
        %v4920 = vld [vmem:[%s6] sm:$0x1]
        %v4922 = vlaneseq
        %v4923 = vshrl.u32 %v4922, 7
        %v4924 = vsub.s32 0, %v4923
        %v4925 = vrot.slane %v4920, %v4924
        %v4927 = vadd.f32 %v4918, %v4925
        %v4928 = vadd.f32 %v4919, %v4925
        %v4929 = vadd.f32 %v4927, %v4909
        %v4930 = vadd.f32 %v4928, %v4910
        %v4931 = vmul.f32 %v4929, 0.1
        %v4932 = vmul.f32 %v4930, 0.1
        %v4933 = vmax.f32 %v4929, %v4931
        %v4934 = vmax.f32 %v4930, %v4932
        %v4935 = vpack.c.bf16 %v4934, %v4933
        %v4937 = vunpack.c.l.b16 %v4935
        %v4938 = vunpack.c.h.b16 %v4935
        %v4939 = vpack.c.b16 %v4937, %v4937
        %v4940 = vpack.c.b16 %v4938, %v4938
        %4943 = vst [vmem:[%s412] sm:$0xf] %v4939
        %4944 = vst [vmem:[%s412 + $0x4] sm:$0xf] %v4940
        %s4945 = sand.u32 %s246, 1
        %s4946 = scalar_lea.sflag [#allocation8], %s4945
        %s4947 = sand.u32 %s246, 1
        %s4948 = smul.addr %s4947, 8
        %s4949 = scalar_lea.vmem [#allocation14], %s4948
        // Predicated region
        $region73: #{tpu_custom_call.1} parent=55 // pred_check
          %p4950 = pneg %p256
        $region74: #{tpu_custom_call.1} parent=55 // pred_check_branch
          %4952 = sbr.rel (%p4950) target = $region76
        $region75: #{tpu_custom_call.1} parent=55 // pred_region
          %s4953 = smul.u32 2, %s33
          %s4955 = ssub.s32 128, 128
          %4956 = vsyncadd %s4946, %s4955
          %s4957 = smul.addr %s32, 2
          %s4958 = sadd.s32 %s4953, %s4957
          %s4959 = smul.addr %s4958, 64
          %s4960 = scalar_lea.hbm %s9, %s4959
          %s4961 = sshll.u32 %s4949, 4
          %s4962 = int_to_ptr.vmem [resolvable:$true] %s4961
          %4967 = dma.vmem_to_hbm [thread:$0]  %s4962, 128, %s4960, %s4946, 64, 64, 4
        $region76: #{tpu_custom_call.1} parent=55 // pred_fallthru
          _
      $region56: #{tpu_custom_call.1} parent=5 // pred_fallthru
        _
      %p4968 = scmp.le.s32.totalorder 2, %s23
      // Predicated region
      $region77: #{tpu_custom_call.1} parent=5 // pred_check
        %p4969 = pneg %p4968
      $region78: #{tpu_custom_call.1} parent=5 // pred_check_branch
        %4971 = sbr.rel (%p4969) target = $region80
      $region79: #{tpu_custom_call.1} parent=5 // pred_region
        %s4972 = ssub.s32 %s23, 2
        // Predicated region
        $region81: #{tpu_custom_call.1} parent=79 // pred_check
          %p4973 = pneg %p262
        $region82: #{tpu_custom_call.1} parent=79 // pred_check_branch
          %4975 = sbr.rel (%p4973) target = $region84
        $region83: #{tpu_custom_call.1} parent=79 // pred_region
          %s4976 = sand.u32 %s247, 1
          %s4977 = scalar_lea.sflag [#allocation8], %s4976
          %s4978 = sand.u32 %s247, 1
          %s4979 = smul.addr %s4978, 8
          %s4980 = scalar_lea.vmem [#allocation14], %s4979
          %4981 = dma.done %s4977, 128
        $region84: #{tpu_custom_call.1} parent=79 // pred_fallthru
          _
      $region80: #{tpu_custom_call.1} parent=5 // pred_fallthru
        _
    $region6: #{tpu_custom_call.1} parent=1 // loop_footer
      %s27 = sadd.s32 1, %s23
    $region7: #{tpu_custom_call.1} parent=1 // loop_footer_branch
      %22 = sbr.rel target = $region3
    $region8: #{tpu_custom_call.1} parent=1 // loop_exit
      _
    %4982 = vsyncpa [#allocation7], 1
    %s4983 = scalar_lea.sflag [#allocation7], 1
    %4984 = vsyncpa %s4983, 1
    %4985 = vsyncpa [#allocation10], 1
    %4986 = vsyncpa [#allocation13], 1
    %4987 = vsyncpa [#allocation8], 1
    %s4988 = scalar_lea.sflag [#allocation8], 1
    %4989 = vsyncpa %s4988, 1

</llo_original>
